<compile_context>
chip_gen: v5e
topology: v5e:2x2
jax: 0.10.0
libtpu: 0.0.40
codegen_flags: <defaults>
</compile_context>

<pallas_src>
import math
import functools

import jax
import jax.numpy as jnp
from jax.experimental import pallas as pl
from jax.experimental.pallas import tpu as pltpu

_G = 128  # TPU lane-group width; Q/K/V each get their own group in the weight slab.


def _round_up(x, m):
    return ((x + m - 1) // m) * m


# -----------------------------------------------------------------------------
# Kernel
# -----------------------------------------------------------------------------
def _transformer_kernel(src_ref, tgt_ref, w_ref, b_ref, out_ref, *,
                        input_dim, hidden_dim, output_dim, block_b, seq_len):
    """`block_b` (src, tgt) pairs per grid step; all weights in two resident slabs."""
    H = hidden_dim
    Bt, S = block_b, seq_len
    M = Bt * S  # flattened matmul M dimension

    def linear(x, w, b):
        return jnp.dot(x, w, preferred_element_type=jnp.float32) + b

    def softmax_rows(s):
        s = s - jnp.max(s, axis=-1, keepdims=True)   # stable softmax
        p = jnp.exp(s)
        # EUP reciprocal instead of VPU divide; approx=False keeps the 1e-4 tolerance.
        return p * pl.reciprocal(jnp.sum(p, axis=-1, keepdims=True), approx=False)

    def attn(q_flat, k_flat, v_flat):
        # 1/sqrt(hidden_dim) is already folded into the Q projection (pack time).
        q = q_flat.reshape(Bt, S, H)
        k = k_flat.reshape(Bt, S, H)
        v = v_flat.reshape(Bt, S, H)
        s = jnp.einsum('bqd,bkd->bqk', q, k, preferred_element_type=jnp.float32)
        p = softmax_rows(s)
        # TODO(synk): Dropout(0.1) on attention weights is identity in eval mode.
        # Elementwise product per the reference (requires seq_len == hidden_dim).
        return (p * v).reshape(M, H)

    def proj(x_flat, row_off, n_rows, bias_row, col_off, width):
        w = w_ref[row_off:row_off + n_rows, col_off:col_off + width]
        b = b_ref[bias_row:bias_row + 1, col_off:col_off + width]
        return linear(x_flat, w, b)

    def qkv(x_flat, row_off, n_rows, bias_row):
        # Q/K/V weights live in separate 128-lane column groups -> every slice
        # starts at a lane-group boundary (no lane-offset shuffles).
        q = proj(x_flat, row_off, n_rows, bias_row, 0, H)
        k = proj(x_flat, row_off, n_rows, bias_row, _G, H)
        v = proj(x_flat, row_off, n_rows, bias_row, 2 * _G, H)
        return q, k, v

    # Flatten batch into the matmul M dimension (weights are shared across batch).
    src = src_ref[...].reshape(M, input_dim)
    tgt = tgt_ref[...].reshape(M, H)

    # Static row offsets into the packed weight slab (8-sublane aligned at pack time).
    r_in = _round_up(input_dim, 8)
    r_h = _round_up(H, 8)
    o_e = 0
    o_s = o_e + r_in
    o_c = o_s + r_h
    o_eff = o_c + r_h
    o_dff = o_eff + r_h

    # ---- Encoder: self-attention + relu(feed_forward) ----
    q, k, v = qkv(src, o_e, input_dim, 0)
    enc = attn(q, k, v)
    enc = jnp.maximum(proj(enc, o_eff, H, 3, 0, H), 0.0)

    # ---- Decoder: self-attn, cross-attn(enc), relu(feed_forward) ----
    q, k, v = qkv(tgt, o_s, H, 1)
    dec = attn(q, k, v)

    q = proj(dec, o_c, H, 2, 0, H)          # query from decoder stream
    k = proj(enc, o_c, H, 2, _G, H)         # key   from encoder output
    v = proj(enc, o_c, H, 2, 2 * _G, H)     # value from encoder output
    dec = attn(q, k, v)

    out = jnp.maximum(proj(dec, o_dff, H, 4, 0, output_dim), 0.0)
    # Narrow (output_dim-lane) store: masked vst, but 16x less HBM writeback
    # than lane-padding the output to 128 columns.
    out_ref[...] = out.reshape(Bt, S, output_dim)


# -----------------------------------------------------------------------------
# Wrapper
# -----------------------------------------------------------------------------
def transformer_forward(src, tgt, w_slab, b_slab, *,
                        input_dim, hidden_dim, output_dim, block_b=8):
    B, S, in_dim = src.shape
    assert in_dim == input_dim and tgt.shape == (B, S, hidden_dim)
    # Reference computes softmax(QK^T) * V elementwise; only well-defined for S == hidden.
    assert S == hidden_dim, "reference semantics require seq_len == hidden_dim"
    assert S % 8 == 0

    H = hidden_dim
    grid_b = pl.cdiv(B, block_b)
    b_pad = grid_b * block_b
    if b_pad != B:
        # Pad the batch so the grid divides evenly; padded rows are discarded below.
        src = jnp.pad(src, ((0, b_pad - B), (0, 0), (0, 0)))
        tgt = jnp.pad(tgt, ((0, b_pad - B), (0, 0), (0, 0)))

    kernel = functools.partial(
        _transformer_kernel, input_dim=input_dim, hidden_dim=hidden_dim,
        output_dim=output_dim, block_b=block_b, seq_len=S)

    # Advisory cost estimate for XLA's scheduler around the custom call.
    flops_per_pair = (
        2 * S * input_dim * 3 * H          # encoder QKV projections
        + 2 * S * H * 3 * H                # decoder self-attn QKV
        + 2 * S * H * 3 * H                # decoder cross-attn Q/K/V
        + 2 * S * H * H                    # encoder feed-forward
        + 2 * S * H * output_dim           # decoder feed-forward
        + 3 * 2 * S * S * H)               # three score matmuls
    cost = pl.CostEstimate(
        flops=b_pad * flops_per_pair,
        transcendentals=b_pad * 3 * S * S,
        bytes_accessed=(b_pad * S * (input_dim + H + output_dim) * 4
                        + (w_slab.size + b_slab.size) * 4))

    # VMEM sizing: double-buffered activation blocks + resident slabs + headroom.
    block_bytes = block_b * S * (input_dim + H + output_dim) * 4
    slab_bytes = (w_slab.size + b_slab.size) * 4
    vmem_limit = int(max(32 * 1024 * 1024,
                         min(100 * 1024 * 1024,
                             8 * block_bytes + 2 * slab_bytes + (4 << 20))))

    out = pl.pallas_call(
        kernel,
        out_shape=jax.ShapeDtypeStruct((b_pad, S, output_dim), jnp.float32),
        grid=(grid_b,),
        in_specs=[
            pl.BlockSpec((block_b, S, input_dim), lambda b: (b, 0, 0)),
            pl.BlockSpec((block_b, S, hidden_dim), lambda b: (b, 0, 0)),
            pl.BlockSpec(w_slab.shape, lambda b: (0, 0)),   # resident across grid steps
            pl.BlockSpec(b_slab.shape, lambda b: (0, 0)),
        ],
        out_specs=pl.BlockSpec((block_b, S, output_dim), lambda b: (b, 0, 0)),
        compiler_params=pltpu.CompilerParams(
            dimension_semantics=("parallel",),
            vmem_limit_bytes=vmem_limit),
        cost_estimate=cost,
    )(src, tgt, w_slab, b_slab)

    return out[:B]


# -----------------------------------------------------------------------------
# Parameter init (PyTorch nn.Linear style) and host-side packing
# -----------------------------------------------------------------------------
def init_params(key, input_dim, hidden_dim, output_dim):
    """Deterministic PyTorch-Linear-style uniform init; weights stored [in, out]."""
    def lin(k, din, dout):
        kw, kb = jax.random.split(k)
        bound = 1.0 / math.sqrt(din)
        w = jax.random.uniform(kw, (din, dout), jnp.float32, -bound, bound)
        b = jax.random.uniform(kb, (1, dout), jnp.float32, -bound, bound)
        return w, b

    keys = jax.random.split(key, 11)
    p = {}
    p["e_wq"], p["e_bq"] = lin(keys[0], input_dim, hidden_dim)
    p["e_wk"], p["e_bk"] = lin(keys[1], input_dim, hidden_dim)
    p["e_wv"], p["e_bv"] = lin(keys[2], input_dim, hidden_dim)
    p["e_wff"], p["e_bff"] = lin(keys[3], hidden_dim, hidden_dim)
    p["s_wq"], p["s_bq"] = lin(keys[4], hidden_dim, hidden_dim)
    p["s_wk"], p["s_bk"] = lin(keys[5], hidden_dim, hidden_dim)
    p["s_wv"], p["s_bv"] = lin(keys[6], hidden_dim, hidden_dim)
    p["c_wq"], p["c_bq"] = lin(keys[7], hidden_dim, hidden_dim)
    p["c_wk"], p["c_bk"] = lin(keys[8], hidden_dim, hidden_dim)
    p["c_wv"], p["c_bv"] = lin(keys[9], hidden_dim, hidden_dim)
    p["d_wff"], p["d_bff"] = lin(keys[10], hidden_dim, output_dim)
    return p


def pack_params(params, input_dim, hidden_dim, output_dim):
    """One-time host fold: fold 1/sqrt(H) into Q, pack weights into 2 slabs.

    Weight slab columns: Q in lane group 0 (cols 0:H), K in group 1 (128:128+H),
    V in group 2 (256:256+H) so every in-kernel weight slice is lane-aligned.
    """
    H = hidden_dim
    assert H <= _G and output_dim <= _G
    scale = 1.0 / math.sqrt(H)
    r_in = _round_up(input_dim, 8)
    r_h = _round_up(H, 8)
    width = 3 * _G

    def qkv_block(pre, din, rows):
        blk = jnp.zeros((rows, width), jnp.float32)
        blk = blk.at[:din, 0:H].set(params[pre + "wq"] * scale)
        blk = blk.at[:din, _G:_G + H].set(params[pre + "wk"])
        blk = blk.at[:din, 2 * _G:2 * _G + H].set(params[pre + "wv"])
        bias = jnp.zeros((1, width), jnp.float32)
        bias = bias.at[:, 0:H].set(params[pre + "bq"] * scale)
        bias = bias.at[:, _G:_G + H].set(params[pre + "bk"])
        bias = bias.at[:, 2 * _G:2 * _G + H].set(params[pre + "bv"])
        return blk, bias

    def ff_block(w, b, rows):
        din, dout = w.shape
        blk = jnp.zeros((rows, width), jnp.float32)
        blk = blk.at[:din, 0:dout].set(w)
        bias = jnp.zeros((1, width), jnp.float32)
        bias = bias.at[:, 0:dout].set(b)
        return blk, bias

    e_w, e_b = qkv_block("e_", input_dim, r_in)
    s_w, s_b = qkv_block("s_", H, r_h)
    c_w, c_b = qkv_block("c_", H, r_h)
    eff_w, eff_b = ff_block(params["e_wff"], params["e_bff"], r_h)
    dff_w, dff_b = ff_block(params["d_wff"], params["d_bff"], r_h)

    w_slab = jnp.concatenate([e_w, s_w, c_w, eff_w, dff_w], axis=0)
    b_slab = jnp.concatenate([e_b, s_b, c_b, eff_b, dff_b,
                              jnp.zeros((3, width), jnp.float32)], axis=0)  # pad to 8 rows
    return w_slab, b_slab


# -----------------------------------------------------------------------------
# Pure-jnp reference mirroring the (fixed-up) PyTorch semantics
# -----------------------------------------------------------------------------
def reference_forward(src, tgt, params, hidden_dim):
    def linear(x, w, b):
        return x @ w + b

    def mha(q_in, k_in, v_in, pre):
        q = linear(q_in, params[pre + "wq"], params[pre + "bq"])
        k = linear(k_in, params[pre + "wk"], params[pre + "bk"])
        v = linear(v_in, params[pre + "wv"], params[pre + "bv"])
        a = jax.nn.softmax((q @ k.T) / math.sqrt(hidden_dim), axis=-1)
        return a * v

    enc = mha(src, src, src, "e_")
    enc = jax.nn.relu(linear(enc, params["e_wff"], params["e_bff"]))
    dec = mha(tgt, tgt, tgt, "s_")
    dec = mha(dec, enc, enc, "c_")
    return jax.nn.relu(linear(dec, params["d_wff"], params["d_bff"]))


if __name__ == "__main__":
    input_dim, hidden_dim, output_dim, num_heads = 16, 32, 8, 4  # num_heads unused (as in reference)
    seq = hidden_dim   # reference's elementwise attn*value broadcast requires seq == hidden_dim
    batch = 16         # batched (src, tgt) pairs
    block_b = 8        # pairs per grid step -> 2 "parallel" grid steps (keeps both v7x TCs busy)

    key = jax.random.PRNGKey(0)
    k_src, k_tgt, k_par = jax.random.split(key, 3)
    src = jax.random.normal(k_src, (batch, seq, input_dim), jnp.float32)
    tgt = jax.random.normal(k_tgt, (batch, seq, hidden_dim), jnp.float32)

    params = init_params(k_par, input_dim, hidden_dim, output_dim)
    w_slab, b_slab = pack_params(params, input_dim, hidden_dim, output_dim)

    out = jax.block_until_ready(
        transformer_forward(src, tgt, w_slab, b_slab,
                            input_dim=input_dim, hidden_dim=hidden_dim,
                            output_dim=output_dim, block_b=block_b))
    ref = jax.vmap(lambda s, t: reference_forward(s, t, params, hidden_dim))(src, tgt)

    assert out.shape == (batch, seq, output_dim), out.shape
    assert jnp.allclose(out, ref, atol=1e-4, rtol=1e-4), "mismatch vs reference"
    print("KERNEL_OK")
</pallas_src>

<mosaic_0001>
module attributes {stable_mosaic.version = 11 : i64} {
  func.func @_transformer_kernel(%arg0: i32, %arg1: memref<8x32x16xf32, #tpu.memory_space<vmem>>, %arg2: memref<8x32x32xf32, #tpu.memory_space<vmem>>, %arg3: memref<144x384xf32, #tpu.memory_space<vmem>>, %arg4: memref<8x384xf32, #tpu.memory_space<vmem>>, %arg5: memref<8x32x8xf32, #tpu.memory_space<vmem>>) attributes {dimension_semantics = [#tpu.dimension_semantics<parallel>], iteration_bounds = array<i64: 2>, scalar_prefetch = 0 : i64, scratch_operands = 0 : i64, tpu.core_type = #tpu.core_type<tc>, window_params = [{transform_indices = @transform_0, window_bounds = array<i64: 8, 32, 16>}, {transform_indices = @transform_1, window_bounds = array<i64: 8, 32, 32>}, {pipeline_mode = #tpu.pipeline_mode<synchronous>, transform_indices = @transform_2, window_bounds = array<i64: 144, 384>}, {pipeline_mode = #tpu.pipeline_mode<synchronous>, transform_indices = @transform_3, window_bounds = array<i64: 8, 384>}, {transform_indices = @transform_4, window_bounds = array<i64: 8, 32, 8>}]} {
    %c0 = arith.constant 0 : index
    %c0_0 = arith.constant 0 : index
    %c0_1 = arith.constant 0 : index
    %0 = vector.load %arg1[%c0, %c0_0, %c0_1] : memref<8x32x16xf32, #tpu.memory_space<vmem>>, vector<8x32x16xf32>
    %1 = vector.shape_cast %0 : vector<8x32x16xf32> to vector<256x16xf32>
    %c0_2 = arith.constant 0 : index
    %c0_3 = arith.constant 0 : index
    %c0_4 = arith.constant 0 : index
    %2 = vector.load %arg2[%c0_2, %c0_3, %c0_4] : memref<8x32x32xf32, #tpu.memory_space<vmem>>, vector<8x32x32xf32>
    %3 = vector.shape_cast %2 : vector<8x32x32xf32> to vector<256x32xf32>
    %c0_5 = arith.constant 0 : index
    %c0_6 = arith.constant 0 : index
    %4 = vector.load %arg3[%c0_5, %c0_6] : memref<144x384xf32, #tpu.memory_space<vmem>>, vector<16x32xf32>
    %c0_7 = arith.constant 0 : index
    %c0_8 = arith.constant 0 : index
    %5 = vector.load %arg4[%c0_7, %c0_8] : memref<8x384xf32, #tpu.memory_space<vmem>>, vector<1x32xf32>
    %cst = arith.constant dense<0.000000e+00> : vector<256x32xf32>
    %6 = tpu.matmul %1, %4, %cst {dimension_numbers = #tpu.dot_dimension_numbers<[1], [0], [0], [1], [0, 0, 1, 1], [], []>} : vector<256x16xf32>, vector<16x32xf32>, vector<256x32xf32> -> vector<256x32xf32>
    %7 = vector.broadcast %5 : vector<1x32xf32> to vector<256x32xf32>
    %8 = arith.addf %6, %7 : vector<256x32xf32>
    %c0_9 = arith.constant 0 : index
    %c128 = arith.constant 128 : index
    %9 = vector.load %arg3[%c0_9, %c128] : memref<144x384xf32, #tpu.memory_space<vmem>>, vector<16x32xf32>
    %c0_10 = arith.constant 0 : index
    %c128_11 = arith.constant 128 : index
    %10 = vector.load %arg4[%c0_10, %c128_11] : memref<8x384xf32, #tpu.memory_space<vmem>>, vector<1x32xf32>
    %cst_12 = arith.constant dense<0.000000e+00> : vector<256x32xf32>
    %11 = tpu.matmul %1, %9, %cst_12 {dimension_numbers = #tpu.dot_dimension_numbers<[1], [0], [0], [1], [0, 0, 1, 1], [], []>} : vector<256x16xf32>, vector<16x32xf32>, vector<256x32xf32> -> vector<256x32xf32>
    %12 = vector.broadcast %10 : vector<1x32xf32> to vector<256x32xf32>
    %13 = arith.addf %11, %12 : vector<256x32xf32>
    %c0_13 = arith.constant 0 : index
    %c256 = arith.constant 256 : index
    %14 = vector.load %arg3[%c0_13, %c256] : memref<144x384xf32, #tpu.memory_space<vmem>>, vector<16x32xf32>
    %c0_14 = arith.constant 0 : index
    %c256_15 = arith.constant 256 : index
    %15 = vector.load %arg4[%c0_14, %c256_15] : memref<8x384xf32, #tpu.memory_space<vmem>>, vector<1x32xf32>
    %cst_16 = arith.constant dense<0.000000e+00> : vector<256x32xf32>
    %16 = tpu.matmul %1, %14, %cst_16 {dimension_numbers = #tpu.dot_dimension_numbers<[1], [0], [0], [1], [0, 0, 1, 1], [], []>} : vector<256x16xf32>, vector<16x32xf32>, vector<256x32xf32> -> vector<256x32xf32>
    %17 = vector.broadcast %15 : vector<1x32xf32> to vector<256x32xf32>
    %18 = arith.addf %16, %17 : vector<256x32xf32>
    %19 = vector.shape_cast %8 : vector<256x32xf32> to vector<8x32x32xf32>
    %20 = vector.shape_cast %13 : vector<256x32xf32> to vector<8x32x32xf32>
    %21 = vector.shape_cast %18 : vector<256x32xf32> to vector<8x32x32xf32>
    "tpu.trace_start"() <{level = 10 : i32, message = "bqd,bkd->bqk"}> : () -> ()
    %cst_17 = arith.constant dense<0.000000e+00> : vector<8x32x32xf32>
    %22 = tpu.matmul %19, %20, %cst_17 {dimension_numbers = #tpu.dot_dimension_numbers<[2], [2], [1], [1], [0, 0, 0, 1, 1, 1], [0], [0]>} : vector<8x32x32xf32>, vector<8x32x32xf32>, vector<8x32x32xf32> -> vector<8x32x32xf32>
    "tpu.trace_stop"() : () -> ()
    %cst_18 = arith.constant dense<0xFF800000> : vector<8x32xf32>
    %23 = vector.multi_reduction <maximumf>, %22, %cst_18 [2] : vector<8x32x32xf32> to vector<8x32xf32>
    %24 = vector.shape_cast %23 : vector<8x32xf32> to vector<8x32x1xf32>
    %25 = vector.broadcast %24 : vector<8x32x1xf32> to vector<8x32x32xf32>
    %26 = arith.subf %22, %25 : vector<8x32x32xf32>
    %27 = math.exp %26 : vector<8x32x32xf32>
    %cst_19 = arith.constant dense<0.000000e+00> : vector<8x32xf32>
    %28 = vector.multi_reduction <add>, %27, %cst_19 [2] : vector<8x32x32xf32> to vector<8x32xf32>
    %29 = vector.shape_cast %28 : vector<8x32xf32> to vector<8x32x1xf32>
    %30 = tpu.reciprocal %29 : vector<8x32x1xf32> -> vector<8x32x1xf32>
    %31 = vector.broadcast %30 : vector<8x32x1xf32> to vector<8x32x32xf32>
    %32 = arith.mulf %27, %31 : vector<8x32x32xf32>
    %33 = arith.mulf %32, %21 : vector<8x32x32xf32>
    %34 = vector.shape_cast %33 : vector<8x32x32xf32> to vector<256x32xf32>
    %c80 = arith.constant 80 : index
    %c0_20 = arith.constant 0 : index
    %35 = vector.load %arg3[%c80, %c0_20] : memref<144x384xf32, #tpu.memory_space<vmem>>, vector<32x32xf32>
    %c3 = arith.constant 3 : index
    %c0_21 = arith.constant 0 : index
    %36 = vector.load %arg4[%c3, %c0_21] : memref<8x384xf32, #tpu.memory_space<vmem>>, vector<1x32xf32>
    %cst_22 = arith.constant dense<0.000000e+00> : vector<256x32xf32>
    %37 = tpu.matmul %34, %35, %cst_22 {dimension_numbers = #tpu.dot_dimension_numbers<[1], [0], [0], [1], [0, 0, 1, 1], [], []>} : vector<256x32xf32>, vector<32x32xf32>, vector<256x32xf32> -> vector<256x32xf32>
    %38 = vector.broadcast %36 : vector<1x32xf32> to vector<256x32xf32>
    %39 = arith.addf %37, %38 : vector<256x32xf32>
    %cst_23 = arith.constant 0.000000e+00 : f32
    %40 = vector.broadcast %cst_23 : f32 to vector<256x32xf32>
    %41 = arith.maximumf %39, %40 : vector<256x32xf32>
    %c16 = arith.constant 16 : index
    %c0_24 = arith.constant 0 : index
    %42 = vector.load %arg3[%c16, %c0_24] : memref<144x384xf32, #tpu.memory_space<vmem>>, vector<32x32xf32>
    %c1 = arith.constant 1 : index
    %c0_25 = arith.constant 0 : index
    %43 = vector.load %arg4[%c1, %c0_25] : memref<8x384xf32, #tpu.memory_space<vmem>>, vector<1x32xf32>
    %cst_26 = arith.constant dense<0.000000e+00> : vector<256x32xf32>
    %44 = tpu.matmul %3, %42, %cst_26 {dimension_numbers = #tpu.dot_dimension_numbers<[1], [0], [0], [1], [0, 0, 1, 1], [], []>} : vector<256x32xf32>, vector<32x32xf32>, vector<256x32xf32> -> vector<256x32xf32>
    %45 = vector.broadcast %43 : vector<1x32xf32> to vector<256x32xf32>
    %46 = arith.addf %44, %45 : vector<256x32xf32>
    %c16_27 = arith.constant 16 : index
    %c128_28 = arith.constant 128 : index
    %47 = vector.load %arg3[%c16_27, %c128_28] : memref<144x384xf32, #tpu.memory_space<vmem>>, vector<32x32xf32>
    %c1_29 = arith.constant 1 : index
    %c128_30 = arith.constant 128 : index
    %48 = vector.load %arg4[%c1_29, %c128_30] : memref<8x384xf32, #tpu.memory_space<vmem>>, vector<1x32xf32>
    %cst_31 = arith.constant dense<0.000000e+00> : vector<256x32xf32>
    %49 = tpu.matmul %3, %47, %cst_31 {dimension_numbers = #tpu.dot_dimension_numbers<[1], [0], [0], [1], [0, 0, 1, 1], [], []>} : vector<256x32xf32>, vector<32x32xf32>, vector<256x32xf32> -> vector<256x32xf32>
    %50 = vector.broadcast %48 : vector<1x32xf32> to vector<256x32xf32>
    %51 = arith.addf %49, %50 : vector<256x32xf32>
    %c16_32 = arith.constant 16 : index
    %c256_33 = arith.constant 256 : index
    %52 = vector.load %arg3[%c16_32, %c256_33] : memref<144x384xf32, #tpu.memory_space<vmem>>, vector<32x32xf32>
    %c1_34 = arith.constant 1 : index
    %c256_35 = arith.constant 256 : index
    %53 = vector.load %arg4[%c1_34, %c256_35] : memref<8x384xf32, #tpu.memory_space<vmem>>, vector<1x32xf32>
    %cst_36 = arith.constant dense<0.000000e+00> : vector<256x32xf32>
    %54 = tpu.matmul %3, %52, %cst_36 {dimension_numbers = #tpu.dot_dimension_numbers<[1], [0], [0], [1], [0, 0, 1, 1], [], []>} : vector<256x32xf32>, vector<32x32xf32>, vector<256x32xf32> -> vector<256x32xf32>
    %55 = vector.broadcast %53 : vector<1x32xf32> to vector<256x32xf32>
    %56 = arith.addf %54, %55 : vector<256x32xf32>
    %57 = vector.shape_cast %46 : vector<256x32xf32> to vector<8x32x32xf32>
    %58 = vector.shape_cast %51 : vector<256x32xf32> to vector<8x32x32xf32>
    %59 = vector.shape_cast %56 : vector<256x32xf32> to vector<8x32x32xf32>
    "tpu.trace_start"() <{level = 10 : i32, message = "bqd,bkd->bqk"}> : () -> ()
    %cst_37 = arith.constant dense<0.000000e+00> : vector<8x32x32xf32>
    %60 = tpu.matmul %57, %58, %cst_37 {dimension_numbers = #tpu.dot_dimension_numbers<[2], [2], [1], [1], [0, 0, 0, 1, 1, 1], [0], [0]>} : vector<8x32x32xf32>, vector<8x32x32xf32>, vector<8x32x32xf32> -> vector<8x32x32xf32>
    "tpu.trace_stop"() : () -> ()
    %cst_38 = arith.constant dense<0xFF800000> : vector<8x32xf32>
    %61 = vector.multi_reduction <maximumf>, %60, %cst_38 [2] : vector<8x32x32xf32> to vector<8x32xf32>
    %62 = vector.shape_cast %61 : vector<8x32xf32> to vector<8x32x1xf32>
    %63 = vector.broadcast %62 : vector<8x32x1xf32> to vector<8x32x32xf32>
    %64 = arith.subf %60, %63 : vector<8x32x32xf32>
    %65 = math.exp %64 : vector<8x32x32xf32>
    %cst_39 = arith.constant dense<0.000000e+00> : vector<8x32xf32>
    %66 = vector.multi_reduction <add>, %65, %cst_39 [2] : vector<8x32x32xf32> to vector<8x32xf32>
    %67 = vector.shape_cast %66 : vector<8x32xf32> to vector<8x32x1xf32>
    %68 = tpu.reciprocal %67 : vector<8x32x1xf32> -> vector<8x32x1xf32>
    %69 = vector.broadcast %68 : vector<8x32x1xf32> to vector<8x32x32xf32>
    %70 = arith.mulf %65, %69 : vector<8x32x32xf32>
    %71 = arith.mulf %70, %59 : vector<8x32x32xf32>
    %72 = vector.shape_cast %71 : vector<8x32x32xf32> to vector<256x32xf32>
    %c48 = arith.constant 48 : index
    %c0_40 = arith.constant 0 : index
    %73 = vector.load %arg3[%c48, %c0_40] : memref<144x384xf32, #tpu.memory_space<vmem>>, vector<32x32xf32>
    %c2 = arith.constant 2 : index
    %c0_41 = arith.constant 0 : index
    %74 = vector.load %arg4[%c2, %c0_41] : memref<8x384xf32, #tpu.memory_space<vmem>>, vector<1x32xf32>
    %cst_42 = arith.constant dense<0.000000e+00> : vector<256x32xf32>
    %75 = tpu.matmul %72, %73, %cst_42 {dimension_numbers = #tpu.dot_dimension_numbers<[1], [0], [0], [1], [0, 0, 1, 1], [], []>} : vector<256x32xf32>, vector<32x32xf32>, vector<256x32xf32> -> vector<256x32xf32>
    %76 = vector.broadcast %74 : vector<1x32xf32> to vector<256x32xf32>
    %77 = arith.addf %75, %76 : vector<256x32xf32>
    %c48_43 = arith.constant 48 : index
    %c128_44 = arith.constant 128 : index
    %78 = vector.load %arg3[%c48_43, %c128_44] : memref<144x384xf32, #tpu.memory_space<vmem>>, vector<32x32xf32>
    %c2_45 = arith.constant 2 : index
    %c128_46 = arith.constant 128 : index
    %79 = vector.load %arg4[%c2_45, %c128_46] : memref<8x384xf32, #tpu.memory_space<vmem>>, vector<1x32xf32>
    %cst_47 = arith.constant dense<0.000000e+00> : vector<256x32xf32>
    %80 = tpu.matmul %41, %78, %cst_47 {dimension_numbers = #tpu.dot_dimension_numbers<[1], [0], [0], [1], [0, 0, 1, 1], [], []>} : vector<256x32xf32>, vector<32x32xf32>, vector<256x32xf32> -> vector<256x32xf32>
    %81 = vector.broadcast %79 : vector<1x32xf32> to vector<256x32xf32>
    %82 = arith.addf %80, %81 : vector<256x32xf32>
    %c48_48 = arith.constant 48 : index
    %c256_49 = arith.constant 256 : index
    %83 = vector.load %arg3[%c48_48, %c256_49] : memref<144x384xf32, #tpu.memory_space<vmem>>, vector<32x32xf32>
    %c2_50 = arith.constant 2 : index
    %c256_51 = arith.constant 256 : index
    %84 = vector.load %arg4[%c2_50, %c256_51] : memref<8x384xf32, #tpu.memory_space<vmem>>, vector<1x32xf32>
    %cst_52 = arith.constant dense<0.000000e+00> : vector<256x32xf32>
    %85 = tpu.matmul %41, %83, %cst_52 {dimension_numbers = #tpu.dot_dimension_numbers<[1], [0], [0], [1], [0, 0, 1, 1], [], []>} : vector<256x32xf32>, vector<32x32xf32>, vector<256x32xf32> -> vector<256x32xf32>
    %86 = vector.broadcast %84 : vector<1x32xf32> to vector<256x32xf32>
    %87 = arith.addf %85, %86 : vector<256x32xf32>
    %88 = vector.shape_cast %77 : vector<256x32xf32> to vector<8x32x32xf32>
    %89 = vector.shape_cast %82 : vector<256x32xf32> to vector<8x32x32xf32>
    %90 = vector.shape_cast %87 : vector<256x32xf32> to vector<8x32x32xf32>
    "tpu.trace_start"() <{level = 10 : i32, message = "bqd,bkd->bqk"}> : () -> ()
    %cst_53 = arith.constant dense<0.000000e+00> : vector<8x32x32xf32>
    %91 = tpu.matmul %88, %89, %cst_53 {dimension_numbers = #tpu.dot_dimension_numbers<[2], [2], [1], [1], [0, 0, 0, 1, 1, 1], [0], [0]>} : vector<8x32x32xf32>, vector<8x32x32xf32>, vector<8x32x32xf32> -> vector<8x32x32xf32>
    "tpu.trace_stop"() : () -> ()
    %cst_54 = arith.constant dense<0xFF800000> : vector<8x32xf32>
    %92 = vector.multi_reduction <maximumf>, %91, %cst_54 [2] : vector<8x32x32xf32> to vector<8x32xf32>
    %93 = vector.shape_cast %92 : vector<8x32xf32> to vector<8x32x1xf32>
    %94 = vector.broadcast %93 : vector<8x32x1xf32> to vector<8x32x32xf32>
    %95 = arith.subf %91, %94 : vector<8x32x32xf32>
    %96 = math.exp %95 : vector<8x32x32xf32>
    %cst_55 = arith.constant dense<0.000000e+00> : vector<8x32xf32>
    %97 = vector.multi_reduction <add>, %96, %cst_55 [2] : vector<8x32x32xf32> to vector<8x32xf32>
    %98 = vector.shape_cast %97 : vector<8x32xf32> to vector<8x32x1xf32>
    %99 = tpu.reciprocal %98 : vector<8x32x1xf32> -> vector<8x32x1xf32>
    %100 = vector.broadcast %99 : vector<8x32x1xf32> to vector<8x32x32xf32>
    %101 = arith.mulf %96, %100 : vector<8x32x32xf32>
    %102 = arith.mulf %101, %90 : vector<8x32x32xf32>
    %103 = vector.shape_cast %102 : vector<8x32x32xf32> to vector<256x32xf32>
    %c112 = arith.constant 112 : index
    %c0_56 = arith.constant 0 : index
    %104 = vector.load %arg3[%c112, %c0_56] : memref<144x384xf32, #tpu.memory_space<vmem>>, vector<32x8xf32>
    %c4 = arith.constant 4 : index
    %c0_57 = arith.constant 0 : index
    %105 = vector.load %arg4[%c4, %c0_57] : memref<8x384xf32, #tpu.memory_space<vmem>>, vector<1x8xf32>
    %cst_58 = arith.constant dense<0.000000e+00> : vector<256x8xf32>
    %106 = tpu.matmul %103, %104, %cst_58 {dimension_numbers = #tpu.dot_dimension_numbers<[1], [0], [0], [1], [0, 0, 1, 1], [], []>} : vector<256x32xf32>, vector<32x8xf32>, vector<256x8xf32> -> vector<256x8xf32>
    %107 = vector.broadcast %105 : vector<1x8xf32> to vector<256x8xf32>
    %108 = arith.addf %106, %107 : vector<256x8xf32>
    %cst_59 = arith.constant 0.000000e+00 : f32
    %109 = vector.broadcast %cst_59 : f32 to vector<256x8xf32>
    %110 = arith.maximumf %108, %109 : vector<256x8xf32>
    %111 = vector.shape_cast %110 : vector<256x8xf32> to vector<8x32x8xf32>
    %c0_60 = arith.constant 0 : index
    %c0_61 = arith.constant 0 : index
    %c0_62 = arith.constant 0 : index
    %112 = vector.load %arg5[%c0_60, %c0_61, %c0_62] : memref<8x32x8xf32, #tpu.memory_space<vmem>>, vector<8x32x8xf32>
    tpu.vector_store %arg5[%c0_60, %c0_61, %c0_62], %111 {strides = array<i32>} : memref<8x32x8xf32, #tpu.memory_space<vmem>>, vector<8x32x8xf32>,
    return
  }
  func.func @transform_0(%arg0: i32) -> (i32, i32, i32) {
    %c0_i32 = arith.constant 0 : i32
    %c0_i32_0 = arith.constant 0 : i32
    %c0_i32_1 = arith.constant 0 : i32
    return %arg0, %c0_i32, %c0_i32_0 : i32, i32, i32
  }
  func.func @transform_1(%arg0: i32) -> (i32, i32, i32) {
    %c0_i32 = arith.constant 0 : i32
    %c0_i32_0 = arith.constant 0 : i32
    %c0_i32_1 = arith.constant 0 : i32
    return %arg0, %c0_i32, %c0_i32_0 : i32, i32, i32
  }
  func.func @transform_2(%arg0: i32) -> (i32, i32) {
    %c0_i32 = arith.constant 0 : i32
    %c0_i32_0 = arith.constant 0 : i32
    %c0_i32_1 = arith.constant 0 : i32
    return %c0_i32, %c0_i32_0 : i32, i32
  }
  func.func @transform_3(%arg0: i32) -> (i32, i32) {
    %c0_i32 = arith.constant 0 : i32
    %c0_i32_0 = arith.constant 0 : i32
    %c0_i32_1 = arith.constant 0 : i32
    return %c0_i32, %c0_i32_0 : i32, i32
  }
  func.func @transform_4(%arg0: i32) -> (i32, i32, i32) {
    %c0_i32 = arith.constant 0 : i32
    %c0_i32_0 = arith.constant 0 : i32
    %c0_i32_1 = arith.constant 0 : i32
    return %arg0, %c0_i32, %c0_i32_0 : i32, i32, i32
  }
}

</mosaic_0001>

<llo_original>
// kernel: tpu_custom_call.1
$region0: #{tpu_custom_call.1}
  #allocation0 [shape = 'u32[]', space=smem, size = 0x4, offset = 0x4, fixed_abs, tag = 'smem constant byte address 0x4 - core index']
  #allocation1 [shape = 'u32[72,128]{1,0:T(1,128)}', space=vmem, size = 0x9000, scoped, tag = 'internal scratch']
  %s0 = inlined_call_operand.vmem [shape: f32[16,32,16], index: 0, kind: input, shape index: {}]
  %s1 = inlined_call_operand.vmem [shape: f32[16,32,32], index: 1, kind: input, shape index: {}]
  %s2 = inlined_call_operand.hbm [shape: f32[144,384], index: 2, kind: input, shape index: {}]
  %s3 = inlined_call_operand.vmem [shape: f32[8,384], index: 3, kind: input, shape index: {}]
  %s4 = inlined_call_operand.vmem [shape: f32[16,32,8], index: 4, kind: output, shape index: {}]
  %s5 = sld [smem:[#allocation0]]
  $region53: #{tpu_custom_call.1} parent=0
    _
  %s7 = ssub.s32 1, %s5
  %s8 = scalar_select 0, %s7, %s5
  $region1: #{tpu_custom_call.1} parent=0
    #allocation2 [shape = 'u8[221184]{0}', space=vmem, size = 0x36000, scoped, tag = 'input window, operand 2, single buffered']
    #allocation3 [shape = 's32[2]{0}', space=sflag, size = 0x8, scoped, tag = 'scoped memory for tpu_custom_call.1']
    %9 = vsyncpa [#allocation3], 0
    loop: start=0, step=1, limit=4
    $region2: #{tpu_custom_call.1} parent=1 // loop_pre_header
      _
    $region3: #{tpu_custom_call.1} parent=1 // loop_header
      %s11 = sphi 0, %s15
      %p12 = scmp.ge.s32.totalorder %s11, 4
      %s21 = sphi 0, %s23
      %s24 = sphi 0, %s21
      %s25 = sphi 0, %s24
      %s41 = sphi 0, %s25
      %s47 = sphi 0, %s49
      %s50 = sphi 0, %s47
      %s51 = sphi 0, %s50
      %s67 = sphi 0, %s51
      %s71 = sphi 0, %s71
      %s73 = sphi 0, %s71
      %s74 = sphi 0, %s73
      %s88 = sphi 0, %s74
      %s92 = sphi 0, %s92
      %s94 = sphi 0, %s92
      %s95 = sphi 0, %s94
      %s109 = sphi 0, %s95
      %s115 = sphi 0, %s117
      %s118 = sphi 0, %s115
      %s119 = sphi 0, %s118
      %s135 = sphi 0, %s119
    $region4: #{tpu_custom_call.1} parent=1 // loop_header_branch
      %14 = sbr.rel (%p12) target = $region8
    $region5: #{tpu_custom_call.1} parent=1 // loop_body
      %s16 = ssub.s32 %s11, 1
      %s17 = ssub.s32 %s11, 2
      %s18 = sadd.s32 %s11, 1
      %s19 = ssub.s32 %s11, %s18
      %p20 = scmp.eq.s32.totalorder %s19, 0
      %s22 = sadd.s32 %s21, 1
      %s23 = scalar_select %p20, %s21, %s22
      %p26 = pneg %p20
      %p27 = scmp.eq.s32.totalorder %s11, 1
      %p28 = por %p26, %p27
      %p29 = scmp.ne.s32.totalorder %s21, %s24
      %p30 = scmp.eq.s32.totalorder %s11, 0
      %p31 = por %p29, %p30
      %p32 = scmp.ne.s32.totalorder %s21, %s24
      %p33 = scmp.eq.s32.totalorder %s16, 1
      %p34 = por %p32, %p33
      %p35 = scmp.ne.s32.totalorder %s24, %s25
      %p36 = scmp.eq.s32.totalorder %s16, 0
      %p37 = por %p35, %p36
      %p38 = scmp.ne.s32.totalorder %s24, %s25
      %p39 = scmp.eq.s32.totalorder %s17, 1
      %p40 = por %p38, %p39
      %p42 = scmp.ne.s32.totalorder %s25, %s41
      %p43 = scmp.eq.s32.totalorder %s17, 0
      %p44 = por %p42, %p43
      %s45 = ssub.s32 %s11, %s18
      %p46 = scmp.eq.s32.totalorder %s45, 0
      %s48 = sadd.s32 %s47, 1
      %s49 = scalar_select %p46, %s47, %s48
      %p52 = pneg %p46
      %p53 = scmp.eq.s32.totalorder %s11, 1
      %p54 = por %p52, %p53
      %p55 = scmp.ne.s32.totalorder %s47, %s50
      %p56 = scmp.eq.s32.totalorder %s11, 0
      %p57 = por %p55, %p56
      %p58 = scmp.ne.s32.totalorder %s47, %s50
      %p59 = scmp.eq.s32.totalorder %s16, 1
      %p60 = por %p58, %p59
      %p61 = scmp.ne.s32.totalorder %s50, %s51
      %p62 = scmp.eq.s32.totalorder %s16, 0
      %p63 = por %p61, %p62
      %p64 = scmp.ne.s32.totalorder %s50, %s51
      %p65 = scmp.eq.s32.totalorder %s17, 1
      %p66 = por %p64, %p65
      %p68 = scmp.ne.s32.totalorder %s51, %s67
      %p69 = scmp.eq.s32.totalorder %s17, 0
      %p70 = por %p68, %p69
      %s72 = sadd.s32 %s71, 1
      %p75 = scmp.eq.s32.totalorder %s11, 1
      %p76 = scmp.ne.s32.totalorder %s71, %s73
      %p77 = scmp.eq.s32.totalorder %s11, 0
      %p78 = por %p76, %p77
      %p79 = scmp.ne.s32.totalorder %s71, %s73
      %p80 = scmp.eq.s32.totalorder %s16, 1
      %p81 = por %p79, %p80
      %p82 = scmp.ne.s32.totalorder %s73, %s74
      %p83 = scmp.eq.s32.totalorder %s16, 0
      %p84 = por %p82, %p83
      %p85 = scmp.ne.s32.totalorder %s73, %s74
      %p86 = scmp.eq.s32.totalorder %s17, 1
      %p87 = por %p85, %p86
      %p89 = scmp.ne.s32.totalorder %s74, %s88
      %p90 = scmp.eq.s32.totalorder %s17, 0
      %p91 = por %p89, %p90
      %s93 = sadd.s32 %s92, 1
      %p96 = scmp.eq.s32.totalorder %s11, 1
      %p97 = scmp.ne.s32.totalorder %s92, %s94
      %p98 = scmp.eq.s32.totalorder %s11, 0
      %p99 = por %p97, %p98
      %p100 = scmp.ne.s32.totalorder %s92, %s94
      %p101 = scmp.eq.s32.totalorder %s16, 1
      %p102 = por %p100, %p101
      %p103 = scmp.ne.s32.totalorder %s94, %s95
      %p104 = scmp.eq.s32.totalorder %s16, 0
      %p105 = por %p103, %p104
      %p106 = scmp.ne.s32.totalorder %s94, %s95
      %p107 = scmp.eq.s32.totalorder %s17, 1
      %p108 = por %p106, %p107
      %p110 = scmp.ne.s32.totalorder %s95, %s109
      %p111 = scmp.eq.s32.totalorder %s17, 0
      %p112 = por %p110, %p111
      %s113 = ssub.s32 %s11, %s18
      %p114 = scmp.eq.s32.totalorder %s113, 0
      %s116 = sadd.s32 %s115, 1
      %s117 = scalar_select %p114, %s115, %s116
      %p120 = pneg %p114
      %p121 = scmp.eq.s32.totalorder %s11, 1
      %p122 = por %p120, %p121
      %p123 = scmp.ne.s32.totalorder %s115, %s118
      %p124 = scmp.eq.s32.totalorder %s11, 0
      %p125 = por %p123, %p124
      %p126 = scmp.ne.s32.totalorder %s115, %s118
      %p127 = scmp.eq.s32.totalorder %s16, 1
      %p128 = por %p126, %p127
      %p129 = scmp.ne.s32.totalorder %s118, %s119
      %p130 = scmp.eq.s32.totalorder %s16, 0
      %p131 = por %p129, %p130
      %p132 = scmp.ne.s32.totalorder %s118, %s119
      %p133 = scmp.eq.s32.totalorder %s17, 1
      %p134 = por %p132, %p133
      %p136 = scmp.ne.s32.totalorder %s119, %s135
      %p137 = scmp.eq.s32.totalorder %s17, 0
      %p138 = por %p136, %p137
      %p139 = scmp.le.s32.totalorder 1, %s11
      %p140 = scmp.lt.s32.totalorder %s11, 3
      %p141 = pnand %p139, %p140
      %p142 = pneg %p141
      // Predicated region
      $region9: #{tpu_custom_call.1} parent=5 // pred_check
        _
      $region10: #{tpu_custom_call.1} parent=5 // pred_check_branch
        %144 = sbr.rel (%p141) target = $region12
      $region11: #{tpu_custom_call.1} parent=5 // pred_region
        %s145 = ssub.s32 %s11, 1
        // Predicated region
        $region13: #{tpu_custom_call.1} parent=11 // pred_check
          %p146 = pneg %p84
        $region14: #{tpu_custom_call.1} parent=11 // pred_check_branch
          %148 = sbr.rel (%p146) target = $region16
        $region15: #{tpu_custom_call.1} parent=11 // pred_region
          %150 = vsyncadd [#allocation3], 0
          %s151 = sshll.u32 %s2, 4
          %s152 = int_to_ptr.hbm [resolvable:$true] %s151
          %s153 = sshll.u32 [#allocation2], 4
          %s154 = int_to_ptr.vmem [resolvable:$true] %s153
          %159 = dma.hbm_to_vmem [thread:$0]  %s152, 6912, %s154, [#allocation3], 384, 384, 24
        $region16: #{tpu_custom_call.1} parent=11 // pred_fallthru
          _
        // Predicated region
        $region17: #{tpu_custom_call.1} parent=11 // pred_check
          %p160 = pneg %p105
        $region18: #{tpu_custom_call.1} parent=11 // pred_check_branch
          %162 = sbr.rel (%p160) target = $region20
        $region19: #{tpu_custom_call.1} parent=11 // pred_region
          _
        $region20: #{tpu_custom_call.1} parent=11 // pred_fallthru
          _
      $region12: #{tpu_custom_call.1} parent=5 // pred_fallthru
        _
      %p163 = scmp.lt.s32.totalorder %s11, 2
      // Predicated region
      $region21: #{tpu_custom_call.1} parent=5 // pred_check
        %p164 = pneg %p163
      $region22: #{tpu_custom_call.1} parent=5 // pred_check_branch
        %166 = sbr.rel (%p164) target = $region24
      $region23: #{tpu_custom_call.1} parent=5 // pred_region
        // Predicated region
        $region25: #{tpu_custom_call.1} parent=23 // pred_check
          %p167 = pneg %p31
        $region26: #{tpu_custom_call.1} parent=23 // pred_check_branch
          %169 = sbr.rel (%p167) target = $region28
        $region27: #{tpu_custom_call.1} parent=23 // pred_region
          %s170 = smul.u32 8, %s11
          %p171 = scmp.lt.s32.totalorder %s170, 15
          %s172 = scalar_select %p171, %s170, 15
          %s173 = smul.addr %s172, 4
          %s174 = smul.addr %s173, 8
          %s175 = scalar_lea.vmem %s0, %s174
          %s176 = smul.u32 8, %s11
        $region28: #{tpu_custom_call.1} parent=23 // pred_fallthru
          _
        // Predicated region
        $region29: #{tpu_custom_call.1} parent=23 // pred_check
          %p177 = pneg %p57
        $region30: #{tpu_custom_call.1} parent=23 // pred_check_branch
          %179 = sbr.rel (%p177) target = $region32
        $region31: #{tpu_custom_call.1} parent=23 // pred_region
          %s180 = smul.u32 8, %s11
          %p181 = scmp.lt.s32.totalorder %s180, 15
          %s182 = scalar_select %p181, %s180, 15
          %s183 = smul.addr %s182, 4
          %s184 = smul.addr %s183, 8
          %s185 = scalar_lea.vmem %s1, %s184
          %s186 = smul.u32 8, %s11
        $region32: #{tpu_custom_call.1} parent=23 // pred_fallthru
          _
      $region24: #{tpu_custom_call.1} parent=5 // pred_fallthru
        _
      %p187 = scmp.le.s32.totalorder 1, %s11
      %p188 = scmp.lt.s32.totalorder %s11, 3
      %p189 = pnand %p187, %p188
      %p190 = pneg %p189
      // Predicated region
      $region33: #{tpu_custom_call.1} parent=5 // pred_check
        _
      $region34: #{tpu_custom_call.1} parent=5 // pred_check_branch
        %192 = sbr.rel (%p189) target = $region36
      $region35: #{tpu_custom_call.1} parent=5 // pred_region
        %s193 = ssub.s32 %s11, 1
        // Predicated region
        $region37: #{tpu_custom_call.1} parent=35 // pred_check
          %p194 = pneg %p84
        $region38: #{tpu_custom_call.1} parent=35 // pred_check_branch
          %196 = sbr.rel (%p194) target = $region40
        $region39: #{tpu_custom_call.1} parent=35 // pred_region
          %198 = dma.done [#allocation3], 6912
        $region40: #{tpu_custom_call.1} parent=35 // pred_fallthru
          _
        %s199 = smul.u32 8, %s16
        %p200 = scmp.lt.s32.totalorder %s199, 15
        %s201 = scalar_select %p200, %s199, 15
        %s202 = smul.addr %s201, 4
        %s203 = smul.addr %s202, 8
        %s204 = scalar_lea.vmem %s0, %s203
        %p205 = pneg %p37
        %p206 = pneg %p34
        %s207 = smul.u32 8, %s16
        %p208 = scmp.lt.s32.totalorder %s207, 15
        %s209 = scalar_select %p208, %s207, 15
        %s210 = smul.addr %s209, 4
        %s211 = smul.addr %s210, 8
        %s212 = scalar_lea.vmem %s1, %s211
        %p213 = pneg %p63
        %p214 = pneg %p60
        %p215 = pneg %p84
        %p216 = pneg %p81
        %p217 = pneg %p105
        %p218 = pneg %p102
        %p219 = pneg %p131
        %p220 = pneg %p128
        %s221 = smul.u32 8, %s16
        %p222 = scmp.lt.s32.totalorder %s221, 15
        %s223 = scalar_select %p222, %s221, 15
        %s224 = smul.addr %s223, 4
        %s225 = smul.addr %s224, 8
        %s226 = scalar_lea.vmem %s4, %s225
        %s227 = smul.u32 8, %s16
        %p228 = scmp.lt.s32.totalorder %s227, 15
        %s229 = scalar_select %p228, %s227, 15
        %s230 = smul.addr %s229, 4
        %s231 = smul.addr %s230, 8
        %s232 = scalar_lea.vmem %s0, %s231
        %s233 = smul.u32 8, %s16
        %s234 = smul.u32 8, %s16
        %p235 = scmp.lt.s32.totalorder %s234, 15
        %s236 = scalar_select %p235, %s234, 15
        %s237 = smul.addr %s236, 4
        %s238 = smul.addr %s237, 8
        %s239 = scalar_lea.vmem %s1, %s238
        %s240 = smul.u32 8, %s16
        %s241 = smul.u32 8, %s16
        %p242 = scmp.lt.s32.totalorder %s241, 15
        %s243 = scalar_select %p242, %s241, 15
        %s244 = smul.addr %s243, 4
        %s245 = smul.addr %s244, 8
        %s246 = scalar_lea.vmem %s4, %s245
        %s247 = smul.u32 8, %s16
        %v248 = vld [vmem:[%s232] sm:$0xff]
        %v249 = vld [vmem:[%s232 + $0x8] sm:$0xff]
        %v250 = vld [vmem:[%s232 + $0x10] sm:$0xff]
        %v251 = vld [vmem:[%s232 + $0x18] sm:$0xff]
        %v252 = vld [vmem:[%s232 + $0x20] sm:$0xff]
        %v253 = vld [vmem:[%s232 + $0x28] sm:$0xff]
        %v254 = vld [vmem:[%s232 + $0x30] sm:$0xff]
        %v255 = vld [vmem:[%s232 + $0x38] sm:$0xff]
        %v256 = vld [vmem:[%s232 + $0x40] sm:$0xff]
        %v257 = vld [vmem:[%s232 + $0x48] sm:$0xff]
        %v258 = vld [vmem:[%s232 + $0x50] sm:$0xff]
        %v259 = vld [vmem:[%s232 + $0x58] sm:$0xff]
        %v260 = vld [vmem:[%s232 + $0x60] sm:$0xff]
        %v261 = vld [vmem:[%s232 + $0x68] sm:$0xff]
        %v262 = vld [vmem:[%s232 + $0x70] sm:$0xff]
        %v263 = vld [vmem:[%s232 + $0x78] sm:$0xff]
        %v264 = vld [vmem:[%s232 + $0x80] sm:$0xff]
        %v265 = vld [vmem:[%s232 + $0x88] sm:$0xff]
        %v266 = vld [vmem:[%s232 + $0x90] sm:$0xff]
        %v267 = vld [vmem:[%s232 + $0x98] sm:$0xff]
        %v268 = vld [vmem:[%s232 + $0xa0] sm:$0xff]
        %v269 = vld [vmem:[%s232 + $0xa8] sm:$0xff]
        %v270 = vld [vmem:[%s232 + $0xb0] sm:$0xff]
        %v271 = vld [vmem:[%s232 + $0xb8] sm:$0xff]
        %v272 = vld [vmem:[%s232 + $0xc0] sm:$0xff]
        %v273 = vld [vmem:[%s232 + $0xc8] sm:$0xff]
        %v274 = vld [vmem:[%s232 + $0xd0] sm:$0xff]
        %v275 = vld [vmem:[%s232 + $0xd8] sm:$0xff]
        %v276 = vld [vmem:[%s232 + $0xe0] sm:$0xff]
        %v277 = vld [vmem:[%s232 + $0xe8] sm:$0xff]
        %v278 = vld [vmem:[%s232 + $0xf0] sm:$0xff]
        %v279 = vld [vmem:[%s232 + $0xf8] sm:$0xff]
        %v280 = vld [vmem:[%s239] sm:$0xff]
        %v281 = vld [vmem:[%s239 + $0x8] sm:$0xff]
        %v282 = vld [vmem:[%s239 + $0x10] sm:$0xff]
        %v283 = vld [vmem:[%s239 + $0x18] sm:$0xff]
        %v284 = vld [vmem:[%s239 + $0x20] sm:$0xff]
        %v285 = vld [vmem:[%s239 + $0x28] sm:$0xff]
        %v286 = vld [vmem:[%s239 + $0x30] sm:$0xff]
        %v287 = vld [vmem:[%s239 + $0x38] sm:$0xff]
        %v288 = vld [vmem:[%s239 + $0x40] sm:$0xff]
        %v289 = vld [vmem:[%s239 + $0x48] sm:$0xff]
        %v290 = vld [vmem:[%s239 + $0x50] sm:$0xff]
        %v291 = vld [vmem:[%s239 + $0x58] sm:$0xff]
        %v292 = vld [vmem:[%s239 + $0x60] sm:$0xff]
        %v293 = vld [vmem:[%s239 + $0x68] sm:$0xff]
        %v294 = vld [vmem:[%s239 + $0x70] sm:$0xff]
        %v295 = vld [vmem:[%s239 + $0x78] sm:$0xff]
        %v296 = vld [vmem:[%s239 + $0x80] sm:$0xff]
        %v297 = vld [vmem:[%s239 + $0x88] sm:$0xff]
        %v298 = vld [vmem:[%s239 + $0x90] sm:$0xff]
        %v299 = vld [vmem:[%s239 + $0x98] sm:$0xff]
        %v300 = vld [vmem:[%s239 + $0xa0] sm:$0xff]
        %v301 = vld [vmem:[%s239 + $0xa8] sm:$0xff]
        %v302 = vld [vmem:[%s239 + $0xb0] sm:$0xff]
        %v303 = vld [vmem:[%s239 + $0xb8] sm:$0xff]
        %v304 = vld [vmem:[%s239 + $0xc0] sm:$0xff]
        %v305 = vld [vmem:[%s239 + $0xc8] sm:$0xff]
        %v306 = vld [vmem:[%s239 + $0xd0] sm:$0xff]
        %v307 = vld [vmem:[%s239 + $0xd8] sm:$0xff]
        %v308 = vld [vmem:[%s239 + $0xe0] sm:$0xff]
        %v309 = vld [vmem:[%s239 + $0xe8] sm:$0xff]
        %v310 = vld [vmem:[%s239 + $0xf0] sm:$0xff]
        %v311 = vld [vmem:[%s239 + $0xf8] sm:$0xff]
        %v312 = vld [vmem:[#allocation2] sm:$0xff]
        %v313 = vld [vmem:[#allocation2 + $0x18] sm:$0xff]
        %v314 = vld [vmem:[%s3] ss:$0 sm:$0xff]
        %vm315 = vcmask 130048
        %v317 = vsel %vm315, %v248, 0
        %v320 = vsel %vm315, %v249, 0
        %v323 = vsel %vm315, %v250, 0
        %v326 = vsel %vm315, %v251, 0
        %v329 = vsel %vm315, %v252, 0
        %v332 = vsel %vm315, %v253, 0
        %v335 = vsel %vm315, %v254, 0
        %v338 = vsel %vm315, %v255, 0
        %v341 = vsel %vm315, %v256, 0
        %v344 = vsel %vm315, %v257, 0
        %v347 = vsel %vm315, %v258, 0
        %v350 = vsel %vm315, %v259, 0
        %v353 = vsel %vm315, %v260, 0
        %v356 = vsel %vm315, %v261, 0
        %v359 = vsel %vm315, %v262, 0
        %v362 = vsel %vm315, %v263, 0
        %v365 = vsel %vm315, %v264, 0
        %v368 = vsel %vm315, %v265, 0
        %v371 = vsel %vm315, %v266, 0
        %v374 = vsel %vm315, %v267, 0
        %v377 = vsel %vm315, %v268, 0
        %v380 = vsel %vm315, %v269, 0
        %v383 = vsel %vm315, %v270, 0
        %v386 = vsel %vm315, %v271, 0
        %v389 = vsel %vm315, %v272, 0
        %v392 = vsel %vm315, %v273, 0
        %v395 = vsel %vm315, %v274, 0
        %v398 = vsel %vm315, %v275, 0
        %v401 = vsel %vm315, %v276, 0
        %v404 = vsel %vm315, %v277, 0
        %v407 = vsel %vm315, %v278, 0
        %v410 = vsel %vm315, %v279, 0
        %412 = vmatpush.msra.mxu0 0.0
        %413 = vmatpush.msra.mxu0 0.0
        %414 = vmatpush.msra.mxu0 0.0
        %415 = vmatpush.msra.mxu0 0.0
        %416 = vmatpush.msra.mxu0 0.0
        %417 = vmatpush.msra.mxu0 0.0
        %418 = vmatpush.msra.mxu0 0.0
        %419 = vmatpush.msra.mxu0 0.0
        %420 = vmatpush.msra.mxu0 0.0
        %421 = vmatpush.msra.mxu0 0.0
        %422 = vmatpush.msra.mxu0 0.0
        %423 = vmatpush.msra.mxu0 0.0
        %424 = vmatpush.msra.mxu0 0.0
        %425 = vmatpush.msra.mxu0 0.0
        %426 = vmatpush.msra.mxu0 %v313
        %427 = vmatpush.msra.mxu0 %v312
        %428 = vmatmul.f32.gmra.mxu0 %v317
        %v429 = vpop.f32.mrf.mxu0
        %v430 = vadd.f32 %v314, %v429
        %431 = vmatmul.f32.gmra.mxu0 %v320
        %v432 = vpop.f32.mrf.mxu0
        %v433 = vadd.f32 %v314, %v432
        %434 = vmatmul.f32.gmra.mxu0 %v323
        %v435 = vpop.f32.mrf.mxu0
        %v436 = vadd.f32 %v314, %v435
        %437 = vmatmul.f32.gmra.mxu0 %v326
        %v438 = vpop.f32.mrf.mxu0
        %v439 = vadd.f32 %v314, %v438
        %440 = vmatmul.f32.gmra.mxu0 %v329
        %v441 = vpop.f32.mrf.mxu0
        %v442 = vadd.f32 %v314, %v441
        %443 = vmatmul.f32.gmra.mxu0 %v332
        %v444 = vpop.f32.mrf.mxu0
        %v445 = vadd.f32 %v314, %v444
        %446 = vmatmul.f32.gmra.mxu0 %v335
        %v447 = vpop.f32.mrf.mxu0
        %v448 = vadd.f32 %v314, %v447
        %449 = vmatmul.f32.gmra.mxu0 %v338
        %v450 = vpop.f32.mrf.mxu0
        %v451 = vadd.f32 %v314, %v450
        %452 = vmatmul.f32.gmra.mxu0 %v341
        %v453 = vpop.f32.mrf.mxu0
        %v454 = vadd.f32 %v314, %v453
        %455 = vmatmul.f32.gmra.mxu0 %v344
        %v456 = vpop.f32.mrf.mxu0
        %v457 = vadd.f32 %v314, %v456
        %458 = vmatmul.f32.gmra.mxu0 %v347
        %v459 = vpop.f32.mrf.mxu0
        %v460 = vadd.f32 %v314, %v459
        %461 = vmatmul.f32.gmra.mxu0 %v350
        %v462 = vpop.f32.mrf.mxu0
        %v463 = vadd.f32 %v314, %v462
        %464 = vmatmul.f32.gmra.mxu0 %v353
        %v465 = vpop.f32.mrf.mxu0
        %v466 = vadd.f32 %v314, %v465
        %467 = vmatmul.f32.gmra.mxu0 %v356
        %v468 = vpop.f32.mrf.mxu0
        %v469 = vadd.f32 %v314, %v468
        %470 = vmatmul.f32.gmra.mxu0 %v359
        %v471 = vpop.f32.mrf.mxu0
        %v472 = vadd.f32 %v314, %v471
        %473 = vmatmul.f32.gmra.mxu0 %v362
        %v474 = vpop.f32.mrf.mxu0
        %v475 = vadd.f32 %v314, %v474
        %476 = vmatmul.f32.gmra.mxu0 %v365
        %v477 = vpop.f32.mrf.mxu0
        %v478 = vadd.f32 %v314, %v477
        %479 = vmatmul.f32.gmra.mxu0 %v368
        %v480 = vpop.f32.mrf.mxu0
        %v481 = vadd.f32 %v314, %v480
        %482 = vmatmul.f32.gmra.mxu0 %v371
        %v483 = vpop.f32.mrf.mxu0
        %v484 = vadd.f32 %v314, %v483
        %485 = vmatmul.f32.gmra.mxu0 %v374
        %v486 = vpop.f32.mrf.mxu0
        %v487 = vadd.f32 %v314, %v486
        %488 = vmatmul.f32.gmra.mxu0 %v377
        %v489 = vpop.f32.mrf.mxu0
        %v490 = vadd.f32 %v314, %v489
        %491 = vmatmul.f32.gmra.mxu0 %v380
        %v492 = vpop.f32.mrf.mxu0
        %v493 = vadd.f32 %v314, %v492
        %494 = vmatmul.f32.gmra.mxu0 %v383
        %v495 = vpop.f32.mrf.mxu0
        %v496 = vadd.f32 %v314, %v495
        %497 = vmatmul.f32.gmra.mxu0 %v386
        %v498 = vpop.f32.mrf.mxu0
        %v499 = vadd.f32 %v314, %v498
        %500 = vmatmul.f32.gmra.mxu0 %v389
        %v501 = vpop.f32.mrf.mxu0
        %v502 = vadd.f32 %v314, %v501
        %503 = vmatmul.f32.gmra.mxu0 %v392
        %v504 = vpop.f32.mrf.mxu0
        %v505 = vadd.f32 %v314, %v504
        %506 = vmatmul.f32.gmra.mxu0 %v395
        %v507 = vpop.f32.mrf.mxu0
        %v508 = vadd.f32 %v314, %v507
        %509 = vmatmul.f32.gmra.mxu0 %v398
        %v510 = vpop.f32.mrf.mxu0
        %v511 = vadd.f32 %v314, %v510
        %512 = vmatmul.f32.gmra.mxu0 %v401
        %v513 = vpop.f32.mrf.mxu0
        %v514 = vadd.f32 %v314, %v513
        %515 = vmatmul.f32.gmra.mxu0 %v404
        %v516 = vpop.f32.mrf.mxu0
        %v517 = vadd.f32 %v314, %v516
        %518 = vmatmul.f32.gmra.mxu0 %v407
        %v519 = vpop.f32.mrf.mxu0
        %v520 = vadd.f32 %v314, %v519
        %521 = vmatmul.f32.gmra.mxu0 %v410
        %v522 = vpop.f32.mrf.mxu0
        %v523 = vadd.f32 %v314, %v522
        %524 = vdwg.mxu0
        %v525 = vld [vmem:[#allocation2 + $0x8] sm:$0xff]
        %v526 = vld [vmem:[#allocation2 + $0x20] sm:$0xff]
        %v527 = vld [vmem:[%s3 + $0x8] ss:$0 sm:$0xff]
        %528 = vmatpush.msra.mxu0 0.0
        %529 = vmatpush.msra.mxu0 0.0
        %530 = vmatpush.msra.mxu0 0.0
        %531 = vmatpush.msra.mxu0 0.0
        %532 = vmatpush.msra.mxu0 0.0
        %533 = vmatpush.msra.mxu0 0.0
        %534 = vmatpush.msra.mxu0 0.0
        %535 = vmatpush.msra.mxu0 0.0
        %536 = vmatpush.msra.mxu0 0.0
        %537 = vmatpush.msra.mxu0 0.0
        %538 = vmatpush.msra.mxu0 0.0
        %539 = vmatpush.msra.mxu0 0.0
        %540 = vmatpush.msra.mxu0 0.0
        %541 = vmatpush.msra.mxu0 0.0
        %542 = vmatpush.msra.mxu0 %v526
        %543 = vmatpush.msra.mxu0 %v525
        %544 = vmatmul.f32.gmra.mxu0 %v317
        %v545 = vpop.f32.mrf.mxu0
        %v546 = vadd.f32 %v527, %v545
        %547 = vmatmul.f32.gmra.mxu0 %v320
        %v548 = vpop.f32.mrf.mxu0
        %v549 = vadd.f32 %v527, %v548
        %550 = vmatmul.f32.gmra.mxu0 %v323
        %v551 = vpop.f32.mrf.mxu0
        %v552 = vadd.f32 %v527, %v551
        %553 = vmatmul.f32.gmra.mxu0 %v326
        %v554 = vpop.f32.mrf.mxu0
        %v555 = vadd.f32 %v527, %v554
        %556 = vmatmul.f32.gmra.mxu0 %v329
        %v557 = vpop.f32.mrf.mxu0
        %v558 = vadd.f32 %v527, %v557
        %559 = vmatmul.f32.gmra.mxu0 %v332
        %v560 = vpop.f32.mrf.mxu0
        %v561 = vadd.f32 %v527, %v560
        %562 = vmatmul.f32.gmra.mxu0 %v335
        %v563 = vpop.f32.mrf.mxu0
        %v564 = vadd.f32 %v527, %v563
        %565 = vmatmul.f32.gmra.mxu0 %v338
        %v566 = vpop.f32.mrf.mxu0
        %v567 = vadd.f32 %v527, %v566
        %568 = vmatmul.f32.gmra.mxu0 %v341
        %v569 = vpop.f32.mrf.mxu0
        %v570 = vadd.f32 %v527, %v569
        %571 = vmatmul.f32.gmra.mxu0 %v344
        %v572 = vpop.f32.mrf.mxu0
        %v573 = vadd.f32 %v527, %v572
        %574 = vmatmul.f32.gmra.mxu0 %v347
        %v575 = vpop.f32.mrf.mxu0
        %v576 = vadd.f32 %v527, %v575
        %577 = vmatmul.f32.gmra.mxu0 %v350
        %v578 = vpop.f32.mrf.mxu0
        %v579 = vadd.f32 %v527, %v578
        %580 = vmatmul.f32.gmra.mxu0 %v353
        %v581 = vpop.f32.mrf.mxu0
        %v582 = vadd.f32 %v527, %v581
        %583 = vmatmul.f32.gmra.mxu0 %v356
        %v584 = vpop.f32.mrf.mxu0
        %v585 = vadd.f32 %v527, %v584
        %586 = vmatmul.f32.gmra.mxu0 %v359
        %v587 = vpop.f32.mrf.mxu0
        %v588 = vadd.f32 %v527, %v587
        %589 = vmatmul.f32.gmra.mxu0 %v362
        %v590 = vpop.f32.mrf.mxu0
        %v591 = vadd.f32 %v527, %v590
        %592 = vmatmul.f32.gmra.mxu0 %v365
        %v593 = vpop.f32.mrf.mxu0
        %v594 = vadd.f32 %v527, %v593
        %595 = vmatmul.f32.gmra.mxu0 %v368
        %v596 = vpop.f32.mrf.mxu0
        %v597 = vadd.f32 %v527, %v596
        %598 = vmatmul.f32.gmra.mxu0 %v371
        %v599 = vpop.f32.mrf.mxu0
        %v600 = vadd.f32 %v527, %v599
        %601 = vmatmul.f32.gmra.mxu0 %v374
        %v602 = vpop.f32.mrf.mxu0
        %v603 = vadd.f32 %v527, %v602
        %604 = vmatmul.f32.gmra.mxu0 %v377
        %v605 = vpop.f32.mrf.mxu0
        %v606 = vadd.f32 %v527, %v605
        %607 = vmatmul.f32.gmra.mxu0 %v380
        %v608 = vpop.f32.mrf.mxu0
        %v609 = vadd.f32 %v527, %v608
        %610 = vmatmul.f32.gmra.mxu0 %v383
        %v611 = vpop.f32.mrf.mxu0
        %v612 = vadd.f32 %v527, %v611
        %613 = vmatmul.f32.gmra.mxu0 %v386
        %v614 = vpop.f32.mrf.mxu0
        %v615 = vadd.f32 %v527, %v614
        %616 = vmatmul.f32.gmra.mxu0 %v389
        %v617 = vpop.f32.mrf.mxu0
        %v618 = vadd.f32 %v527, %v617
        %619 = vmatmul.f32.gmra.mxu0 %v392
        %v620 = vpop.f32.mrf.mxu0
        %v621 = vadd.f32 %v527, %v620
        %622 = vmatmul.f32.gmra.mxu0 %v395
        %v623 = vpop.f32.mrf.mxu0
        %v624 = vadd.f32 %v527, %v623
        %625 = vmatmul.f32.gmra.mxu0 %v398
        %v626 = vpop.f32.mrf.mxu0
        %v627 = vadd.f32 %v527, %v626
        %628 = vmatmul.f32.gmra.mxu0 %v401
        %v629 = vpop.f32.mrf.mxu0
        %v630 = vadd.f32 %v527, %v629
        %631 = vmatmul.f32.gmra.mxu0 %v404
        %v632 = vpop.f32.mrf.mxu0
        %v633 = vadd.f32 %v527, %v632
        %634 = vmatmul.f32.gmra.mxu0 %v407
        %v635 = vpop.f32.mrf.mxu0
        %v636 = vadd.f32 %v527, %v635
        %637 = vmatmul.f32.gmra.mxu0 %v410
        %v638 = vpop.f32.mrf.mxu0
        %v639 = vadd.f32 %v527, %v638
        %640 = vdwg.mxu0
        %v641 = vld [vmem:[#allocation2 + $0x10] sm:$0xff]
        %v642 = vld [vmem:[#allocation2 + $0x28] sm:$0xff]
        %v643 = vld [vmem:[%s3 + $0x10] ss:$0 sm:$0xff]
        %644 = vmatpush.msra.mxu0 0.0
        %645 = vmatpush.msra.mxu0 0.0
        %646 = vmatpush.msra.mxu0 0.0
        %647 = vmatpush.msra.mxu0 0.0
        %648 = vmatpush.msra.mxu0 0.0
        %649 = vmatpush.msra.mxu0 0.0
        %650 = vmatpush.msra.mxu0 0.0
        %651 = vmatpush.msra.mxu0 0.0
        %652 = vmatpush.msra.mxu0 0.0
        %653 = vmatpush.msra.mxu0 0.0
        %654 = vmatpush.msra.mxu0 0.0
        %655 = vmatpush.msra.mxu0 0.0
        %656 = vmatpush.msra.mxu0 0.0
        %657 = vmatpush.msra.mxu0 0.0
        %658 = vmatpush.msra.mxu0 %v642
        %659 = vmatpush.msra.mxu0 %v641
        %660 = vmatmul.f32.gmra.mxu0 %v317
        %v661 = vpop.f32.mrf.mxu0
        %v662 = vadd.f32 %v643, %v661
        %663 = vmatmul.f32.gmra.mxu0 %v320
        %v664 = vpop.f32.mrf.mxu0
        %v665 = vadd.f32 %v643, %v664
        %666 = vmatmul.f32.gmra.mxu0 %v323
        %v667 = vpop.f32.mrf.mxu0
        %v668 = vadd.f32 %v643, %v667
        %669 = vmatmul.f32.gmra.mxu0 %v326
        %v670 = vpop.f32.mrf.mxu0
        %v671 = vadd.f32 %v643, %v670
        %672 = vmatmul.f32.gmra.mxu0 %v329
        %v673 = vpop.f32.mrf.mxu0
        %v674 = vadd.f32 %v643, %v673
        %675 = vmatmul.f32.gmra.mxu0 %v332
        %v676 = vpop.f32.mrf.mxu0
        %v677 = vadd.f32 %v643, %v676
        %678 = vmatmul.f32.gmra.mxu0 %v335
        %v679 = vpop.f32.mrf.mxu0
        %v680 = vadd.f32 %v643, %v679
        %681 = vmatmul.f32.gmra.mxu0 %v338
        %v682 = vpop.f32.mrf.mxu0
        %v683 = vadd.f32 %v643, %v682
        %684 = vmatmul.f32.gmra.mxu0 %v341
        %v685 = vpop.f32.mrf.mxu0
        %v686 = vadd.f32 %v643, %v685
        %687 = vmatmul.f32.gmra.mxu0 %v344
        %v688 = vpop.f32.mrf.mxu0
        %v689 = vadd.f32 %v643, %v688
        %690 = vmatmul.f32.gmra.mxu0 %v347
        %v691 = vpop.f32.mrf.mxu0
        %v692 = vadd.f32 %v643, %v691
        %693 = vmatmul.f32.gmra.mxu0 %v350
        %v694 = vpop.f32.mrf.mxu0
        %v695 = vadd.f32 %v643, %v694
        %696 = vmatmul.f32.gmra.mxu0 %v353
        %v697 = vpop.f32.mrf.mxu0
        %v698 = vadd.f32 %v643, %v697
        %699 = vmatmul.f32.gmra.mxu0 %v356
        %v700 = vpop.f32.mrf.mxu0
        %v701 = vadd.f32 %v643, %v700
        %702 = vmatmul.f32.gmra.mxu0 %v359
        %v703 = vpop.f32.mrf.mxu0
        %v704 = vadd.f32 %v643, %v703
        %705 = vmatmul.f32.gmra.mxu0 %v362
        %v706 = vpop.f32.mrf.mxu0
        %v707 = vadd.f32 %v643, %v706
        %708 = vmatmul.f32.gmra.mxu0 %v365
        %v709 = vpop.f32.mrf.mxu0
        %v710 = vadd.f32 %v643, %v709
        %711 = vmatmul.f32.gmra.mxu0 %v368
        %v712 = vpop.f32.mrf.mxu0
        %v713 = vadd.f32 %v643, %v712
        %714 = vmatmul.f32.gmra.mxu0 %v371
        %v715 = vpop.f32.mrf.mxu0
        %v716 = vadd.f32 %v643, %v715
        %717 = vmatmul.f32.gmra.mxu0 %v374
        %v718 = vpop.f32.mrf.mxu0
        %v719 = vadd.f32 %v643, %v718
        %720 = vmatmul.f32.gmra.mxu0 %v377
        %v721 = vpop.f32.mrf.mxu0
        %v722 = vadd.f32 %v643, %v721
        %723 = vmatmul.f32.gmra.mxu0 %v380
        %v724 = vpop.f32.mrf.mxu0
        %v725 = vadd.f32 %v643, %v724
        %726 = vmatmul.f32.gmra.mxu0 %v383
        %v727 = vpop.f32.mrf.mxu0
        %v728 = vadd.f32 %v643, %v727
        %729 = vmatmul.f32.gmra.mxu0 %v386
        %v730 = vpop.f32.mrf.mxu0
        %v731 = vadd.f32 %v643, %v730
        %732 = vmatmul.f32.gmra.mxu0 %v389
        %v733 = vpop.f32.mrf.mxu0
        %v734 = vadd.f32 %v643, %v733
        %735 = vmatmul.f32.gmra.mxu0 %v392
        %v736 = vpop.f32.mrf.mxu0
        %v737 = vadd.f32 %v643, %v736
        %738 = vmatmul.f32.gmra.mxu0 %v395
        %v739 = vpop.f32.mrf.mxu0
        %v740 = vadd.f32 %v643, %v739
        %741 = vmatmul.f32.gmra.mxu0 %v398
        %v742 = vpop.f32.mrf.mxu0
        %v743 = vadd.f32 %v643, %v742
        %744 = vmatmul.f32.gmra.mxu0 %v401
        %v745 = vpop.f32.mrf.mxu0
        %v746 = vadd.f32 %v643, %v745
        %747 = vmatmul.f32.gmra.mxu0 %v404
        %v748 = vpop.f32.mrf.mxu0
        %v749 = vadd.f32 %v643, %v748
        %750 = vmatmul.f32.gmra.mxu0 %v407
        %v751 = vpop.f32.mrf.mxu0
        %v752 = vadd.f32 %v643, %v751
        %753 = vmatmul.f32.gmra.mxu0 %v410
        %v754 = vpop.f32.mrf.mxu0
        %v755 = vadd.f32 %v643, %v754
        %756 = vdwg.mxu0
        %vm757 = vcmask 261120
        %v759 = vsel %vm757, %v430, 0
        %v762 = vsel %vm757, %v433, 0
        %v765 = vsel %vm757, %v436, 0
        %v768 = vsel %vm757, %v439, 0
        %v771 = vsel %vm757, %v546, 0
        %v774 = vsel %vm757, %v549, 0
        %v777 = vsel %vm757, %v552, 0
        %v780 = vsel %vm757, %v555, 0
        %782 = vmatpush.xpose.msra.mxu0 0.0
        %783 = vmatpush.xpose.msra.mxu0 0.0
        %784 = vmatpush.xpose.msra.mxu0 0.0
        %785 = vmatpush.xpose.msra.mxu0 0.0
        %786 = vmatpush.xpose.msra.mxu0 0.0
        %787 = vmatpush.xpose.msra.mxu0 0.0
        %788 = vmatpush.xpose.msra.mxu0 0.0
        %789 = vmatpush.xpose.msra.mxu0 0.0
        %790 = vmatpush.xpose.msra.mxu0 0.0
        %791 = vmatpush.xpose.msra.mxu0 0.0
        %792 = vmatpush.xpose.msra.mxu0 0.0
        %793 = vmatpush.xpose.msra.mxu0 0.0
        %794 = vmatpush.xpose.msra.mxu0 %v780
        %795 = vmatpush.xpose.msra.mxu0 %v777
        %796 = vmatpush.xpose.msra.mxu0 %v774
        %797 = vmatpush.xpose.msra.mxu0 %v771
        %798 = vmatmul.f32.gmra.mxu0 %v759
        %v799 = vpop.f32.mrf.mxu0
        %v800 = vadd.f32 0.0, %v799
        %801 = vmatmul.f32.gmra.mxu0 %v762
        %v802 = vpop.f32.mrf.mxu0
        %v803 = vadd.f32 0.0, %v802
        %804 = vmatmul.f32.gmra.mxu0 %v765
        %v805 = vpop.f32.mrf.mxu0
        %v806 = vadd.f32 0.0, %v805
        %807 = vmatmul.f32.gmra.mxu0 %v768
        %v808 = vpop.f32.mrf.mxu0
        %v809 = vadd.f32 0.0, %v808
        %810 = vdwg.mxu0
        %v812 = vsel %vm757, %v442, 0
        %v815 = vsel %vm757, %v445, 0
        %v818 = vsel %vm757, %v448, 0
        %v821 = vsel %vm757, %v451, 0
        %v824 = vsel %vm757, %v558, 0
        %v827 = vsel %vm757, %v561, 0
        %v830 = vsel %vm757, %v564, 0
        %v833 = vsel %vm757, %v567, 0
        %835 = vmatpush.xpose.msra.mxu0 0.0
        %836 = vmatpush.xpose.msra.mxu0 0.0
        %837 = vmatpush.xpose.msra.mxu0 0.0
        %838 = vmatpush.xpose.msra.mxu0 0.0
        %839 = vmatpush.xpose.msra.mxu0 0.0
        %840 = vmatpush.xpose.msra.mxu0 0.0
        %841 = vmatpush.xpose.msra.mxu0 0.0
        %842 = vmatpush.xpose.msra.mxu0 0.0
        %843 = vmatpush.xpose.msra.mxu0 0.0
        %844 = vmatpush.xpose.msra.mxu0 0.0
        %845 = vmatpush.xpose.msra.mxu0 0.0
        %846 = vmatpush.xpose.msra.mxu0 0.0
        %847 = vmatpush.xpose.msra.mxu0 %v833
        %848 = vmatpush.xpose.msra.mxu0 %v830
        %849 = vmatpush.xpose.msra.mxu0 %v827
        %850 = vmatpush.xpose.msra.mxu0 %v824
        %851 = vmatmul.f32.gmra.mxu0 %v812
        %v852 = vpop.f32.mrf.mxu0
        %v853 = vadd.f32 0.0, %v852
        %854 = vmatmul.f32.gmra.mxu0 %v815
        %v855 = vpop.f32.mrf.mxu0
        %v856 = vadd.f32 0.0, %v855
        %857 = vmatmul.f32.gmra.mxu0 %v818
        %v858 = vpop.f32.mrf.mxu0
        %v859 = vadd.f32 0.0, %v858
        %860 = vmatmul.f32.gmra.mxu0 %v821
        %v861 = vpop.f32.mrf.mxu0
        %v862 = vadd.f32 0.0, %v861
        %863 = vdwg.mxu0
        %v865 = vsel %vm757, %v454, 0
        %v868 = vsel %vm757, %v457, 0
        %v871 = vsel %vm757, %v460, 0
        %v874 = vsel %vm757, %v463, 0
        %v877 = vsel %vm757, %v570, 0
        %v880 = vsel %vm757, %v573, 0
        %v883 = vsel %vm757, %v576, 0
        %v886 = vsel %vm757, %v579, 0
        %888 = vmatpush.xpose.msra.mxu0 0.0
        %889 = vmatpush.xpose.msra.mxu0 0.0
        %890 = vmatpush.xpose.msra.mxu0 0.0
        %891 = vmatpush.xpose.msra.mxu0 0.0
        %892 = vmatpush.xpose.msra.mxu0 0.0
        %893 = vmatpush.xpose.msra.mxu0 0.0
        %894 = vmatpush.xpose.msra.mxu0 0.0
        %895 = vmatpush.xpose.msra.mxu0 0.0
        %896 = vmatpush.xpose.msra.mxu0 0.0
        %897 = vmatpush.xpose.msra.mxu0 0.0
        %898 = vmatpush.xpose.msra.mxu0 0.0
        %899 = vmatpush.xpose.msra.mxu0 0.0
        %900 = vmatpush.xpose.msra.mxu0 %v886
        %901 = vmatpush.xpose.msra.mxu0 %v883
        %902 = vmatpush.xpose.msra.mxu0 %v880
        %903 = vmatpush.xpose.msra.mxu0 %v877
        %904 = vmatmul.f32.gmra.mxu0 %v865
        %v905 = vpop.f32.mrf.mxu0
        %v906 = vadd.f32 0.0, %v905
        %907 = vmatmul.f32.gmra.mxu0 %v868
        %v908 = vpop.f32.mrf.mxu0
        %v909 = vadd.f32 0.0, %v908
        %910 = vmatmul.f32.gmra.mxu0 %v871
        %v911 = vpop.f32.mrf.mxu0
        %v912 = vadd.f32 0.0, %v911
        %913 = vmatmul.f32.gmra.mxu0 %v874
        %v914 = vpop.f32.mrf.mxu0
        %v915 = vadd.f32 0.0, %v914
        %916 = vdwg.mxu0
        %v918 = vsel %vm757, %v466, 0
        %v921 = vsel %vm757, %v469, 0
        %v924 = vsel %vm757, %v472, 0
        %v927 = vsel %vm757, %v475, 0
        %v930 = vsel %vm757, %v582, 0
        %v933 = vsel %vm757, %v585, 0
        %v936 = vsel %vm757, %v588, 0
        %v939 = vsel %vm757, %v591, 0
        %941 = vmatpush.xpose.msra.mxu0 0.0
        %942 = vmatpush.xpose.msra.mxu0 0.0
        %943 = vmatpush.xpose.msra.mxu0 0.0
        %944 = vmatpush.xpose.msra.mxu0 0.0
        %945 = vmatpush.xpose.msra.mxu0 0.0
        %946 = vmatpush.xpose.msra.mxu0 0.0
        %947 = vmatpush.xpose.msra.mxu0 0.0
        %948 = vmatpush.xpose.msra.mxu0 0.0
        %949 = vmatpush.xpose.msra.mxu0 0.0
        %950 = vmatpush.xpose.msra.mxu0 0.0
        %951 = vmatpush.xpose.msra.mxu0 0.0
        %952 = vmatpush.xpose.msra.mxu0 0.0
        %953 = vmatpush.xpose.msra.mxu0 %v939
        %954 = vmatpush.xpose.msra.mxu0 %v936
        %955 = vmatpush.xpose.msra.mxu0 %v933
        %956 = vmatpush.xpose.msra.mxu0 %v930
        %957 = vmatmul.f32.gmra.mxu0 %v918
        %v958 = vpop.f32.mrf.mxu0
        %v959 = vadd.f32 0.0, %v958
        %960 = vmatmul.f32.gmra.mxu0 %v921
        %v961 = vpop.f32.mrf.mxu0
        %v962 = vadd.f32 0.0, %v961
        %963 = vmatmul.f32.gmra.mxu0 %v924
        %v964 = vpop.f32.mrf.mxu0
        %v965 = vadd.f32 0.0, %v964
        %966 = vmatmul.f32.gmra.mxu0 %v927
        %v967 = vpop.f32.mrf.mxu0
        %v968 = vadd.f32 0.0, %v967
        %969 = vdwg.mxu0
        %v971 = vsel %vm757, %v478, 0
        %v974 = vsel %vm757, %v481, 0
        %v977 = vsel %vm757, %v484, 0
        %v980 = vsel %vm757, %v487, 0
        %v983 = vsel %vm757, %v594, 0
        %v986 = vsel %vm757, %v597, 0
        %v989 = vsel %vm757, %v600, 0
        %v992 = vsel %vm757, %v603, 0
        %994 = vmatpush.xpose.msra.mxu0 0.0
        %995 = vmatpush.xpose.msra.mxu0 0.0
        %996 = vmatpush.xpose.msra.mxu0 0.0
        %997 = vmatpush.xpose.msra.mxu0 0.0
        %998 = vmatpush.xpose.msra.mxu0 0.0
        %999 = vmatpush.xpose.msra.mxu0 0.0
        %1000 = vmatpush.xpose.msra.mxu0 0.0
        %1001 = vmatpush.xpose.msra.mxu0 0.0
        %1002 = vmatpush.xpose.msra.mxu0 0.0
        %1003 = vmatpush.xpose.msra.mxu0 0.0
        %1004 = vmatpush.xpose.msra.mxu0 0.0
        %1005 = vmatpush.xpose.msra.mxu0 0.0
        %1006 = vmatpush.xpose.msra.mxu0 %v992
        %1007 = vmatpush.xpose.msra.mxu0 %v989
        %1008 = vmatpush.xpose.msra.mxu0 %v986
        %1009 = vmatpush.xpose.msra.mxu0 %v983
        %1010 = vmatmul.f32.gmra.mxu0 %v971
        %v1011 = vpop.f32.mrf.mxu0
        %v1012 = vadd.f32 0.0, %v1011
        %1013 = vmatmul.f32.gmra.mxu0 %v974
        %v1014 = vpop.f32.mrf.mxu0
        %v1015 = vadd.f32 0.0, %v1014
        %1016 = vmatmul.f32.gmra.mxu0 %v977
        %v1017 = vpop.f32.mrf.mxu0
        %v1018 = vadd.f32 0.0, %v1017
        %1019 = vmatmul.f32.gmra.mxu0 %v980
        %v1020 = vpop.f32.mrf.mxu0
        %v1021 = vadd.f32 0.0, %v1020
        %1022 = vdwg.mxu0
        %v1024 = vsel %vm757, %v490, 0
        %v1027 = vsel %vm757, %v493, 0
        %v1030 = vsel %vm757, %v496, 0
        %v1033 = vsel %vm757, %v499, 0
        %v1036 = vsel %vm757, %v606, 0
        %v1039 = vsel %vm757, %v609, 0
        %v1042 = vsel %vm757, %v612, 0
        %v1045 = vsel %vm757, %v615, 0
        %1047 = vmatpush.xpose.msra.mxu0 0.0
        %1048 = vmatpush.xpose.msra.mxu0 0.0
        %1049 = vmatpush.xpose.msra.mxu0 0.0
        %1050 = vmatpush.xpose.msra.mxu0 0.0
        %1051 = vmatpush.xpose.msra.mxu0 0.0
        %1052 = vmatpush.xpose.msra.mxu0 0.0
        %1053 = vmatpush.xpose.msra.mxu0 0.0
        %1054 = vmatpush.xpose.msra.mxu0 0.0
        %1055 = vmatpush.xpose.msra.mxu0 0.0
        %1056 = vmatpush.xpose.msra.mxu0 0.0
        %1057 = vmatpush.xpose.msra.mxu0 0.0
        %1058 = vmatpush.xpose.msra.mxu0 0.0
        %1059 = vmatpush.xpose.msra.mxu0 %v1045
        %1060 = vmatpush.xpose.msra.mxu0 %v1042
        %1061 = vmatpush.xpose.msra.mxu0 %v1039
        %1062 = vmatpush.xpose.msra.mxu0 %v1036
        %1063 = vmatmul.f32.gmra.mxu0 %v1024
        %v1064 = vpop.f32.mrf.mxu0
        %v1065 = vadd.f32 0.0, %v1064
        %1066 = vmatmul.f32.gmra.mxu0 %v1027
        %v1067 = vpop.f32.mrf.mxu0
        %v1068 = vadd.f32 0.0, %v1067
        %1069 = vmatmul.f32.gmra.mxu0 %v1030
        %v1070 = vpop.f32.mrf.mxu0
        %v1071 = vadd.f32 0.0, %v1070
        %1072 = vmatmul.f32.gmra.mxu0 %v1033
        %v1073 = vpop.f32.mrf.mxu0
        %v1074 = vadd.f32 0.0, %v1073
        %1075 = vdwg.mxu0
        %v1077 = vsel %vm757, %v502, 0
        %v1080 = vsel %vm757, %v505, 0
        %v1083 = vsel %vm757, %v508, 0
        %v1086 = vsel %vm757, %v511, 0
        %v1089 = vsel %vm757, %v618, 0
        %v1092 = vsel %vm757, %v621, 0
        %v1095 = vsel %vm757, %v624, 0
        %v1098 = vsel %vm757, %v627, 0
        %1100 = vmatpush.xpose.msra.mxu0 0.0
        %1101 = vmatpush.xpose.msra.mxu0 0.0
        %1102 = vmatpush.xpose.msra.mxu0 0.0
        %1103 = vmatpush.xpose.msra.mxu0 0.0
        %1104 = vmatpush.xpose.msra.mxu0 0.0
        %1105 = vmatpush.xpose.msra.mxu0 0.0
        %1106 = vmatpush.xpose.msra.mxu0 0.0
        %1107 = vmatpush.xpose.msra.mxu0 0.0
        %1108 = vmatpush.xpose.msra.mxu0 0.0
        %1109 = vmatpush.xpose.msra.mxu0 0.0
        %1110 = vmatpush.xpose.msra.mxu0 0.0
        %1111 = vmatpush.xpose.msra.mxu0 0.0
        %1112 = vmatpush.xpose.msra.mxu0 %v1098
        %1113 = vmatpush.xpose.msra.mxu0 %v1095
        %1114 = vmatpush.xpose.msra.mxu0 %v1092
        %1115 = vmatpush.xpose.msra.mxu0 %v1089
        %1116 = vmatmul.f32.gmra.mxu0 %v1077
        %v1117 = vpop.f32.mrf.mxu0
        %v1118 = vadd.f32 0.0, %v1117
        %1119 = vmatmul.f32.gmra.mxu0 %v1080
        %v1120 = vpop.f32.mrf.mxu0
        %v1121 = vadd.f32 0.0, %v1120
        %1122 = vmatmul.f32.gmra.mxu0 %v1083
        %v1123 = vpop.f32.mrf.mxu0
        %v1124 = vadd.f32 0.0, %v1123
        %1125 = vmatmul.f32.gmra.mxu0 %v1086
        %v1126 = vpop.f32.mrf.mxu0
        %v1127 = vadd.f32 0.0, %v1126
        %1128 = vdwg.mxu0
        %v1130 = vsel %vm757, %v514, 0
        %v1133 = vsel %vm757, %v517, 0
        %v1136 = vsel %vm757, %v520, 0
        %v1139 = vsel %vm757, %v523, 0
        %v1142 = vsel %vm757, %v630, 0
        %v1145 = vsel %vm757, %v633, 0
        %v1148 = vsel %vm757, %v636, 0
        %v1151 = vsel %vm757, %v639, 0
        %1153 = vmatpush.xpose.msra.mxu0 0.0
        %1154 = vmatpush.xpose.msra.mxu0 0.0
        %1155 = vmatpush.xpose.msra.mxu0 0.0
        %1156 = vmatpush.xpose.msra.mxu0 0.0
        %1157 = vmatpush.xpose.msra.mxu0 0.0
        %1158 = vmatpush.xpose.msra.mxu0 0.0
        %1159 = vmatpush.xpose.msra.mxu0 0.0
        %1160 = vmatpush.xpose.msra.mxu0 0.0
        %1161 = vmatpush.xpose.msra.mxu0 0.0
        %1162 = vmatpush.xpose.msra.mxu0 0.0
        %1163 = vmatpush.xpose.msra.mxu0 0.0
        %1164 = vmatpush.xpose.msra.mxu0 0.0
        %1165 = vmatpush.xpose.msra.mxu0 %v1151
        %1166 = vmatpush.xpose.msra.mxu0 %v1148
        %1167 = vmatpush.xpose.msra.mxu0 %v1145
        %1168 = vmatpush.xpose.msra.mxu0 %v1142
        %1169 = vmatmul.f32.gmra.mxu0 %v1130
        %v1170 = vpop.f32.mrf.mxu0
        %v1171 = vadd.f32 0.0, %v1170
        %1172 = vmatmul.f32.gmra.mxu0 %v1133
        %v1173 = vpop.f32.mrf.mxu0
        %v1174 = vadd.f32 0.0, %v1173
        %1175 = vmatmul.f32.gmra.mxu0 %v1136
        %v1176 = vpop.f32.mrf.mxu0
        %v1177 = vadd.f32 0.0, %v1176
        %1178 = vmatmul.f32.gmra.mxu0 %v1139
        %v1179 = vpop.f32.mrf.mxu0
        %v1180 = vadd.f32 0.0, %v1179
        %1181 = vdwg.mxu0
        %v1182 = vsel %vm757, %v800, -inf
        %1183 = vmax.xlane.f32.xlu0 %v1182
        %v1184 = vpop.xlane.xlu0 %1183
        %v1185 = vsel %vm757, %v803, -inf
        %1186 = vmax.xlane.f32.xlu0 %v1185
        %v1187 = vpop.xlane.xlu0 %1186
        %v1188 = vsel %vm757, %v806, -inf
        %1189 = vmax.xlane.f32.xlu0 %v1188
        %v1190 = vpop.xlane.xlu0 %1189
        %v1191 = vsel %vm757, %v809, -inf
        %1192 = vmax.xlane.f32.xlu0 %v1191
        %v1193 = vpop.xlane.xlu0 %1192
        %v1194 = vsel %vm757, %v853, -inf
        %1195 = vmax.xlane.f32.xlu0 %v1194
        %v1196 = vpop.xlane.xlu0 %1195
        %v1197 = vsel %vm757, %v856, -inf
        %1198 = vmax.xlane.f32.xlu0 %v1197
        %v1199 = vpop.xlane.xlu0 %1198
        %v1200 = vsel %vm757, %v859, -inf
        %1201 = vmax.xlane.f32.xlu0 %v1200
        %v1202 = vpop.xlane.xlu0 %1201
        %v1203 = vsel %vm757, %v862, -inf
        %1204 = vmax.xlane.f32.xlu0 %v1203
        %v1205 = vpop.xlane.xlu0 %1204
        %v1206 = vsel %vm757, %v906, -inf
        %1207 = vmax.xlane.f32.xlu0 %v1206
        %v1208 = vpop.xlane.xlu0 %1207
        %v1209 = vsel %vm757, %v909, -inf
        %1210 = vmax.xlane.f32.xlu0 %v1209
        %v1211 = vpop.xlane.xlu0 %1210
        %v1212 = vsel %vm757, %v912, -inf
        %1213 = vmax.xlane.f32.xlu0 %v1212
        %v1214 = vpop.xlane.xlu0 %1213
        %v1215 = vsel %vm757, %v915, -inf
        %1216 = vmax.xlane.f32.xlu0 %v1215
        %v1217 = vpop.xlane.xlu0 %1216
        %v1218 = vsel %vm757, %v959, -inf
        %1219 = vmax.xlane.f32.xlu0 %v1218
        %v1220 = vpop.xlane.xlu0 %1219
        %v1221 = vsel %vm757, %v962, -inf
        %1222 = vmax.xlane.f32.xlu0 %v1221
        %v1223 = vpop.xlane.xlu0 %1222
        %v1224 = vsel %vm757, %v965, -inf
        %1225 = vmax.xlane.f32.xlu0 %v1224
        %v1226 = vpop.xlane.xlu0 %1225
        %v1227 = vsel %vm757, %v968, -inf
        %1228 = vmax.xlane.f32.xlu0 %v1227
        %v1229 = vpop.xlane.xlu0 %1228
        %v1230 = vsel %vm757, %v1012, -inf
        %1231 = vmax.xlane.f32.xlu0 %v1230
        %v1232 = vpop.xlane.xlu0 %1231
        %v1233 = vsel %vm757, %v1015, -inf
        %1234 = vmax.xlane.f32.xlu0 %v1233
        %v1235 = vpop.xlane.xlu0 %1234
        %v1236 = vsel %vm757, %v1018, -inf
        %1237 = vmax.xlane.f32.xlu0 %v1236
        %v1238 = vpop.xlane.xlu0 %1237
        %v1239 = vsel %vm757, %v1021, -inf
        %1240 = vmax.xlane.f32.xlu0 %v1239
        %v1241 = vpop.xlane.xlu0 %1240
        %v1242 = vsel %vm757, %v1065, -inf
        %1243 = vmax.xlane.f32.xlu0 %v1242
        %v1244 = vpop.xlane.xlu0 %1243
        %v1245 = vsel %vm757, %v1068, -inf
        %1246 = vmax.xlane.f32.xlu0 %v1245
        %v1247 = vpop.xlane.xlu0 %1246
        %v1248 = vsel %vm757, %v1071, -inf
        %1249 = vmax.xlane.f32.xlu0 %v1248
        %v1250 = vpop.xlane.xlu0 %1249
        %v1251 = vsel %vm757, %v1074, -inf
        %1252 = vmax.xlane.f32.xlu0 %v1251
        %v1253 = vpop.xlane.xlu0 %1252
        %v1254 = vsel %vm757, %v1118, -inf
        %1255 = vmax.xlane.f32.xlu0 %v1254
        %v1256 = vpop.xlane.xlu0 %1255
        %v1257 = vsel %vm757, %v1121, -inf
        %1258 = vmax.xlane.f32.xlu0 %v1257
        %v1259 = vpop.xlane.xlu0 %1258
        %v1260 = vsel %vm757, %v1124, -inf
        %1261 = vmax.xlane.f32.xlu0 %v1260
        %v1262 = vpop.xlane.xlu0 %1261
        %v1263 = vsel %vm757, %v1127, -inf
        %1264 = vmax.xlane.f32.xlu0 %v1263
        %v1265 = vpop.xlane.xlu0 %1264
        %v1266 = vsel %vm757, %v1171, -inf
        %1267 = vmax.xlane.f32.xlu0 %v1266
        %v1268 = vpop.xlane.xlu0 %1267
        %v1269 = vsel %vm757, %v1174, -inf
        %1270 = vmax.xlane.f32.xlu0 %v1269
        %v1271 = vpop.xlane.xlu0 %1270
        %v1272 = vsel %vm757, %v1177, -inf
        %1273 = vmax.xlane.f32.xlu0 %v1272
        %v1274 = vpop.xlane.xlu0 %1273
        %v1275 = vsel %vm757, %v1180, -inf
        %1276 = vmax.xlane.f32.xlu0 %v1275
        %v1277 = vpop.xlane.xlu0 %1276
        %v1278 = vsub.f32 %v800, %v1184
        %v1279 = vsub.f32 %v803, %v1187
        %v1280 = vsub.f32 %v806, %v1190
        %v1281 = vsub.f32 %v809, %v1193
        %v1282 = vsub.f32 %v853, %v1196
        %v1283 = vsub.f32 %v856, %v1199
        %v1284 = vsub.f32 %v859, %v1202
        %v1285 = vsub.f32 %v862, %v1205
        %v1286 = vsub.f32 %v906, %v1208
        %v1287 = vsub.f32 %v909, %v1211
        %v1288 = vsub.f32 %v912, %v1214
        %v1289 = vsub.f32 %v915, %v1217
        %v1290 = vsub.f32 %v959, %v1220
        %v1291 = vsub.f32 %v962, %v1223
        %v1292 = vsub.f32 %v965, %v1226
        %v1293 = vsub.f32 %v968, %v1229
        %v1294 = vsub.f32 %v1012, %v1232
        %v1295 = vsub.f32 %v1015, %v1235
        %v1296 = vsub.f32 %v1018, %v1238
        %v1297 = vsub.f32 %v1021, %v1241
        %v1298 = vsub.f32 %v1065, %v1244
        %v1299 = vsub.f32 %v1068, %v1247
        %v1300 = vsub.f32 %v1071, %v1250
        %v1301 = vsub.f32 %v1074, %v1253
        %v1302 = vsub.f32 %v1118, %v1256
        %v1303 = vsub.f32 %v1121, %v1259
        %v1304 = vsub.f32 %v1124, %v1262
        %v1305 = vsub.f32 %v1127, %v1265
        %v1306 = vsub.f32 %v1171, %v1268
        %v1307 = vsub.f32 %v1174, %v1271
        %v1308 = vsub.f32 %v1177, %v1274
        %v1309 = vsub.f32 %v1180, %v1277
        %v1310 = vmul.f32 %v1278, 1.442695
        %v1311 = vpow.pop %v1310
        %v1312 = vmul.f32 %v1279, 1.442695
        %v1313 = vpow.pop %v1312
        %v1314 = vmul.f32 %v1280, 1.442695
        %v1315 = vpow.pop %v1314
        %v1316 = vmul.f32 %v1281, 1.442695
        %v1317 = vpow.pop %v1316
        %v1318 = vmul.f32 %v1282, 1.442695
        %v1319 = vpow.pop %v1318
        %v1320 = vmul.f32 %v1283, 1.442695
        %v1321 = vpow.pop %v1320
        %v1322 = vmul.f32 %v1284, 1.442695
        %v1323 = vpow.pop %v1322
        %v1324 = vmul.f32 %v1285, 1.442695
        %v1325 = vpow.pop %v1324
        %v1326 = vmul.f32 %v1286, 1.442695
        %v1327 = vpow.pop %v1326
        %v1328 = vmul.f32 %v1287, 1.442695
        %v1329 = vpow.pop %v1328
        %v1330 = vmul.f32 %v1288, 1.442695
        %v1331 = vpow.pop %v1330
        %v1332 = vmul.f32 %v1289, 1.442695
        %v1333 = vpow.pop %v1332
        %v1334 = vmul.f32 %v1290, 1.442695
        %v1335 = vpow.pop %v1334
        %v1336 = vmul.f32 %v1291, 1.442695
        %v1337 = vpow.pop %v1336
        %v1338 = vmul.f32 %v1292, 1.442695
        %v1339 = vpow.pop %v1338
        %v1340 = vmul.f32 %v1293, 1.442695
        %v1341 = vpow.pop %v1340
        %v1342 = vmul.f32 %v1294, 1.442695
        %v1343 = vpow.pop %v1342
        %v1344 = vmul.f32 %v1295, 1.442695
        %v1345 = vpow.pop %v1344
        %v1346 = vmul.f32 %v1296, 1.442695
        %v1347 = vpow.pop %v1346
        %v1348 = vmul.f32 %v1297, 1.442695
        %v1349 = vpow.pop %v1348
        %v1350 = vmul.f32 %v1298, 1.442695
        %v1351 = vpow.pop %v1350
        %v1352 = vmul.f32 %v1299, 1.442695
        %v1353 = vpow.pop %v1352
        %v1354 = vmul.f32 %v1300, 1.442695
        %v1355 = vpow.pop %v1354
        %v1356 = vmul.f32 %v1301, 1.442695
        %v1357 = vpow.pop %v1356
        %v1358 = vmul.f32 %v1302, 1.442695
        %v1359 = vpow.pop %v1358
        %v1360 = vmul.f32 %v1303, 1.442695
        %v1361 = vpow.pop %v1360
        %v1362 = vmul.f32 %v1304, 1.442695
        %v1363 = vpow.pop %v1362
        %v1364 = vmul.f32 %v1305, 1.442695
        %v1365 = vpow.pop %v1364
        %v1366 = vmul.f32 %v1306, 1.442695
        %v1367 = vpow.pop %v1366
        %v1368 = vmul.f32 %v1307, 1.442695
        %v1369 = vpow.pop %v1368
        %v1370 = vmul.f32 %v1308, 1.442695
        %v1371 = vpow.pop %v1370
        %v1372 = vmul.f32 %v1309, 1.442695
        %v1373 = vpow.pop %v1372
        %v1374 = vsel %vm757, %v1311, 0.0
        %1375 = vadd.xlane.f32.xlu0 %v1374
        %v1376 = vpop.xlane.xlu0 %1375
        %v1377 = vsel %vm757, %v1313, 0.0
        %1378 = vadd.xlane.f32.xlu0 %v1377
        %v1379 = vpop.xlane.xlu0 %1378
        %v1380 = vsel %vm757, %v1315, 0.0
        %1381 = vadd.xlane.f32.xlu0 %v1380
        %v1382 = vpop.xlane.xlu0 %1381
        %v1383 = vsel %vm757, %v1317, 0.0
        %1384 = vadd.xlane.f32.xlu0 %v1383
        %v1385 = vpop.xlane.xlu0 %1384
        %v1386 = vsel %vm757, %v1319, 0.0
        %1387 = vadd.xlane.f32.xlu0 %v1386
        %v1388 = vpop.xlane.xlu0 %1387
        %v1389 = vsel %vm757, %v1321, 0.0
        %1390 = vadd.xlane.f32.xlu0 %v1389
        %v1391 = vpop.xlane.xlu0 %1390
        %v1392 = vsel %vm757, %v1323, 0.0
        %1393 = vadd.xlane.f32.xlu0 %v1392
        %v1394 = vpop.xlane.xlu0 %1393
        %v1395 = vsel %vm757, %v1325, 0.0
        %1396 = vadd.xlane.f32.xlu0 %v1395
        %v1397 = vpop.xlane.xlu0 %1396
        %v1398 = vsel %vm757, %v1327, 0.0
        %1399 = vadd.xlane.f32.xlu0 %v1398
        %v1400 = vpop.xlane.xlu0 %1399
        %v1401 = vsel %vm757, %v1329, 0.0
        %1402 = vadd.xlane.f32.xlu0 %v1401
        %v1403 = vpop.xlane.xlu0 %1402
        %v1404 = vsel %vm757, %v1331, 0.0
        %1405 = vadd.xlane.f32.xlu0 %v1404
        %v1406 = vpop.xlane.xlu0 %1405
        %v1407 = vsel %vm757, %v1333, 0.0
        %1408 = vadd.xlane.f32.xlu0 %v1407
        %v1409 = vpop.xlane.xlu0 %1408
        %v1410 = vsel %vm757, %v1335, 0.0
        %1411 = vadd.xlane.f32.xlu0 %v1410
        %v1412 = vpop.xlane.xlu0 %1411
        %v1413 = vsel %vm757, %v1337, 0.0
        %1414 = vadd.xlane.f32.xlu0 %v1413
        %v1415 = vpop.xlane.xlu0 %1414
        %v1416 = vsel %vm757, %v1339, 0.0
        %1417 = vadd.xlane.f32.xlu0 %v1416
        %v1418 = vpop.xlane.xlu0 %1417
        %v1419 = vsel %vm757, %v1341, 0.0
        %1420 = vadd.xlane.f32.xlu0 %v1419
        %v1421 = vpop.xlane.xlu0 %1420
        %v1422 = vsel %vm757, %v1343, 0.0
        %1423 = vadd.xlane.f32.xlu0 %v1422
        %v1424 = vpop.xlane.xlu0 %1423
        %v1425 = vsel %vm757, %v1345, 0.0
        %1426 = vadd.xlane.f32.xlu0 %v1425
        %v1427 = vpop.xlane.xlu0 %1426
        %v1428 = vsel %vm757, %v1347, 0.0
        %1429 = vadd.xlane.f32.xlu0 %v1428
        %v1430 = vpop.xlane.xlu0 %1429
        %v1431 = vsel %vm757, %v1349, 0.0
        %1432 = vadd.xlane.f32.xlu0 %v1431
        %v1433 = vpop.xlane.xlu0 %1432
        %v1434 = vsel %vm757, %v1351, 0.0
        %1435 = vadd.xlane.f32.xlu0 %v1434
        %v1436 = vpop.xlane.xlu0 %1435
        %v1437 = vsel %vm757, %v1353, 0.0
        %1438 = vadd.xlane.f32.xlu0 %v1437
        %v1439 = vpop.xlane.xlu0 %1438
        %v1440 = vsel %vm757, %v1355, 0.0
        %1441 = vadd.xlane.f32.xlu0 %v1440
        %v1442 = vpop.xlane.xlu0 %1441
        %v1443 = vsel %vm757, %v1357, 0.0
        %1444 = vadd.xlane.f32.xlu0 %v1443
        %v1445 = vpop.xlane.xlu0 %1444
        %v1446 = vsel %vm757, %v1359, 0.0
        %1447 = vadd.xlane.f32.xlu0 %v1446
        %v1448 = vpop.xlane.xlu0 %1447
        %v1449 = vsel %vm757, %v1361, 0.0
        %1450 = vadd.xlane.f32.xlu0 %v1449
        %v1451 = vpop.xlane.xlu0 %1450
        %v1452 = vsel %vm757, %v1363, 0.0
        %1453 = vadd.xlane.f32.xlu0 %v1452
        %v1454 = vpop.xlane.xlu0 %1453
        %v1455 = vsel %vm757, %v1365, 0.0
        %1456 = vadd.xlane.f32.xlu0 %v1455
        %v1457 = vpop.xlane.xlu0 %1456
        %v1458 = vsel %vm757, %v1367, 0.0
        %1459 = vadd.xlane.f32.xlu0 %v1458
        %v1460 = vpop.xlane.xlu0 %1459
        %v1461 = vsel %vm757, %v1369, 0.0
        %1462 = vadd.xlane.f32.xlu0 %v1461
        %v1463 = vpop.xlane.xlu0 %1462
        %v1464 = vsel %vm757, %v1371, 0.0
        %1465 = vadd.xlane.f32.xlu0 %v1464
        %v1466 = vpop.xlane.xlu0 %1465
        %v1467 = vsel %vm757, %v1373, 0.0
        %1468 = vadd.xlane.f32.xlu0 %v1467
        %v1469 = vpop.xlane.xlu0 %1468
        %v1470 = vrcp.pop %v1376
        %v1471 = vmul.f32 %v1376, %v1470
        %v1472 = vsub.f32 1.0, %v1471
        %v1473 = vmul.f32 %v1470, %v1472
        %v1474 = vadd.f32 %v1470, %v1473
        %vm1475 = vweird.f32 %v1376
        %vm1476 = vweird.f32 %v1470
        %vm1477 = vmor %vm1475, %vm1476
        %v1478 = vsel %vm1477, %v1470, %v1474
        %v1479 = vand.u32 2147483647, %v1376
        %vm1480 = vcmp.eq.f32.partialorder %v1479, 8.507059e+37
        %v1481 = vand.u32 %v1376, 2147483648
        %v1482 = vor.u32 1.1754944e-38, %v1481
        %v1483 = vsel %vm1480, %v1482, %v1478
        %v1484 = vrcp.pop %v1379
        %v1485 = vmul.f32 %v1379, %v1484
        %v1486 = vsub.f32 1.0, %v1485
        %v1487 = vmul.f32 %v1484, %v1486
        %v1488 = vadd.f32 %v1484, %v1487
        %vm1489 = vweird.f32 %v1379
        %vm1490 = vweird.f32 %v1484
        %vm1491 = vmor %vm1489, %vm1490
        %v1492 = vsel %vm1491, %v1484, %v1488
        %v1493 = vand.u32 2147483647, %v1379
        %vm1494 = vcmp.eq.f32.partialorder %v1493, 8.507059e+37
        %v1495 = vand.u32 %v1379, 2147483648
        %v1496 = vor.u32 1.1754944e-38, %v1495
        %v1497 = vsel %vm1494, %v1496, %v1492
        %v1498 = vrcp.pop %v1382
        %v1499 = vmul.f32 %v1382, %v1498
        %v1500 = vsub.f32 1.0, %v1499
        %v1501 = vmul.f32 %v1498, %v1500
        %v1502 = vadd.f32 %v1498, %v1501
        %vm1503 = vweird.f32 %v1382
        %vm1504 = vweird.f32 %v1498
        %vm1505 = vmor %vm1503, %vm1504
        %v1506 = vsel %vm1505, %v1498, %v1502
        %v1507 = vand.u32 2147483647, %v1382
        %vm1508 = vcmp.eq.f32.partialorder %v1507, 8.507059e+37
        %v1509 = vand.u32 %v1382, 2147483648
        %v1510 = vor.u32 1.1754944e-38, %v1509
        %v1511 = vsel %vm1508, %v1510, %v1506
        %v1512 = vrcp.pop %v1385
        %v1513 = vmul.f32 %v1385, %v1512
        %v1514 = vsub.f32 1.0, %v1513
        %v1515 = vmul.f32 %v1512, %v1514
        %v1516 = vadd.f32 %v1512, %v1515
        %vm1517 = vweird.f32 %v1385
        %vm1518 = vweird.f32 %v1512
        %vm1519 = vmor %vm1517, %vm1518
        %v1520 = vsel %vm1519, %v1512, %v1516
        %v1521 = vand.u32 2147483647, %v1385
        %vm1522 = vcmp.eq.f32.partialorder %v1521, 8.507059e+37
        %v1523 = vand.u32 %v1385, 2147483648
        %v1524 = vor.u32 1.1754944e-38, %v1523
        %v1525 = vsel %vm1522, %v1524, %v1520
        %v1526 = vrcp.pop %v1388
        %v1527 = vmul.f32 %v1388, %v1526
        %v1528 = vsub.f32 1.0, %v1527
        %v1529 = vmul.f32 %v1526, %v1528
        %v1530 = vadd.f32 %v1526, %v1529
        %vm1531 = vweird.f32 %v1388
        %vm1532 = vweird.f32 %v1526
        %vm1533 = vmor %vm1531, %vm1532
        %v1534 = vsel %vm1533, %v1526, %v1530
        %v1535 = vand.u32 2147483647, %v1388
        %vm1536 = vcmp.eq.f32.partialorder %v1535, 8.507059e+37
        %v1537 = vand.u32 %v1388, 2147483648
        %v1538 = vor.u32 1.1754944e-38, %v1537
        %v1539 = vsel %vm1536, %v1538, %v1534
        %v1540 = vrcp.pop %v1391
        %v1541 = vmul.f32 %v1391, %v1540
        %v1542 = vsub.f32 1.0, %v1541
        %v1543 = vmul.f32 %v1540, %v1542
        %v1544 = vadd.f32 %v1540, %v1543
        %vm1545 = vweird.f32 %v1391
        %vm1546 = vweird.f32 %v1540
        %vm1547 = vmor %vm1545, %vm1546
        %v1548 = vsel %vm1547, %v1540, %v1544
        %v1549 = vand.u32 2147483647, %v1391
        %vm1550 = vcmp.eq.f32.partialorder %v1549, 8.507059e+37
        %v1551 = vand.u32 %v1391, 2147483648
        %v1552 = vor.u32 1.1754944e-38, %v1551
        %v1553 = vsel %vm1550, %v1552, %v1548
        %v1554 = vrcp.pop %v1394
        %v1555 = vmul.f32 %v1394, %v1554
        %v1556 = vsub.f32 1.0, %v1555
        %v1557 = vmul.f32 %v1554, %v1556
        %v1558 = vadd.f32 %v1554, %v1557
        %vm1559 = vweird.f32 %v1394
        %vm1560 = vweird.f32 %v1554
        %vm1561 = vmor %vm1559, %vm1560
        %v1562 = vsel %vm1561, %v1554, %v1558
        %v1563 = vand.u32 2147483647, %v1394
        %vm1564 = vcmp.eq.f32.partialorder %v1563, 8.507059e+37
        %v1565 = vand.u32 %v1394, 2147483648
        %v1566 = vor.u32 1.1754944e-38, %v1565
        %v1567 = vsel %vm1564, %v1566, %v1562
        %v1568 = vrcp.pop %v1397
        %v1569 = vmul.f32 %v1397, %v1568
        %v1570 = vsub.f32 1.0, %v1569
        %v1571 = vmul.f32 %v1568, %v1570
        %v1572 = vadd.f32 %v1568, %v1571
        %vm1573 = vweird.f32 %v1397
        %vm1574 = vweird.f32 %v1568
        %vm1575 = vmor %vm1573, %vm1574
        %v1576 = vsel %vm1575, %v1568, %v1572
        %v1577 = vand.u32 2147483647, %v1397
        %vm1578 = vcmp.eq.f32.partialorder %v1577, 8.507059e+37
        %v1579 = vand.u32 %v1397, 2147483648
        %v1580 = vor.u32 1.1754944e-38, %v1579
        %v1581 = vsel %vm1578, %v1580, %v1576
        %v1582 = vrcp.pop %v1400
        %v1583 = vmul.f32 %v1400, %v1582
        %v1584 = vsub.f32 1.0, %v1583
        %v1585 = vmul.f32 %v1582, %v1584
        %v1586 = vadd.f32 %v1582, %v1585
        %vm1587 = vweird.f32 %v1400
        %vm1588 = vweird.f32 %v1582
        %vm1589 = vmor %vm1587, %vm1588
        %v1590 = vsel %vm1589, %v1582, %v1586
        %v1591 = vand.u32 2147483647, %v1400
        %vm1592 = vcmp.eq.f32.partialorder %v1591, 8.507059e+37
        %v1593 = vand.u32 %v1400, 2147483648
        %v1594 = vor.u32 1.1754944e-38, %v1593
        %v1595 = vsel %vm1592, %v1594, %v1590
        %v1596 = vrcp.pop %v1403
        %v1597 = vmul.f32 %v1403, %v1596
        %v1598 = vsub.f32 1.0, %v1597
        %v1599 = vmul.f32 %v1596, %v1598
        %v1600 = vadd.f32 %v1596, %v1599
        %vm1601 = vweird.f32 %v1403
        %vm1602 = vweird.f32 %v1596
        %vm1603 = vmor %vm1601, %vm1602
        %v1604 = vsel %vm1603, %v1596, %v1600
        %v1605 = vand.u32 2147483647, %v1403
        %vm1606 = vcmp.eq.f32.partialorder %v1605, 8.507059e+37
        %v1607 = vand.u32 %v1403, 2147483648
        %v1608 = vor.u32 1.1754944e-38, %v1607
        %v1609 = vsel %vm1606, %v1608, %v1604
        %v1610 = vrcp.pop %v1406
        %v1611 = vmul.f32 %v1406, %v1610
        %v1612 = vsub.f32 1.0, %v1611
        %v1613 = vmul.f32 %v1610, %v1612
        %v1614 = vadd.f32 %v1610, %v1613
        %vm1615 = vweird.f32 %v1406
        %vm1616 = vweird.f32 %v1610
        %vm1617 = vmor %vm1615, %vm1616
        %v1618 = vsel %vm1617, %v1610, %v1614
        %v1619 = vand.u32 2147483647, %v1406
        %vm1620 = vcmp.eq.f32.partialorder %v1619, 8.507059e+37
        %v1621 = vand.u32 %v1406, 2147483648
        %v1622 = vor.u32 1.1754944e-38, %v1621
        %v1623 = vsel %vm1620, %v1622, %v1618
        %v1624 = vrcp.pop %v1409
        %v1625 = vmul.f32 %v1409, %v1624
        %v1626 = vsub.f32 1.0, %v1625
        %v1627 = vmul.f32 %v1624, %v1626
        %v1628 = vadd.f32 %v1624, %v1627
        %vm1629 = vweird.f32 %v1409
        %vm1630 = vweird.f32 %v1624
        %vm1631 = vmor %vm1629, %vm1630
        %v1632 = vsel %vm1631, %v1624, %v1628
        %v1633 = vand.u32 2147483647, %v1409
        %vm1634 = vcmp.eq.f32.partialorder %v1633, 8.507059e+37
        %v1635 = vand.u32 %v1409, 2147483648
        %v1636 = vor.u32 1.1754944e-38, %v1635
        %v1637 = vsel %vm1634, %v1636, %v1632
        %v1638 = vrcp.pop %v1412
        %v1639 = vmul.f32 %v1412, %v1638
        %v1640 = vsub.f32 1.0, %v1639
        %v1641 = vmul.f32 %v1638, %v1640
        %v1642 = vadd.f32 %v1638, %v1641
        %vm1643 = vweird.f32 %v1412
        %vm1644 = vweird.f32 %v1638
        %vm1645 = vmor %vm1643, %vm1644
        %v1646 = vsel %vm1645, %v1638, %v1642
        %v1647 = vand.u32 2147483647, %v1412
        %vm1648 = vcmp.eq.f32.partialorder %v1647, 8.507059e+37
        %v1649 = vand.u32 %v1412, 2147483648
        %v1650 = vor.u32 1.1754944e-38, %v1649
        %v1651 = vsel %vm1648, %v1650, %v1646
        %v1652 = vrcp.pop %v1415
        %v1653 = vmul.f32 %v1415, %v1652
        %v1654 = vsub.f32 1.0, %v1653
        %v1655 = vmul.f32 %v1652, %v1654
        %v1656 = vadd.f32 %v1652, %v1655
        %vm1657 = vweird.f32 %v1415
        %vm1658 = vweird.f32 %v1652
        %vm1659 = vmor %vm1657, %vm1658
        %v1660 = vsel %vm1659, %v1652, %v1656
        %v1661 = vand.u32 2147483647, %v1415
        %vm1662 = vcmp.eq.f32.partialorder %v1661, 8.507059e+37
        %v1663 = vand.u32 %v1415, 2147483648
        %v1664 = vor.u32 1.1754944e-38, %v1663
        %v1665 = vsel %vm1662, %v1664, %v1660
        %v1666 = vrcp.pop %v1418
        %v1667 = vmul.f32 %v1418, %v1666
        %v1668 = vsub.f32 1.0, %v1667
        %v1669 = vmul.f32 %v1666, %v1668
        %v1670 = vadd.f32 %v1666, %v1669
        %vm1671 = vweird.f32 %v1418
        %vm1672 = vweird.f32 %v1666
        %vm1673 = vmor %vm1671, %vm1672
        %v1674 = vsel %vm1673, %v1666, %v1670
        %v1675 = vand.u32 2147483647, %v1418
        %vm1676 = vcmp.eq.f32.partialorder %v1675, 8.507059e+37
        %v1677 = vand.u32 %v1418, 2147483648
        %v1678 = vor.u32 1.1754944e-38, %v1677
        %v1679 = vsel %vm1676, %v1678, %v1674
        %v1680 = vrcp.pop %v1421
        %v1681 = vmul.f32 %v1421, %v1680
        %v1682 = vsub.f32 1.0, %v1681
        %v1683 = vmul.f32 %v1680, %v1682
        %v1684 = vadd.f32 %v1680, %v1683
        %vm1685 = vweird.f32 %v1421
        %vm1686 = vweird.f32 %v1680
        %vm1687 = vmor %vm1685, %vm1686
        %v1688 = vsel %vm1687, %v1680, %v1684
        %v1689 = vand.u32 2147483647, %v1421
        %vm1690 = vcmp.eq.f32.partialorder %v1689, 8.507059e+37
        %v1691 = vand.u32 %v1421, 2147483648
        %v1692 = vor.u32 1.1754944e-38, %v1691
        %v1693 = vsel %vm1690, %v1692, %v1688
        %v1694 = vrcp.pop %v1424
        %v1695 = vmul.f32 %v1424, %v1694
        %v1696 = vsub.f32 1.0, %v1695
        %v1697 = vmul.f32 %v1694, %v1696
        %v1698 = vadd.f32 %v1694, %v1697
        %vm1699 = vweird.f32 %v1424
        %vm1700 = vweird.f32 %v1694
        %vm1701 = vmor %vm1699, %vm1700
        %v1702 = vsel %vm1701, %v1694, %v1698
        %v1703 = vand.u32 2147483647, %v1424
        %vm1704 = vcmp.eq.f32.partialorder %v1703, 8.507059e+37
        %v1705 = vand.u32 %v1424, 2147483648
        %v1706 = vor.u32 1.1754944e-38, %v1705
        %v1707 = vsel %vm1704, %v1706, %v1702
        %v1708 = vrcp.pop %v1427
        %v1709 = vmul.f32 %v1427, %v1708
        %v1710 = vsub.f32 1.0, %v1709
        %v1711 = vmul.f32 %v1708, %v1710
        %v1712 = vadd.f32 %v1708, %v1711
        %vm1713 = vweird.f32 %v1427
        %vm1714 = vweird.f32 %v1708
        %vm1715 = vmor %vm1713, %vm1714
        %v1716 = vsel %vm1715, %v1708, %v1712
        %v1717 = vand.u32 2147483647, %v1427
        %vm1718 = vcmp.eq.f32.partialorder %v1717, 8.507059e+37
        %v1719 = vand.u32 %v1427, 2147483648
        %v1720 = vor.u32 1.1754944e-38, %v1719
        %v1721 = vsel %vm1718, %v1720, %v1716
        %v1722 = vrcp.pop %v1430
        %v1723 = vmul.f32 %v1430, %v1722
        %v1724 = vsub.f32 1.0, %v1723
        %v1725 = vmul.f32 %v1722, %v1724
        %v1726 = vadd.f32 %v1722, %v1725
        %vm1727 = vweird.f32 %v1430
        %vm1728 = vweird.f32 %v1722
        %vm1729 = vmor %vm1727, %vm1728
        %v1730 = vsel %vm1729, %v1722, %v1726
        %v1731 = vand.u32 2147483647, %v1430
        %vm1732 = vcmp.eq.f32.partialorder %v1731, 8.507059e+37
        %v1733 = vand.u32 %v1430, 2147483648
        %v1734 = vor.u32 1.1754944e-38, %v1733
        %v1735 = vsel %vm1732, %v1734, %v1730
        %v1736 = vrcp.pop %v1433
        %v1737 = vmul.f32 %v1433, %v1736
        %v1738 = vsub.f32 1.0, %v1737
        %v1739 = vmul.f32 %v1736, %v1738
        %v1740 = vadd.f32 %v1736, %v1739
        %vm1741 = vweird.f32 %v1433
        %vm1742 = vweird.f32 %v1736
        %vm1743 = vmor %vm1741, %vm1742
        %v1744 = vsel %vm1743, %v1736, %v1740
        %v1745 = vand.u32 2147483647, %v1433
        %vm1746 = vcmp.eq.f32.partialorder %v1745, 8.507059e+37
        %v1747 = vand.u32 %v1433, 2147483648
        %v1748 = vor.u32 1.1754944e-38, %v1747
        %v1749 = vsel %vm1746, %v1748, %v1744
        %v1750 = vrcp.pop %v1436
        %v1751 = vmul.f32 %v1436, %v1750
        %v1752 = vsub.f32 1.0, %v1751
        %v1753 = vmul.f32 %v1750, %v1752
        %v1754 = vadd.f32 %v1750, %v1753
        %vm1755 = vweird.f32 %v1436
        %vm1756 = vweird.f32 %v1750
        %vm1757 = vmor %vm1755, %vm1756
        %v1758 = vsel %vm1757, %v1750, %v1754
        %v1759 = vand.u32 2147483647, %v1436
        %vm1760 = vcmp.eq.f32.partialorder %v1759, 8.507059e+37
        %v1761 = vand.u32 %v1436, 2147483648
        %v1762 = vor.u32 1.1754944e-38, %v1761
        %v1763 = vsel %vm1760, %v1762, %v1758
        %v1764 = vrcp.pop %v1439
        %v1765 = vmul.f32 %v1439, %v1764
        %v1766 = vsub.f32 1.0, %v1765
        %v1767 = vmul.f32 %v1764, %v1766
        %v1768 = vadd.f32 %v1764, %v1767
        %vm1769 = vweird.f32 %v1439
        %vm1770 = vweird.f32 %v1764
        %vm1771 = vmor %vm1769, %vm1770
        %v1772 = vsel %vm1771, %v1764, %v1768
        %v1773 = vand.u32 2147483647, %v1439
        %vm1774 = vcmp.eq.f32.partialorder %v1773, 8.507059e+37
        %v1775 = vand.u32 %v1439, 2147483648
        %v1776 = vor.u32 1.1754944e-38, %v1775
        %v1777 = vsel %vm1774, %v1776, %v1772
        %v1778 = vrcp.pop %v1442
        %v1779 = vmul.f32 %v1442, %v1778
        %v1780 = vsub.f32 1.0, %v1779
        %v1781 = vmul.f32 %v1778, %v1780
        %v1782 = vadd.f32 %v1778, %v1781
        %vm1783 = vweird.f32 %v1442
        %vm1784 = vweird.f32 %v1778
        %vm1785 = vmor %vm1783, %vm1784
        %v1786 = vsel %vm1785, %v1778, %v1782
        %v1787 = vand.u32 2147483647, %v1442
        %vm1788 = vcmp.eq.f32.partialorder %v1787, 8.507059e+37
        %v1789 = vand.u32 %v1442, 2147483648
        %v1790 = vor.u32 1.1754944e-38, %v1789
        %v1791 = vsel %vm1788, %v1790, %v1786
        %v1792 = vrcp.pop %v1445
        %v1793 = vmul.f32 %v1445, %v1792
        %v1794 = vsub.f32 1.0, %v1793
        %v1795 = vmul.f32 %v1792, %v1794
        %v1796 = vadd.f32 %v1792, %v1795
        %vm1797 = vweird.f32 %v1445
        %vm1798 = vweird.f32 %v1792
        %vm1799 = vmor %vm1797, %vm1798
        %v1800 = vsel %vm1799, %v1792, %v1796
        %v1801 = vand.u32 2147483647, %v1445
        %vm1802 = vcmp.eq.f32.partialorder %v1801, 8.507059e+37
        %v1803 = vand.u32 %v1445, 2147483648
        %v1804 = vor.u32 1.1754944e-38, %v1803
        %v1805 = vsel %vm1802, %v1804, %v1800
        %v1806 = vrcp.pop %v1448
        %v1807 = vmul.f32 %v1448, %v1806
        %v1808 = vsub.f32 1.0, %v1807
        %v1809 = vmul.f32 %v1806, %v1808
        %v1810 = vadd.f32 %v1806, %v1809
        %vm1811 = vweird.f32 %v1448
        %vm1812 = vweird.f32 %v1806
        %vm1813 = vmor %vm1811, %vm1812
        %v1814 = vsel %vm1813, %v1806, %v1810
        %v1815 = vand.u32 2147483647, %v1448
        %vm1816 = vcmp.eq.f32.partialorder %v1815, 8.507059e+37
        %v1817 = vand.u32 %v1448, 2147483648
        %v1818 = vor.u32 1.1754944e-38, %v1817
        %v1819 = vsel %vm1816, %v1818, %v1814
        %v1820 = vrcp.pop %v1451
        %v1821 = vmul.f32 %v1451, %v1820
        %v1822 = vsub.f32 1.0, %v1821
        %v1823 = vmul.f32 %v1820, %v1822
        %v1824 = vadd.f32 %v1820, %v1823
        %vm1825 = vweird.f32 %v1451
        %vm1826 = vweird.f32 %v1820
        %vm1827 = vmor %vm1825, %vm1826
        %v1828 = vsel %vm1827, %v1820, %v1824
        %v1829 = vand.u32 2147483647, %v1451
        %vm1830 = vcmp.eq.f32.partialorder %v1829, 8.507059e+37
        %v1831 = vand.u32 %v1451, 2147483648
        %v1832 = vor.u32 1.1754944e-38, %v1831
        %v1833 = vsel %vm1830, %v1832, %v1828
        %v1834 = vrcp.pop %v1454
        %v1835 = vmul.f32 %v1454, %v1834
        %v1836 = vsub.f32 1.0, %v1835
        %v1837 = vmul.f32 %v1834, %v1836
        %v1838 = vadd.f32 %v1834, %v1837
        %vm1839 = vweird.f32 %v1454
        %vm1840 = vweird.f32 %v1834
        %vm1841 = vmor %vm1839, %vm1840
        %v1842 = vsel %vm1841, %v1834, %v1838
        %v1843 = vand.u32 2147483647, %v1454
        %vm1844 = vcmp.eq.f32.partialorder %v1843, 8.507059e+37
        %v1845 = vand.u32 %v1454, 2147483648
        %v1846 = vor.u32 1.1754944e-38, %v1845
        %v1847 = vsel %vm1844, %v1846, %v1842
        %v1848 = vrcp.pop %v1457
        %v1849 = vmul.f32 %v1457, %v1848
        %v1850 = vsub.f32 1.0, %v1849
        %v1851 = vmul.f32 %v1848, %v1850
        %v1852 = vadd.f32 %v1848, %v1851
        %vm1853 = vweird.f32 %v1457
        %vm1854 = vweird.f32 %v1848
        %vm1855 = vmor %vm1853, %vm1854
        %v1856 = vsel %vm1855, %v1848, %v1852
        %v1857 = vand.u32 2147483647, %v1457
        %vm1858 = vcmp.eq.f32.partialorder %v1857, 8.507059e+37
        %v1859 = vand.u32 %v1457, 2147483648
        %v1860 = vor.u32 1.1754944e-38, %v1859
        %v1861 = vsel %vm1858, %v1860, %v1856
        %v1862 = vrcp.pop %v1460
        %v1863 = vmul.f32 %v1460, %v1862
        %v1864 = vsub.f32 1.0, %v1863
        %v1865 = vmul.f32 %v1862, %v1864
        %v1866 = vadd.f32 %v1862, %v1865
        %vm1867 = vweird.f32 %v1460
        %vm1868 = vweird.f32 %v1862
        %vm1869 = vmor %vm1867, %vm1868
        %v1870 = vsel %vm1869, %v1862, %v1866
        %v1871 = vand.u32 2147483647, %v1460
        %vm1872 = vcmp.eq.f32.partialorder %v1871, 8.507059e+37
        %v1873 = vand.u32 %v1460, 2147483648
        %v1874 = vor.u32 1.1754944e-38, %v1873
        %v1875 = vsel %vm1872, %v1874, %v1870
        %v1876 = vrcp.pop %v1463
        %v1877 = vmul.f32 %v1463, %v1876
        %v1878 = vsub.f32 1.0, %v1877
        %v1879 = vmul.f32 %v1876, %v1878
        %v1880 = vadd.f32 %v1876, %v1879
        %vm1881 = vweird.f32 %v1463
        %vm1882 = vweird.f32 %v1876
        %vm1883 = vmor %vm1881, %vm1882
        %v1884 = vsel %vm1883, %v1876, %v1880
        %v1885 = vand.u32 2147483647, %v1463
        %vm1886 = vcmp.eq.f32.partialorder %v1885, 8.507059e+37
        %v1887 = vand.u32 %v1463, 2147483648
        %v1888 = vor.u32 1.1754944e-38, %v1887
        %v1889 = vsel %vm1886, %v1888, %v1884
        %v1890 = vrcp.pop %v1466
        %v1891 = vmul.f32 %v1466, %v1890
        %v1892 = vsub.f32 1.0, %v1891
        %v1893 = vmul.f32 %v1890, %v1892
        %v1894 = vadd.f32 %v1890, %v1893
        %vm1895 = vweird.f32 %v1466
        %vm1896 = vweird.f32 %v1890
        %vm1897 = vmor %vm1895, %vm1896
        %v1898 = vsel %vm1897, %v1890, %v1894
        %v1899 = vand.u32 2147483647, %v1466
        %vm1900 = vcmp.eq.f32.partialorder %v1899, 8.507059e+37
        %v1901 = vand.u32 %v1466, 2147483648
        %v1902 = vor.u32 1.1754944e-38, %v1901
        %v1903 = vsel %vm1900, %v1902, %v1898
        %v1904 = vrcp.pop %v1469
        %v1905 = vmul.f32 %v1469, %v1904
        %v1906 = vsub.f32 1.0, %v1905
        %v1907 = vmul.f32 %v1904, %v1906
        %v1908 = vadd.f32 %v1904, %v1907
        %vm1909 = vweird.f32 %v1469
        %vm1910 = vweird.f32 %v1904
        %vm1911 = vmor %vm1909, %vm1910
        %v1912 = vsel %vm1911, %v1904, %v1908
        %v1913 = vand.u32 2147483647, %v1469
        %vm1914 = vcmp.eq.f32.partialorder %v1913, 8.507059e+37
        %v1915 = vand.u32 %v1469, 2147483648
        %v1916 = vor.u32 1.1754944e-38, %v1915
        %v1917 = vsel %vm1914, %v1916, %v1912
        %v1918 = vmul.f32 %v1311, %v1483
        %v1919 = vmul.f32 %v1313, %v1497
        %v1920 = vmul.f32 %v1315, %v1511
        %v1921 = vmul.f32 %v1317, %v1525
        %v1922 = vmul.f32 %v1319, %v1539
        %v1923 = vmul.f32 %v1321, %v1553
        %v1924 = vmul.f32 %v1323, %v1567
        %v1925 = vmul.f32 %v1325, %v1581
        %v1926 = vmul.f32 %v1327, %v1595
        %v1927 = vmul.f32 %v1329, %v1609
        %v1928 = vmul.f32 %v1331, %v1623
        %v1929 = vmul.f32 %v1333, %v1637
        %v1930 = vmul.f32 %v1335, %v1651
        %v1931 = vmul.f32 %v1337, %v1665
        %v1932 = vmul.f32 %v1339, %v1679
        %v1933 = vmul.f32 %v1341, %v1693
        %v1934 = vmul.f32 %v1343, %v1707
        %v1935 = vmul.f32 %v1345, %v1721
        %v1936 = vmul.f32 %v1347, %v1735
        %v1937 = vmul.f32 %v1349, %v1749
        %v1938 = vmul.f32 %v1351, %v1763
        %v1939 = vmul.f32 %v1353, %v1777
        %v1940 = vmul.f32 %v1355, %v1791
        %v1941 = vmul.f32 %v1357, %v1805
        %v1942 = vmul.f32 %v1359, %v1819
        %v1943 = vmul.f32 %v1361, %v1833
        %v1944 = vmul.f32 %v1363, %v1847
        %v1945 = vmul.f32 %v1365, %v1861
        %v1946 = vmul.f32 %v1367, %v1875
        %v1947 = vmul.f32 %v1369, %v1889
        %v1948 = vmul.f32 %v1371, %v1903
        %v1949 = vmul.f32 %v1373, %v1917
        %v1950 = vmul.f32 %v1918, %v662
        %v1951 = vmul.f32 %v1919, %v665
        %v1952 = vmul.f32 %v1920, %v668
        %v1953 = vmul.f32 %v1921, %v671
        %v1954 = vmul.f32 %v1922, %v674
        %v1955 = vmul.f32 %v1923, %v677
        %v1956 = vmul.f32 %v1924, %v680
        %v1957 = vmul.f32 %v1925, %v683
        %v1958 = vmul.f32 %v1926, %v686
        %v1959 = vmul.f32 %v1927, %v689
        %v1960 = vmul.f32 %v1928, %v692
        %v1961 = vmul.f32 %v1929, %v695
        %v1962 = vmul.f32 %v1930, %v698
        %v1963 = vmul.f32 %v1931, %v701
        %v1964 = vmul.f32 %v1932, %v704
        %v1965 = vmul.f32 %v1933, %v707
        %v1966 = vmul.f32 %v1934, %v710
        %v1967 = vmul.f32 %v1935, %v713
        %v1968 = vmul.f32 %v1936, %v716
        %v1969 = vmul.f32 %v1937, %v719
        %v1970 = vmul.f32 %v1938, %v722
        %v1971 = vmul.f32 %v1939, %v725
        %v1972 = vmul.f32 %v1940, %v728
        %v1973 = vmul.f32 %v1941, %v731
        %v1974 = vmul.f32 %v1942, %v734
        %v1975 = vmul.f32 %v1943, %v737
        %v1976 = vmul.f32 %v1944, %v740
        %v1977 = vmul.f32 %v1945, %v743
        %v1978 = vmul.f32 %v1946, %v746
        %v1979 = vmul.f32 %v1947, %v749
        %v1980 = vmul.f32 %v1948, %v752
        %v1981 = vmul.f32 %v1949, %v755
        %v1982 = vld [vmem:[#allocation2 + $0xf0] sm:$0xff]
        %v1983 = vld [vmem:[#allocation2 + $0x108] sm:$0xff]
        %v1984 = vld [vmem:[#allocation2 + $0x120] sm:$0xff]
        %v1985 = vld [vmem:[#allocation2 + $0x138] sm:$0xff]
        %v1986 = vld [vmem:[%s3 + $0x3] ss:$0 sm:$0xff]
        %v1988 = vsel %vm757, %v1950, 0
        %v1991 = vsel %vm757, %v1951, 0
        %v1994 = vsel %vm757, %v1952, 0
        %v1997 = vsel %vm757, %v1953, 0
        %v2000 = vsel %vm757, %v1954, 0
        %v2003 = vsel %vm757, %v1955, 0
        %v2006 = vsel %vm757, %v1956, 0
        %v2009 = vsel %vm757, %v1957, 0
        %v2012 = vsel %vm757, %v1958, 0
        %v2015 = vsel %vm757, %v1959, 0
        %v2018 = vsel %vm757, %v1960, 0
        %v2021 = vsel %vm757, %v1961, 0
        %v2024 = vsel %vm757, %v1962, 0
        %v2027 = vsel %vm757, %v1963, 0
        %v2030 = vsel %vm757, %v1964, 0
        %v2033 = vsel %vm757, %v1965, 0
        %v2036 = vsel %vm757, %v1966, 0
        %v2039 = vsel %vm757, %v1967, 0
        %v2042 = vsel %vm757, %v1968, 0
        %v2045 = vsel %vm757, %v1969, 0
        %v2048 = vsel %vm757, %v1970, 0
        %v2051 = vsel %vm757, %v1971, 0
        %v2054 = vsel %vm757, %v1972, 0
        %v2057 = vsel %vm757, %v1973, 0
        %v2060 = vsel %vm757, %v1974, 0
        %v2063 = vsel %vm757, %v1975, 0
        %v2066 = vsel %vm757, %v1976, 0
        %v2069 = vsel %vm757, %v1977, 0
        %v2072 = vsel %vm757, %v1978, 0
        %v2075 = vsel %vm757, %v1979, 0
        %v2078 = vsel %vm757, %v1980, 0
        %v2081 = vsel %vm757, %v1981, 0
        %2083 = vmatpush.msra.mxu0 0.0
        %2084 = vmatpush.msra.mxu0 0.0
        %2085 = vmatpush.msra.mxu0 0.0
        %2086 = vmatpush.msra.mxu0 0.0
        %2087 = vmatpush.msra.mxu0 0.0
        %2088 = vmatpush.msra.mxu0 0.0
        %2089 = vmatpush.msra.mxu0 0.0
        %2090 = vmatpush.msra.mxu0 0.0
        %2091 = vmatpush.msra.mxu0 0.0
        %2092 = vmatpush.msra.mxu0 0.0
        %2093 = vmatpush.msra.mxu0 0.0
        %2094 = vmatpush.msra.mxu0 0.0
        %2095 = vmatpush.msra.mxu0 %v1985
        %2096 = vmatpush.msra.mxu0 %v1984
        %2097 = vmatpush.msra.mxu0 %v1983
        %2098 = vmatpush.msra.mxu0 %v1982
        %2099 = vmatmul.f32.gmra.mxu0 %v1988
        %v2100 = vpop.f32.mrf.mxu0
        %v2101 = vadd.f32 %v1986, %v2100
        %2102 = vmatmul.f32.gmra.mxu0 %v1991
        %v2103 = vpop.f32.mrf.mxu0
        %v2104 = vadd.f32 %v1986, %v2103
        %2105 = vmatmul.f32.gmra.mxu0 %v1994
        %v2106 = vpop.f32.mrf.mxu0
        %v2107 = vadd.f32 %v1986, %v2106
        %2108 = vmatmul.f32.gmra.mxu0 %v1997
        %v2109 = vpop.f32.mrf.mxu0
        %v2110 = vadd.f32 %v1986, %v2109
        %2111 = vmatmul.f32.gmra.mxu0 %v2000
        %v2112 = vpop.f32.mrf.mxu0
        %v2113 = vadd.f32 %v1986, %v2112
        %2114 = vmatmul.f32.gmra.mxu0 %v2003
        %v2115 = vpop.f32.mrf.mxu0
        %v2116 = vadd.f32 %v1986, %v2115
        %2117 = vmatmul.f32.gmra.mxu0 %v2006
        %v2118 = vpop.f32.mrf.mxu0
        %v2119 = vadd.f32 %v1986, %v2118
        %2120 = vmatmul.f32.gmra.mxu0 %v2009
        %v2121 = vpop.f32.mrf.mxu0
        %v2122 = vadd.f32 %v1986, %v2121
        %2123 = vmatmul.f32.gmra.mxu0 %v2012
        %v2124 = vpop.f32.mrf.mxu0
        %v2125 = vadd.f32 %v1986, %v2124
        %2126 = vmatmul.f32.gmra.mxu0 %v2015
        %v2127 = vpop.f32.mrf.mxu0
        %v2128 = vadd.f32 %v1986, %v2127
        %2129 = vmatmul.f32.gmra.mxu0 %v2018
        %v2130 = vpop.f32.mrf.mxu0
        %v2131 = vadd.f32 %v1986, %v2130
        %2132 = vmatmul.f32.gmra.mxu0 %v2021
        %v2133 = vpop.f32.mrf.mxu0
        %v2134 = vadd.f32 %v1986, %v2133
        %2135 = vmatmul.f32.gmra.mxu0 %v2024
        %v2136 = vpop.f32.mrf.mxu0
        %v2137 = vadd.f32 %v1986, %v2136
        %2138 = vmatmul.f32.gmra.mxu0 %v2027
        %v2139 = vpop.f32.mrf.mxu0
        %v2140 = vadd.f32 %v1986, %v2139
        %2141 = vmatmul.f32.gmra.mxu0 %v2030
        %v2142 = vpop.f32.mrf.mxu0
        %v2143 = vadd.f32 %v1986, %v2142
        %2144 = vmatmul.f32.gmra.mxu0 %v2033
        %v2145 = vpop.f32.mrf.mxu0
        %v2146 = vadd.f32 %v1986, %v2145
        %2147 = vmatmul.f32.gmra.mxu0 %v2036
        %v2148 = vpop.f32.mrf.mxu0
        %v2149 = vadd.f32 %v1986, %v2148
        %2150 = vmatmul.f32.gmra.mxu0 %v2039
        %v2151 = vpop.f32.mrf.mxu0
        %v2152 = vadd.f32 %v1986, %v2151
        %2153 = vmatmul.f32.gmra.mxu0 %v2042
        %v2154 = vpop.f32.mrf.mxu0
        %v2155 = vadd.f32 %v1986, %v2154
        %2156 = vmatmul.f32.gmra.mxu0 %v2045
        %v2157 = vpop.f32.mrf.mxu0
        %v2158 = vadd.f32 %v1986, %v2157
        %2159 = vmatmul.f32.gmra.mxu0 %v2048
        %v2160 = vpop.f32.mrf.mxu0
        %v2161 = vadd.f32 %v1986, %v2160
        %2162 = vmatmul.f32.gmra.mxu0 %v2051
        %v2163 = vpop.f32.mrf.mxu0
        %v2164 = vadd.f32 %v1986, %v2163
        %2165 = vmatmul.f32.gmra.mxu0 %v2054
        %v2166 = vpop.f32.mrf.mxu0
        %v2167 = vadd.f32 %v1986, %v2166
        %2168 = vmatmul.f32.gmra.mxu0 %v2057
        %v2169 = vpop.f32.mrf.mxu0
        %v2170 = vadd.f32 %v1986, %v2169
        %2171 = vmatmul.f32.gmra.mxu0 %v2060
        %v2172 = vpop.f32.mrf.mxu0
        %v2173 = vadd.f32 %v1986, %v2172
        %2174 = vmatmul.f32.gmra.mxu0 %v2063
        %v2175 = vpop.f32.mrf.mxu0
        %v2176 = vadd.f32 %v1986, %v2175
        %2177 = vmatmul.f32.gmra.mxu0 %v2066
        %v2178 = vpop.f32.mrf.mxu0
        %v2179 = vadd.f32 %v1986, %v2178
        %2180 = vmatmul.f32.gmra.mxu0 %v2069
        %v2181 = vpop.f32.mrf.mxu0
        %v2182 = vadd.f32 %v1986, %v2181
        %2183 = vmatmul.f32.gmra.mxu0 %v2072
        %v2184 = vpop.f32.mrf.mxu0
        %v2185 = vadd.f32 %v1986, %v2184
        %2186 = vmatmul.f32.gmra.mxu0 %v2075
        %v2187 = vpop.f32.mrf.mxu0
        %v2188 = vadd.f32 %v1986, %v2187
        %2189 = vmatmul.f32.gmra.mxu0 %v2078
        %v2190 = vpop.f32.mrf.mxu0
        %v2191 = vadd.f32 %v1986, %v2190
        %2192 = vmatmul.f32.gmra.mxu0 %v2081
        %v2193 = vpop.f32.mrf.mxu0
        %v2194 = vadd.f32 %v1986, %v2193
        %2195 = vdwg.mxu0
        %v2196 = vmax.f32 %v2101, 0.0
        %v2197 = vmax.f32 %v2104, 0.0
        %v2198 = vmax.f32 %v2107, 0.0
        %v2199 = vmax.f32 %v2110, 0.0
        %v2200 = vmax.f32 %v2113, 0.0
        %v2201 = vmax.f32 %v2116, 0.0
        %v2202 = vmax.f32 %v2119, 0.0
        %v2203 = vmax.f32 %v2122, 0.0
        %v2204 = vmax.f32 %v2125, 0.0
        %v2205 = vmax.f32 %v2128, 0.0
        %v2206 = vmax.f32 %v2131, 0.0
        %v2207 = vmax.f32 %v2134, 0.0
        %v2208 = vmax.f32 %v2137, 0.0
        %v2209 = vmax.f32 %v2140, 0.0
        %v2210 = vmax.f32 %v2143, 0.0
        %v2211 = vmax.f32 %v2146, 0.0
        %v2212 = vmax.f32 %v2149, 0.0
        %v2213 = vmax.f32 %v2152, 0.0
        %v2214 = vmax.f32 %v2155, 0.0
        %v2215 = vmax.f32 %v2158, 0.0
        %v2216 = vmax.f32 %v2161, 0.0
        %v2217 = vmax.f32 %v2164, 0.0
        %v2218 = vmax.f32 %v2167, 0.0
        %v2219 = vmax.f32 %v2170, 0.0
        %v2220 = vmax.f32 %v2173, 0.0
        %v2221 = vmax.f32 %v2176, 0.0
        %v2222 = vmax.f32 %v2179, 0.0
        %v2223 = vmax.f32 %v2182, 0.0
        %v2224 = vmax.f32 %v2185, 0.0
        %v2225 = vmax.f32 %v2188, 0.0
        %v2226 = vmax.f32 %v2191, 0.0
        %v2227 = vmax.f32 %v2194, 0.0
        %v2228 = vld [vmem:[#allocation2 + $0x30] sm:$0xff]
        %v2229 = vld [vmem:[#allocation2 + $0x48] sm:$0xff]
        %v2230 = vld [vmem:[#allocation2 + $0x60] sm:$0xff]
        %v2231 = vld [vmem:[#allocation2 + $0x78] sm:$0xff]
        %v2232 = vld [vmem:[%s3 + $0x1] ss:$0 sm:$0xff]
        %v2234 = vsel %vm757, %v280, 0
        %v2237 = vsel %vm757, %v281, 0
        %v2240 = vsel %vm757, %v282, 0
        %v2243 = vsel %vm757, %v283, 0
        %v2246 = vsel %vm757, %v284, 0
        %v2249 = vsel %vm757, %v285, 0
        %v2252 = vsel %vm757, %v286, 0
        %v2255 = vsel %vm757, %v287, 0
        %v2258 = vsel %vm757, %v288, 0
        %v2261 = vsel %vm757, %v289, 0
        %v2264 = vsel %vm757, %v290, 0
        %v2267 = vsel %vm757, %v291, 0
        %v2270 = vsel %vm757, %v292, 0
        %v2273 = vsel %vm757, %v293, 0
        %v2276 = vsel %vm757, %v294, 0
        %v2279 = vsel %vm757, %v295, 0
        %v2282 = vsel %vm757, %v296, 0
        %v2285 = vsel %vm757, %v297, 0
        %v2288 = vsel %vm757, %v298, 0
        %v2291 = vsel %vm757, %v299, 0
        %v2294 = vsel %vm757, %v300, 0
        %v2297 = vsel %vm757, %v301, 0
        %v2300 = vsel %vm757, %v302, 0
        %v2303 = vsel %vm757, %v303, 0
        %v2306 = vsel %vm757, %v304, 0
        %v2309 = vsel %vm757, %v305, 0
        %v2312 = vsel %vm757, %v306, 0
        %v2315 = vsel %vm757, %v307, 0
        %v2318 = vsel %vm757, %v308, 0
        %v2321 = vsel %vm757, %v309, 0
        %v2324 = vsel %vm757, %v310, 0
        %v2327 = vsel %vm757, %v311, 0
        %2329 = vmatpush.msra.mxu0 0.0
        %2330 = vmatpush.msra.mxu0 0.0
        %2331 = vmatpush.msra.mxu0 0.0
        %2332 = vmatpush.msra.mxu0 0.0
        %2333 = vmatpush.msra.mxu0 0.0
        %2334 = vmatpush.msra.mxu0 0.0
        %2335 = vmatpush.msra.mxu0 0.0
        %2336 = vmatpush.msra.mxu0 0.0
        %2337 = vmatpush.msra.mxu0 0.0
        %2338 = vmatpush.msra.mxu0 0.0
        %2339 = vmatpush.msra.mxu0 0.0
        %2340 = vmatpush.msra.mxu0 0.0
        %2341 = vmatpush.msra.mxu0 %v2231
        %2342 = vmatpush.msra.mxu0 %v2230
        %2343 = vmatpush.msra.mxu0 %v2229
        %2344 = vmatpush.msra.mxu0 %v2228
        %2345 = vmatmul.f32.gmra.mxu0 %v2234
        %v2346 = vpop.f32.mrf.mxu0
        %v2347 = vadd.f32 %v2232, %v2346
        %2348 = vmatmul.f32.gmra.mxu0 %v2237
        %v2349 = vpop.f32.mrf.mxu0
        %v2350 = vadd.f32 %v2232, %v2349
        %2351 = vmatmul.f32.gmra.mxu0 %v2240
        %v2352 = vpop.f32.mrf.mxu0
        %v2353 = vadd.f32 %v2232, %v2352
        %2354 = vmatmul.f32.gmra.mxu0 %v2243
        %v2355 = vpop.f32.mrf.mxu0
        %v2356 = vadd.f32 %v2232, %v2355
        %2357 = vmatmul.f32.gmra.mxu0 %v2246
        %v2358 = vpop.f32.mrf.mxu0
        %v2359 = vadd.f32 %v2232, %v2358
        %2360 = vmatmul.f32.gmra.mxu0 %v2249
        %v2361 = vpop.f32.mrf.mxu0
        %v2362 = vadd.f32 %v2232, %v2361
        %2363 = vmatmul.f32.gmra.mxu0 %v2252
        %v2364 = vpop.f32.mrf.mxu0
        %v2365 = vadd.f32 %v2232, %v2364
        %2366 = vmatmul.f32.gmra.mxu0 %v2255
        %v2367 = vpop.f32.mrf.mxu0
        %v2368 = vadd.f32 %v2232, %v2367
        %2369 = vmatmul.f32.gmra.mxu0 %v2258
        %v2370 = vpop.f32.mrf.mxu0
        %v2371 = vadd.f32 %v2232, %v2370
        %2372 = vmatmul.f32.gmra.mxu0 %v2261
        %v2373 = vpop.f32.mrf.mxu0
        %v2374 = vadd.f32 %v2232, %v2373
        %2375 = vmatmul.f32.gmra.mxu0 %v2264
        %v2376 = vpop.f32.mrf.mxu0
        %v2377 = vadd.f32 %v2232, %v2376
        %2378 = vmatmul.f32.gmra.mxu0 %v2267
        %v2379 = vpop.f32.mrf.mxu0
        %v2380 = vadd.f32 %v2232, %v2379
        %2381 = vmatmul.f32.gmra.mxu0 %v2270
        %v2382 = vpop.f32.mrf.mxu0
        %v2383 = vadd.f32 %v2232, %v2382
        %2384 = vmatmul.f32.gmra.mxu0 %v2273
        %v2385 = vpop.f32.mrf.mxu0
        %v2386 = vadd.f32 %v2232, %v2385
        %2387 = vmatmul.f32.gmra.mxu0 %v2276
        %v2388 = vpop.f32.mrf.mxu0
        %v2389 = vadd.f32 %v2232, %v2388
        %2390 = vmatmul.f32.gmra.mxu0 %v2279
        %v2391 = vpop.f32.mrf.mxu0
        %v2392 = vadd.f32 %v2232, %v2391
        %2393 = vmatmul.f32.gmra.mxu0 %v2282
        %v2394 = vpop.f32.mrf.mxu0
        %v2395 = vadd.f32 %v2232, %v2394
        %2396 = vmatmul.f32.gmra.mxu0 %v2285
        %v2397 = vpop.f32.mrf.mxu0
        %v2398 = vadd.f32 %v2232, %v2397
        %2399 = vmatmul.f32.gmra.mxu0 %v2288
        %v2400 = vpop.f32.mrf.mxu0
        %v2401 = vadd.f32 %v2232, %v2400
        %2402 = vmatmul.f32.gmra.mxu0 %v2291
        %v2403 = vpop.f32.mrf.mxu0
        %v2404 = vadd.f32 %v2232, %v2403
        %2405 = vmatmul.f32.gmra.mxu0 %v2294
        %v2406 = vpop.f32.mrf.mxu0
        %v2407 = vadd.f32 %v2232, %v2406
        %2408 = vmatmul.f32.gmra.mxu0 %v2297
        %v2409 = vpop.f32.mrf.mxu0
        %v2410 = vadd.f32 %v2232, %v2409
        %2411 = vmatmul.f32.gmra.mxu0 %v2300
        %v2412 = vpop.f32.mrf.mxu0
        %v2413 = vadd.f32 %v2232, %v2412
        %2414 = vmatmul.f32.gmra.mxu0 %v2303
        %v2415 = vpop.f32.mrf.mxu0
        %v2416 = vadd.f32 %v2232, %v2415
        %2417 = vmatmul.f32.gmra.mxu0 %v2306
        %v2418 = vpop.f32.mrf.mxu0
        %v2419 = vadd.f32 %v2232, %v2418
        %2420 = vmatmul.f32.gmra.mxu0 %v2309
        %v2421 = vpop.f32.mrf.mxu0
        %v2422 = vadd.f32 %v2232, %v2421
        %2423 = vmatmul.f32.gmra.mxu0 %v2312
        %v2424 = vpop.f32.mrf.mxu0
        %v2425 = vadd.f32 %v2232, %v2424
        %2426 = vmatmul.f32.gmra.mxu0 %v2315
        %v2427 = vpop.f32.mrf.mxu0
        %v2428 = vadd.f32 %v2232, %v2427
        %2429 = vmatmul.f32.gmra.mxu0 %v2318
        %v2430 = vpop.f32.mrf.mxu0
        %v2431 = vadd.f32 %v2232, %v2430
        %2432 = vmatmul.f32.gmra.mxu0 %v2321
        %v2433 = vpop.f32.mrf.mxu0
        %v2434 = vadd.f32 %v2232, %v2433
        %2435 = vmatmul.f32.gmra.mxu0 %v2324
        %v2436 = vpop.f32.mrf.mxu0
        %v2437 = vadd.f32 %v2232, %v2436
        %2438 = vmatmul.f32.gmra.mxu0 %v2327
        %v2439 = vpop.f32.mrf.mxu0
        %v2440 = vadd.f32 %v2232, %v2439
        %2441 = vdwg.mxu0
        %v2442 = vld [vmem:[#allocation2 + $0x38] sm:$0xff]
        %v2443 = vld [vmem:[#allocation2 + $0x50] sm:$0xff]
        %v2444 = vld [vmem:[#allocation2 + $0x68] sm:$0xff]
        %v2445 = vld [vmem:[#allocation2 + $0x80] sm:$0xff]
        %v2446 = vld [vmem:[%s3 + $0x9] ss:$0 sm:$0xff]
        %2447 = vmatpush.msra.mxu0 0.0
        %2448 = vmatpush.msra.mxu0 0.0
        %2449 = vmatpush.msra.mxu0 0.0
        %2450 = vmatpush.msra.mxu0 0.0
        %2451 = vmatpush.msra.mxu0 0.0
        %2452 = vmatpush.msra.mxu0 0.0
        %2453 = vmatpush.msra.mxu0 0.0
        %2454 = vmatpush.msra.mxu0 0.0
        %2455 = vmatpush.msra.mxu0 0.0
        %2456 = vmatpush.msra.mxu0 0.0
        %2457 = vmatpush.msra.mxu0 0.0
        %2458 = vmatpush.msra.mxu0 0.0
        %2459 = vmatpush.msra.mxu0 %v2445
        %2460 = vmatpush.msra.mxu0 %v2444
        %2461 = vmatpush.msra.mxu0 %v2443
        %2462 = vmatpush.msra.mxu0 %v2442
        %2463 = vmatmul.f32.gmra.mxu0 %v2234
        %v2464 = vpop.f32.mrf.mxu0
        %v2465 = vadd.f32 %v2446, %v2464
        %2466 = vmatmul.f32.gmra.mxu0 %v2237
        %v2467 = vpop.f32.mrf.mxu0
        %v2468 = vadd.f32 %v2446, %v2467
        %2469 = vmatmul.f32.gmra.mxu0 %v2240
        %v2470 = vpop.f32.mrf.mxu0
        %v2471 = vadd.f32 %v2446, %v2470
        %2472 = vmatmul.f32.gmra.mxu0 %v2243
        %v2473 = vpop.f32.mrf.mxu0
        %v2474 = vadd.f32 %v2446, %v2473
        %2475 = vmatmul.f32.gmra.mxu0 %v2246
        %v2476 = vpop.f32.mrf.mxu0
        %v2477 = vadd.f32 %v2446, %v2476
        %2478 = vmatmul.f32.gmra.mxu0 %v2249
        %v2479 = vpop.f32.mrf.mxu0
        %v2480 = vadd.f32 %v2446, %v2479
        %2481 = vmatmul.f32.gmra.mxu0 %v2252
        %v2482 = vpop.f32.mrf.mxu0
        %v2483 = vadd.f32 %v2446, %v2482
        %2484 = vmatmul.f32.gmra.mxu0 %v2255
        %v2485 = vpop.f32.mrf.mxu0
        %v2486 = vadd.f32 %v2446, %v2485
        %2487 = vmatmul.f32.gmra.mxu0 %v2258
        %v2488 = vpop.f32.mrf.mxu0
        %v2489 = vadd.f32 %v2446, %v2488
        %2490 = vmatmul.f32.gmra.mxu0 %v2261
        %v2491 = vpop.f32.mrf.mxu0
        %v2492 = vadd.f32 %v2446, %v2491
        %2493 = vmatmul.f32.gmra.mxu0 %v2264
        %v2494 = vpop.f32.mrf.mxu0
        %v2495 = vadd.f32 %v2446, %v2494
        %2496 = vmatmul.f32.gmra.mxu0 %v2267
        %v2497 = vpop.f32.mrf.mxu0
        %v2498 = vadd.f32 %v2446, %v2497
        %2499 = vmatmul.f32.gmra.mxu0 %v2270
        %v2500 = vpop.f32.mrf.mxu0
        %v2501 = vadd.f32 %v2446, %v2500
        %2502 = vmatmul.f32.gmra.mxu0 %v2273
        %v2503 = vpop.f32.mrf.mxu0
        %v2504 = vadd.f32 %v2446, %v2503
        %2505 = vmatmul.f32.gmra.mxu0 %v2276
        %v2506 = vpop.f32.mrf.mxu0
        %v2507 = vadd.f32 %v2446, %v2506
        %2508 = vmatmul.f32.gmra.mxu0 %v2279
        %v2509 = vpop.f32.mrf.mxu0
        %v2510 = vadd.f32 %v2446, %v2509
        %2511 = vmatmul.f32.gmra.mxu0 %v2282
        %v2512 = vpop.f32.mrf.mxu0
        %v2513 = vadd.f32 %v2446, %v2512
        %2514 = vmatmul.f32.gmra.mxu0 %v2285
        %v2515 = vpop.f32.mrf.mxu0
        %v2516 = vadd.f32 %v2446, %v2515
        %2517 = vmatmul.f32.gmra.mxu0 %v2288
        %v2518 = vpop.f32.mrf.mxu0
        %v2519 = vadd.f32 %v2446, %v2518
        %2520 = vmatmul.f32.gmra.mxu0 %v2291
        %v2521 = vpop.f32.mrf.mxu0
        %v2522 = vadd.f32 %v2446, %v2521
        %2523 = vmatmul.f32.gmra.mxu0 %v2294
        %v2524 = vpop.f32.mrf.mxu0
        %v2525 = vadd.f32 %v2446, %v2524
        %2526 = vmatmul.f32.gmra.mxu0 %v2297
        %v2527 = vpop.f32.mrf.mxu0
        %v2528 = vadd.f32 %v2446, %v2527
        %2529 = vmatmul.f32.gmra.mxu0 %v2300
        %v2530 = vpop.f32.mrf.mxu0
        %v2531 = vadd.f32 %v2446, %v2530
        %2532 = vmatmul.f32.gmra.mxu0 %v2303
        %v2533 = vpop.f32.mrf.mxu0
        %v2534 = vadd.f32 %v2446, %v2533
        %2535 = vmatmul.f32.gmra.mxu0 %v2306
        %v2536 = vpop.f32.mrf.mxu0
        %v2537 = vadd.f32 %v2446, %v2536
        %2538 = vmatmul.f32.gmra.mxu0 %v2309
        %v2539 = vpop.f32.mrf.mxu0
        %v2540 = vadd.f32 %v2446, %v2539
        %2541 = vmatmul.f32.gmra.mxu0 %v2312
        %v2542 = vpop.f32.mrf.mxu0
        %v2543 = vadd.f32 %v2446, %v2542
        %2544 = vmatmul.f32.gmra.mxu0 %v2315
        %v2545 = vpop.f32.mrf.mxu0
        %v2546 = vadd.f32 %v2446, %v2545
        %2547 = vmatmul.f32.gmra.mxu0 %v2318
        %v2548 = vpop.f32.mrf.mxu0
        %v2549 = vadd.f32 %v2446, %v2548
        %2550 = vmatmul.f32.gmra.mxu0 %v2321
        %v2551 = vpop.f32.mrf.mxu0
        %v2552 = vadd.f32 %v2446, %v2551
        %2553 = vmatmul.f32.gmra.mxu0 %v2324
        %v2554 = vpop.f32.mrf.mxu0
        %v2555 = vadd.f32 %v2446, %v2554
        %2556 = vmatmul.f32.gmra.mxu0 %v2327
        %v2557 = vpop.f32.mrf.mxu0
        %v2558 = vadd.f32 %v2446, %v2557
        %2559 = vdwg.mxu0
        %v2560 = vld [vmem:[#allocation2 + $0x40] sm:$0xff]
        %v2561 = vld [vmem:[#allocation2 + $0x58] sm:$0xff]
        %v2562 = vld [vmem:[#allocation2 + $0x70] sm:$0xff]
        %v2563 = vld [vmem:[#allocation2 + $0x88] sm:$0xff]
        %v2564 = vld [vmem:[%s3 + $0x11] ss:$0 sm:$0xff]
        %2565 = vmatpush.msra.mxu0 0.0
        %2566 = vmatpush.msra.mxu0 0.0
        %2567 = vmatpush.msra.mxu0 0.0
        %2568 = vmatpush.msra.mxu0 0.0
        %2569 = vmatpush.msra.mxu0 0.0
        %2570 = vmatpush.msra.mxu0 0.0
        %2571 = vmatpush.msra.mxu0 0.0
        %2572 = vmatpush.msra.mxu0 0.0
        %2573 = vmatpush.msra.mxu0 0.0
        %2574 = vmatpush.msra.mxu0 0.0
        %2575 = vmatpush.msra.mxu0 0.0
        %2576 = vmatpush.msra.mxu0 0.0
        %2577 = vmatpush.msra.mxu0 %v2563
        %2578 = vmatpush.msra.mxu0 %v2562
        %2579 = vmatpush.msra.mxu0 %v2561
        %2580 = vmatpush.msra.mxu0 %v2560
        %2581 = vmatmul.f32.gmra.mxu0 %v2234
        %v2582 = vpop.f32.mrf.mxu0
        %v2583 = vadd.f32 %v2564, %v2582
        %2584 = vmatmul.f32.gmra.mxu0 %v2237
        %v2585 = vpop.f32.mrf.mxu0
        %v2586 = vadd.f32 %v2564, %v2585
        %2587 = vmatmul.f32.gmra.mxu0 %v2240
        %v2588 = vpop.f32.mrf.mxu0
        %v2589 = vadd.f32 %v2564, %v2588
        %2590 = vmatmul.f32.gmra.mxu0 %v2243
        %v2591 = vpop.f32.mrf.mxu0
        %v2592 = vadd.f32 %v2564, %v2591
        %2593 = vmatmul.f32.gmra.mxu0 %v2246
        %v2594 = vpop.f32.mrf.mxu0
        %v2595 = vadd.f32 %v2564, %v2594
        %2596 = vmatmul.f32.gmra.mxu0 %v2249
        %v2597 = vpop.f32.mrf.mxu0
        %v2598 = vadd.f32 %v2564, %v2597
        %2599 = vmatmul.f32.gmra.mxu0 %v2252
        %v2600 = vpop.f32.mrf.mxu0
        %v2601 = vadd.f32 %v2564, %v2600
        %2602 = vmatmul.f32.gmra.mxu0 %v2255
        %v2603 = vpop.f32.mrf.mxu0
        %v2604 = vadd.f32 %v2564, %v2603
        %2605 = vmatmul.f32.gmra.mxu0 %v2258
        %v2606 = vpop.f32.mrf.mxu0
        %v2607 = vadd.f32 %v2564, %v2606
        %2608 = vmatmul.f32.gmra.mxu0 %v2261
        %v2609 = vpop.f32.mrf.mxu0
        %v2610 = vadd.f32 %v2564, %v2609
        %2611 = vmatmul.f32.gmra.mxu0 %v2264
        %v2612 = vpop.f32.mrf.mxu0
        %v2613 = vadd.f32 %v2564, %v2612
        %2614 = vmatmul.f32.gmra.mxu0 %v2267
        %v2615 = vpop.f32.mrf.mxu0
        %v2616 = vadd.f32 %v2564, %v2615
        %2617 = vmatmul.f32.gmra.mxu0 %v2270
        %v2618 = vpop.f32.mrf.mxu0
        %v2619 = vadd.f32 %v2564, %v2618
        %2620 = vmatmul.f32.gmra.mxu0 %v2273
        %v2621 = vpop.f32.mrf.mxu0
        %v2622 = vadd.f32 %v2564, %v2621
        %2623 = vmatmul.f32.gmra.mxu0 %v2276
        %v2624 = vpop.f32.mrf.mxu0
        %v2625 = vadd.f32 %v2564, %v2624
        %2626 = vmatmul.f32.gmra.mxu0 %v2279
        %v2627 = vpop.f32.mrf.mxu0
        %v2628 = vadd.f32 %v2564, %v2627
        %2629 = vmatmul.f32.gmra.mxu0 %v2282
        %v2630 = vpop.f32.mrf.mxu0
        %v2631 = vadd.f32 %v2564, %v2630
        %2632 = vmatmul.f32.gmra.mxu0 %v2285
        %v2633 = vpop.f32.mrf.mxu0
        %v2634 = vadd.f32 %v2564, %v2633
        %2635 = vmatmul.f32.gmra.mxu0 %v2288
        %v2636 = vpop.f32.mrf.mxu0
        %v2637 = vadd.f32 %v2564, %v2636
        %2638 = vmatmul.f32.gmra.mxu0 %v2291
        %v2639 = vpop.f32.mrf.mxu0
        %v2640 = vadd.f32 %v2564, %v2639
        %2641 = vmatmul.f32.gmra.mxu0 %v2294
        %v2642 = vpop.f32.mrf.mxu0
        %v2643 = vadd.f32 %v2564, %v2642
        %2644 = vmatmul.f32.gmra.mxu0 %v2297
        %v2645 = vpop.f32.mrf.mxu0
        %v2646 = vadd.f32 %v2564, %v2645
        %2647 = vmatmul.f32.gmra.mxu0 %v2300
        %v2648 = vpop.f32.mrf.mxu0
        %v2649 = vadd.f32 %v2564, %v2648
        %2650 = vmatmul.f32.gmra.mxu0 %v2303
        %v2651 = vpop.f32.mrf.mxu0
        %v2652 = vadd.f32 %v2564, %v2651
        %2653 = vmatmul.f32.gmra.mxu0 %v2306
        %v2654 = vpop.f32.mrf.mxu0
        %v2655 = vadd.f32 %v2564, %v2654
        %2656 = vmatmul.f32.gmra.mxu0 %v2309
        %v2657 = vpop.f32.mrf.mxu0
        %v2658 = vadd.f32 %v2564, %v2657
        %2659 = vmatmul.f32.gmra.mxu0 %v2312
        %v2660 = vpop.f32.mrf.mxu0
        %v2661 = vadd.f32 %v2564, %v2660
        %2662 = vmatmul.f32.gmra.mxu0 %v2315
        %v2663 = vpop.f32.mrf.mxu0
        %v2664 = vadd.f32 %v2564, %v2663
        %2665 = vmatmul.f32.gmra.mxu0 %v2318
        %v2666 = vpop.f32.mrf.mxu0
        %v2667 = vadd.f32 %v2564, %v2666
        %2668 = vmatmul.f32.gmra.mxu0 %v2321
        %v2669 = vpop.f32.mrf.mxu0
        %v2670 = vadd.f32 %v2564, %v2669
        %2671 = vmatmul.f32.gmra.mxu0 %v2324
        %v2672 = vpop.f32.mrf.mxu0
        %v2673 = vadd.f32 %v2564, %v2672
        %2674 = vmatmul.f32.gmra.mxu0 %v2327
        %v2675 = vpop.f32.mrf.mxu0
        %v2676 = vadd.f32 %v2564, %v2675
        %2677 = vdwg.mxu0
        %v2679 = vsel %vm757, %v2347, 0
        %v2682 = vsel %vm757, %v2350, 0
        %v2685 = vsel %vm757, %v2353, 0
        %v2688 = vsel %vm757, %v2356, 0
        %v2691 = vsel %vm757, %v2465, 0
        %v2694 = vsel %vm757, %v2468, 0
        %v2697 = vsel %vm757, %v2471, 0
        %v2700 = vsel %vm757, %v2474, 0
        %2702 = vmatpush.xpose.msra.mxu0 0.0
        %2703 = vmatpush.xpose.msra.mxu0 0.0
        %2704 = vmatpush.xpose.msra.mxu0 0.0
        %2705 = vmatpush.xpose.msra.mxu0 0.0
        %2706 = vmatpush.xpose.msra.mxu0 0.0
        %2707 = vmatpush.xpose.msra.mxu0 0.0
        %2708 = vmatpush.xpose.msra.mxu0 0.0
        %2709 = vmatpush.xpose.msra.mxu0 0.0
        %2710 = vmatpush.xpose.msra.mxu0 0.0
        %2711 = vmatpush.xpose.msra.mxu0 0.0
        %2712 = vmatpush.xpose.msra.mxu0 0.0
        %2713 = vmatpush.xpose.msra.mxu0 0.0
        %2714 = vmatpush.xpose.msra.mxu0 %v2700
        %2715 = vmatpush.xpose.msra.mxu0 %v2697
        %2716 = vmatpush.xpose.msra.mxu0 %v2694
        %2717 = vmatpush.xpose.msra.mxu0 %v2691
        %2718 = vmatmul.f32.gmra.mxu0 %v2679
        %v2719 = vpop.f32.mrf.mxu0
        %v2720 = vadd.f32 0.0, %v2719
        %2721 = vmatmul.f32.gmra.mxu0 %v2682
        %v2722 = vpop.f32.mrf.mxu0
        %v2723 = vadd.f32 0.0, %v2722
        %2724 = vmatmul.f32.gmra.mxu0 %v2685
        %v2725 = vpop.f32.mrf.mxu0
        %v2726 = vadd.f32 0.0, %v2725
        %2727 = vmatmul.f32.gmra.mxu0 %v2688
        %v2728 = vpop.f32.mrf.mxu0
        %v2729 = vadd.f32 0.0, %v2728
        %2730 = vdwg.mxu0
        %v2732 = vsel %vm757, %v2359, 0
        %v2735 = vsel %vm757, %v2362, 0
        %v2738 = vsel %vm757, %v2365, 0
        %v2741 = vsel %vm757, %v2368, 0
        %v2744 = vsel %vm757, %v2477, 0
        %v2747 = vsel %vm757, %v2480, 0
        %v2750 = vsel %vm757, %v2483, 0
        %v2753 = vsel %vm757, %v2486, 0
        %2755 = vmatpush.xpose.msra.mxu0 0.0
        %2756 = vmatpush.xpose.msra.mxu0 0.0
        %2757 = vmatpush.xpose.msra.mxu0 0.0
        %2758 = vmatpush.xpose.msra.mxu0 0.0
        %2759 = vmatpush.xpose.msra.mxu0 0.0
        %2760 = vmatpush.xpose.msra.mxu0 0.0
        %2761 = vmatpush.xpose.msra.mxu0 0.0
        %2762 = vmatpush.xpose.msra.mxu0 0.0
        %2763 = vmatpush.xpose.msra.mxu0 0.0
        %2764 = vmatpush.xpose.msra.mxu0 0.0
        %2765 = vmatpush.xpose.msra.mxu0 0.0
        %2766 = vmatpush.xpose.msra.mxu0 0.0
        %2767 = vmatpush.xpose.msra.mxu0 %v2753
        %2768 = vmatpush.xpose.msra.mxu0 %v2750
        %2769 = vmatpush.xpose.msra.mxu0 %v2747
        %2770 = vmatpush.xpose.msra.mxu0 %v2744
        %2771 = vmatmul.f32.gmra.mxu0 %v2732
        %v2772 = vpop.f32.mrf.mxu0
        %v2773 = vadd.f32 0.0, %v2772
        %2774 = vmatmul.f32.gmra.mxu0 %v2735
        %v2775 = vpop.f32.mrf.mxu0
        %v2776 = vadd.f32 0.0, %v2775
        %2777 = vmatmul.f32.gmra.mxu0 %v2738
        %v2778 = vpop.f32.mrf.mxu0
        %v2779 = vadd.f32 0.0, %v2778
        %2780 = vmatmul.f32.gmra.mxu0 %v2741
        %v2781 = vpop.f32.mrf.mxu0
        %v2782 = vadd.f32 0.0, %v2781
        %2783 = vdwg.mxu0
        %v2785 = vsel %vm757, %v2371, 0
        %v2788 = vsel %vm757, %v2374, 0
        %v2791 = vsel %vm757, %v2377, 0
        %v2794 = vsel %vm757, %v2380, 0
        %v2797 = vsel %vm757, %v2489, 0
        %v2800 = vsel %vm757, %v2492, 0
        %v2803 = vsel %vm757, %v2495, 0
        %v2806 = vsel %vm757, %v2498, 0
        %2808 = vmatpush.xpose.msra.mxu0 0.0
        %2809 = vmatpush.xpose.msra.mxu0 0.0
        %2810 = vmatpush.xpose.msra.mxu0 0.0
        %2811 = vmatpush.xpose.msra.mxu0 0.0
        %2812 = vmatpush.xpose.msra.mxu0 0.0
        %2813 = vmatpush.xpose.msra.mxu0 0.0
        %2814 = vmatpush.xpose.msra.mxu0 0.0
        %2815 = vmatpush.xpose.msra.mxu0 0.0
        %2816 = vmatpush.xpose.msra.mxu0 0.0
        %2817 = vmatpush.xpose.msra.mxu0 0.0
        %2818 = vmatpush.xpose.msra.mxu0 0.0
        %2819 = vmatpush.xpose.msra.mxu0 0.0
        %2820 = vmatpush.xpose.msra.mxu0 %v2806
        %2821 = vmatpush.xpose.msra.mxu0 %v2803
        %2822 = vmatpush.xpose.msra.mxu0 %v2800
        %2823 = vmatpush.xpose.msra.mxu0 %v2797
        %2824 = vmatmul.f32.gmra.mxu0 %v2785
        %v2825 = vpop.f32.mrf.mxu0
        %v2826 = vadd.f32 0.0, %v2825
        %2827 = vmatmul.f32.gmra.mxu0 %v2788
        %v2828 = vpop.f32.mrf.mxu0
        %v2829 = vadd.f32 0.0, %v2828
        %2830 = vmatmul.f32.gmra.mxu0 %v2791
        %v2831 = vpop.f32.mrf.mxu0
        %v2832 = vadd.f32 0.0, %v2831
        %2833 = vmatmul.f32.gmra.mxu0 %v2794
        %v2834 = vpop.f32.mrf.mxu0
        %v2835 = vadd.f32 0.0, %v2834
        %2836 = vdwg.mxu0
        %v2838 = vsel %vm757, %v2383, 0
        %v2841 = vsel %vm757, %v2386, 0
        %v2844 = vsel %vm757, %v2389, 0
        %v2847 = vsel %vm757, %v2392, 0
        %v2850 = vsel %vm757, %v2501, 0
        %v2853 = vsel %vm757, %v2504, 0
        %v2856 = vsel %vm757, %v2507, 0
        %v2859 = vsel %vm757, %v2510, 0
        %2861 = vmatpush.xpose.msra.mxu0 0.0
        %2862 = vmatpush.xpose.msra.mxu0 0.0
        %2863 = vmatpush.xpose.msra.mxu0 0.0
        %2864 = vmatpush.xpose.msra.mxu0 0.0
        %2865 = vmatpush.xpose.msra.mxu0 0.0
        %2866 = vmatpush.xpose.msra.mxu0 0.0
        %2867 = vmatpush.xpose.msra.mxu0 0.0
        %2868 = vmatpush.xpose.msra.mxu0 0.0
        %2869 = vmatpush.xpose.msra.mxu0 0.0
        %2870 = vmatpush.xpose.msra.mxu0 0.0
        %2871 = vmatpush.xpose.msra.mxu0 0.0
        %2872 = vmatpush.xpose.msra.mxu0 0.0
        %2873 = vmatpush.xpose.msra.mxu0 %v2859
        %2874 = vmatpush.xpose.msra.mxu0 %v2856
        %2875 = vmatpush.xpose.msra.mxu0 %v2853
        %2876 = vmatpush.xpose.msra.mxu0 %v2850
        %2877 = vmatmul.f32.gmra.mxu0 %v2838
        %v2878 = vpop.f32.mrf.mxu0
        %v2879 = vadd.f32 0.0, %v2878
        %2880 = vmatmul.f32.gmra.mxu0 %v2841
        %v2881 = vpop.f32.mrf.mxu0
        %v2882 = vadd.f32 0.0, %v2881
        %2883 = vmatmul.f32.gmra.mxu0 %v2844
        %v2884 = vpop.f32.mrf.mxu0
        %v2885 = vadd.f32 0.0, %v2884
        %2886 = vmatmul.f32.gmra.mxu0 %v2847
        %v2887 = vpop.f32.mrf.mxu0
        %v2888 = vadd.f32 0.0, %v2887
        %2889 = vdwg.mxu0
        %v2891 = vsel %vm757, %v2395, 0
        %v2894 = vsel %vm757, %v2398, 0
        %v2897 = vsel %vm757, %v2401, 0
        %v2900 = vsel %vm757, %v2404, 0
        %v2903 = vsel %vm757, %v2513, 0
        %v2906 = vsel %vm757, %v2516, 0
        %v2909 = vsel %vm757, %v2519, 0
        %v2912 = vsel %vm757, %v2522, 0
        %2914 = vmatpush.xpose.msra.mxu0 0.0
        %2915 = vmatpush.xpose.msra.mxu0 0.0
        %2916 = vmatpush.xpose.msra.mxu0 0.0
        %2917 = vmatpush.xpose.msra.mxu0 0.0
        %2918 = vmatpush.xpose.msra.mxu0 0.0
        %2919 = vmatpush.xpose.msra.mxu0 0.0
        %2920 = vmatpush.xpose.msra.mxu0 0.0
        %2921 = vmatpush.xpose.msra.mxu0 0.0
        %2922 = vmatpush.xpose.msra.mxu0 0.0
        %2923 = vmatpush.xpose.msra.mxu0 0.0
        %2924 = vmatpush.xpose.msra.mxu0 0.0
        %2925 = vmatpush.xpose.msra.mxu0 0.0
        %2926 = vmatpush.xpose.msra.mxu0 %v2912
        %2927 = vmatpush.xpose.msra.mxu0 %v2909
        %2928 = vmatpush.xpose.msra.mxu0 %v2906
        %2929 = vmatpush.xpose.msra.mxu0 %v2903
        %2930 = vmatmul.f32.gmra.mxu0 %v2891
        %v2931 = vpop.f32.mrf.mxu0
        %v2932 = vadd.f32 0.0, %v2931
        %2933 = vmatmul.f32.gmra.mxu0 %v2894
        %v2934 = vpop.f32.mrf.mxu0
        %v2935 = vadd.f32 0.0, %v2934
        %2936 = vmatmul.f32.gmra.mxu0 %v2897
        %v2937 = vpop.f32.mrf.mxu0
        %v2938 = vadd.f32 0.0, %v2937
        %2939 = vmatmul.f32.gmra.mxu0 %v2900
        %v2940 = vpop.f32.mrf.mxu0
        %v2941 = vadd.f32 0.0, %v2940
        %2942 = vdwg.mxu0
        %v2944 = vsel %vm757, %v2407, 0
        %v2947 = vsel %vm757, %v2410, 0
        %v2950 = vsel %vm757, %v2413, 0
        %v2953 = vsel %vm757, %v2416, 0
        %v2956 = vsel %vm757, %v2525, 0
        %v2959 = vsel %vm757, %v2528, 0
        %v2962 = vsel %vm757, %v2531, 0
        %v2965 = vsel %vm757, %v2534, 0
        %2967 = vmatpush.xpose.msra.mxu0 0.0
        %2968 = vmatpush.xpose.msra.mxu0 0.0
        %2969 = vmatpush.xpose.msra.mxu0 0.0
        %2970 = vmatpush.xpose.msra.mxu0 0.0
        %2971 = vmatpush.xpose.msra.mxu0 0.0
        %2972 = vmatpush.xpose.msra.mxu0 0.0
        %2973 = vmatpush.xpose.msra.mxu0 0.0
        %2974 = vmatpush.xpose.msra.mxu0 0.0
        %2975 = vmatpush.xpose.msra.mxu0 0.0
        %2976 = vmatpush.xpose.msra.mxu0 0.0
        %2977 = vmatpush.xpose.msra.mxu0 0.0
        %2978 = vmatpush.xpose.msra.mxu0 0.0
        %2979 = vmatpush.xpose.msra.mxu0 %v2965
        %2980 = vmatpush.xpose.msra.mxu0 %v2962
        %2981 = vmatpush.xpose.msra.mxu0 %v2959
        %2982 = vmatpush.xpose.msra.mxu0 %v2956
        %2983 = vmatmul.f32.gmra.mxu0 %v2944
        %v2984 = vpop.f32.mrf.mxu0
        %v2985 = vadd.f32 0.0, %v2984
        %2986 = vmatmul.f32.gmra.mxu0 %v2947
        %v2987 = vpop.f32.mrf.mxu0
        %v2988 = vadd.f32 0.0, %v2987
        %2989 = vmatmul.f32.gmra.mxu0 %v2950
        %v2990 = vpop.f32.mrf.mxu0
        %v2991 = vadd.f32 0.0, %v2990
        %2992 = vmatmul.f32.gmra.mxu0 %v2953
        %v2993 = vpop.f32.mrf.mxu0
        %v2994 = vadd.f32 0.0, %v2993
        %2995 = vdwg.mxu0
        %v2997 = vsel %vm757, %v2419, 0
        %v3000 = vsel %vm757, %v2422, 0
        %v3003 = vsel %vm757, %v2425, 0
        %v3006 = vsel %vm757, %v2428, 0
        %v3009 = vsel %vm757, %v2537, 0
        %v3012 = vsel %vm757, %v2540, 0
        %v3015 = vsel %vm757, %v2543, 0
        %v3018 = vsel %vm757, %v2546, 0
        %3020 = vmatpush.xpose.msra.mxu0 0.0
        %3021 = vmatpush.xpose.msra.mxu0 0.0
        %3022 = vmatpush.xpose.msra.mxu0 0.0
        %3023 = vmatpush.xpose.msra.mxu0 0.0
        %3024 = vmatpush.xpose.msra.mxu0 0.0
        %3025 = vmatpush.xpose.msra.mxu0 0.0
        %3026 = vmatpush.xpose.msra.mxu0 0.0
        %3027 = vmatpush.xpose.msra.mxu0 0.0
        %3028 = vmatpush.xpose.msra.mxu0 0.0
        %3029 = vmatpush.xpose.msra.mxu0 0.0
        %3030 = vmatpush.xpose.msra.mxu0 0.0
        %3031 = vmatpush.xpose.msra.mxu0 0.0
        %3032 = vmatpush.xpose.msra.mxu0 %v3018
        %3033 = vmatpush.xpose.msra.mxu0 %v3015
        %3034 = vmatpush.xpose.msra.mxu0 %v3012
        %3035 = vmatpush.xpose.msra.mxu0 %v3009
        %3036 = vmatmul.f32.gmra.mxu0 %v2997
        %v3037 = vpop.f32.mrf.mxu0
        %v3038 = vadd.f32 0.0, %v3037
        %3039 = vmatmul.f32.gmra.mxu0 %v3000
        %v3040 = vpop.f32.mrf.mxu0
        %v3041 = vadd.f32 0.0, %v3040
        %3042 = vmatmul.f32.gmra.mxu0 %v3003
        %v3043 = vpop.f32.mrf.mxu0
        %v3044 = vadd.f32 0.0, %v3043
        %3045 = vmatmul.f32.gmra.mxu0 %v3006
        %v3046 = vpop.f32.mrf.mxu0
        %v3047 = vadd.f32 0.0, %v3046
        %3048 = vdwg.mxu0
        %v3050 = vsel %vm757, %v2431, 0
        %v3053 = vsel %vm757, %v2434, 0
        %v3056 = vsel %vm757, %v2437, 0
        %v3059 = vsel %vm757, %v2440, 0
        %v3062 = vsel %vm757, %v2549, 0
        %v3065 = vsel %vm757, %v2552, 0
        %v3068 = vsel %vm757, %v2555, 0
        %v3071 = vsel %vm757, %v2558, 0
        %3073 = vmatpush.xpose.msra.mxu0 0.0
        %3074 = vmatpush.xpose.msra.mxu0 0.0
        %3075 = vmatpush.xpose.msra.mxu0 0.0
        %3076 = vmatpush.xpose.msra.mxu0 0.0
        %3077 = vmatpush.xpose.msra.mxu0 0.0
        %3078 = vmatpush.xpose.msra.mxu0 0.0
        %3079 = vmatpush.xpose.msra.mxu0 0.0
        %3080 = vmatpush.xpose.msra.mxu0 0.0
        %3081 = vmatpush.xpose.msra.mxu0 0.0
        %3082 = vmatpush.xpose.msra.mxu0 0.0
        %3083 = vmatpush.xpose.msra.mxu0 0.0
        %3084 = vmatpush.xpose.msra.mxu0 0.0
        %3085 = vmatpush.xpose.msra.mxu0 %v3071
        %3086 = vmatpush.xpose.msra.mxu0 %v3068
        %3087 = vmatpush.xpose.msra.mxu0 %v3065
        %3088 = vmatpush.xpose.msra.mxu0 %v3062
        %3089 = vmatmul.f32.gmra.mxu0 %v3050
        %v3090 = vpop.f32.mrf.mxu0
        %v3091 = vadd.f32 0.0, %v3090
        %3092 = vmatmul.f32.gmra.mxu0 %v3053
        %v3093 = vpop.f32.mrf.mxu0
        %v3094 = vadd.f32 0.0, %v3093
        %3095 = vmatmul.f32.gmra.mxu0 %v3056
        %v3096 = vpop.f32.mrf.mxu0
        %v3097 = vadd.f32 0.0, %v3096
        %3098 = vmatmul.f32.gmra.mxu0 %v3059
        %v3099 = vpop.f32.mrf.mxu0
        %v3100 = vadd.f32 0.0, %v3099
        %3101 = vdwg.mxu0
        %v3102 = vsel %vm757, %v2720, -inf
        %3103 = vmax.xlane.f32.xlu0 %v3102
        %v3104 = vpop.xlane.xlu0 %3103
        %v3105 = vsel %vm757, %v2723, -inf
        %3106 = vmax.xlane.f32.xlu0 %v3105
        %v3107 = vpop.xlane.xlu0 %3106
        %v3108 = vsel %vm757, %v2726, -inf
        %3109 = vmax.xlane.f32.xlu0 %v3108
        %v3110 = vpop.xlane.xlu0 %3109
        %v3111 = vsel %vm757, %v2729, -inf
        %3112 = vmax.xlane.f32.xlu0 %v3111
        %v3113 = vpop.xlane.xlu0 %3112
        %v3114 = vsel %vm757, %v2773, -inf
        %3115 = vmax.xlane.f32.xlu0 %v3114
        %v3116 = vpop.xlane.xlu0 %3115
        %v3117 = vsel %vm757, %v2776, -inf
        %3118 = vmax.xlane.f32.xlu0 %v3117
        %v3119 = vpop.xlane.xlu0 %3118
        %v3120 = vsel %vm757, %v2779, -inf
        %3121 = vmax.xlane.f32.xlu0 %v3120
        %v3122 = vpop.xlane.xlu0 %3121
        %v3123 = vsel %vm757, %v2782, -inf
        %3124 = vmax.xlane.f32.xlu0 %v3123
        %v3125 = vpop.xlane.xlu0 %3124
        %v3126 = vsel %vm757, %v2826, -inf
        %3127 = vmax.xlane.f32.xlu0 %v3126
        %v3128 = vpop.xlane.xlu0 %3127
        %v3129 = vsel %vm757, %v2829, -inf
        %3130 = vmax.xlane.f32.xlu0 %v3129
        %v3131 = vpop.xlane.xlu0 %3130
        %v3132 = vsel %vm757, %v2832, -inf
        %3133 = vmax.xlane.f32.xlu0 %v3132
        %v3134 = vpop.xlane.xlu0 %3133
        %v3135 = vsel %vm757, %v2835, -inf
        %3136 = vmax.xlane.f32.xlu0 %v3135
        %v3137 = vpop.xlane.xlu0 %3136
        %v3138 = vsel %vm757, %v2879, -inf
        %3139 = vmax.xlane.f32.xlu0 %v3138
        %v3140 = vpop.xlane.xlu0 %3139
        %v3141 = vsel %vm757, %v2882, -inf
        %3142 = vmax.xlane.f32.xlu0 %v3141
        %v3143 = vpop.xlane.xlu0 %3142
        %v3144 = vsel %vm757, %v2885, -inf
        %3145 = vmax.xlane.f32.xlu0 %v3144
        %v3146 = vpop.xlane.xlu0 %3145
        %v3147 = vsel %vm757, %v2888, -inf
        %3148 = vmax.xlane.f32.xlu0 %v3147
        %v3149 = vpop.xlane.xlu0 %3148
        %v3150 = vsel %vm757, %v2932, -inf
        %3151 = vmax.xlane.f32.xlu0 %v3150
        %v3152 = vpop.xlane.xlu0 %3151
        %v3153 = vsel %vm757, %v2935, -inf
        %3154 = vmax.xlane.f32.xlu0 %v3153
        %v3155 = vpop.xlane.xlu0 %3154
        %v3156 = vsel %vm757, %v2938, -inf
        %3157 = vmax.xlane.f32.xlu0 %v3156
        %v3158 = vpop.xlane.xlu0 %3157
        %v3159 = vsel %vm757, %v2941, -inf
        %3160 = vmax.xlane.f32.xlu0 %v3159
        %v3161 = vpop.xlane.xlu0 %3160
        %v3162 = vsel %vm757, %v2985, -inf
        %3163 = vmax.xlane.f32.xlu0 %v3162
        %v3164 = vpop.xlane.xlu0 %3163
        %v3165 = vsel %vm757, %v2988, -inf
        %3166 = vmax.xlane.f32.xlu0 %v3165
        %v3167 = vpop.xlane.xlu0 %3166
        %v3168 = vsel %vm757, %v2991, -inf
        %3169 = vmax.xlane.f32.xlu0 %v3168
        %v3170 = vpop.xlane.xlu0 %3169
        %v3171 = vsel %vm757, %v2994, -inf
        %3172 = vmax.xlane.f32.xlu0 %v3171
        %v3173 = vpop.xlane.xlu0 %3172
        %v3174 = vsel %vm757, %v3038, -inf
        %3175 = vmax.xlane.f32.xlu0 %v3174
        %v3176 = vpop.xlane.xlu0 %3175
        %v3177 = vsel %vm757, %v3041, -inf
        %3178 = vmax.xlane.f32.xlu0 %v3177
        %v3179 = vpop.xlane.xlu0 %3178
        %v3180 = vsel %vm757, %v3044, -inf
        %3181 = vmax.xlane.f32.xlu0 %v3180
        %v3182 = vpop.xlane.xlu0 %3181
        %v3183 = vsel %vm757, %v3047, -inf
        %3184 = vmax.xlane.f32.xlu0 %v3183
        %v3185 = vpop.xlane.xlu0 %3184
        %v3186 = vsel %vm757, %v3091, -inf
        %3187 = vmax.xlane.f32.xlu0 %v3186
        %v3188 = vpop.xlane.xlu0 %3187
        %v3189 = vsel %vm757, %v3094, -inf
        %3190 = vmax.xlane.f32.xlu0 %v3189
        %v3191 = vpop.xlane.xlu0 %3190
        %v3192 = vsel %vm757, %v3097, -inf
        %3193 = vmax.xlane.f32.xlu0 %v3192
        %v3194 = vpop.xlane.xlu0 %3193
        %v3195 = vsel %vm757, %v3100, -inf
        %3196 = vmax.xlane.f32.xlu0 %v3195
        %v3197 = vpop.xlane.xlu0 %3196
        %v3198 = vsub.f32 %v2720, %v3104
        %v3199 = vsub.f32 %v2723, %v3107
        %v3200 = vsub.f32 %v2726, %v3110
        %v3201 = vsub.f32 %v2729, %v3113
        %v3202 = vsub.f32 %v2773, %v3116
        %v3203 = vsub.f32 %v2776, %v3119
        %v3204 = vsub.f32 %v2779, %v3122
        %v3205 = vsub.f32 %v2782, %v3125
        %v3206 = vsub.f32 %v2826, %v3128
        %v3207 = vsub.f32 %v2829, %v3131
        %v3208 = vsub.f32 %v2832, %v3134
        %v3209 = vsub.f32 %v2835, %v3137
        %v3210 = vsub.f32 %v2879, %v3140
        %v3211 = vsub.f32 %v2882, %v3143
        %v3212 = vsub.f32 %v2885, %v3146
        %v3213 = vsub.f32 %v2888, %v3149
        %v3214 = vsub.f32 %v2932, %v3152
        %v3215 = vsub.f32 %v2935, %v3155
        %v3216 = vsub.f32 %v2938, %v3158
        %v3217 = vsub.f32 %v2941, %v3161
        %v3218 = vsub.f32 %v2985, %v3164
        %v3219 = vsub.f32 %v2988, %v3167
        %v3220 = vsub.f32 %v2991, %v3170
        %v3221 = vsub.f32 %v2994, %v3173
        %v3222 = vsub.f32 %v3038, %v3176
        %v3223 = vsub.f32 %v3041, %v3179
        %v3224 = vsub.f32 %v3044, %v3182
        %v3225 = vsub.f32 %v3047, %v3185
        %v3226 = vsub.f32 %v3091, %v3188
        %v3227 = vsub.f32 %v3094, %v3191
        %v3228 = vsub.f32 %v3097, %v3194
        %v3229 = vsub.f32 %v3100, %v3197
        %v3230 = vmul.f32 %v3198, 1.442695
        %v3231 = vpow.pop %v3230
        %v3232 = vmul.f32 %v3199, 1.442695
        %v3233 = vpow.pop %v3232
        %v3234 = vmul.f32 %v3200, 1.442695
        %v3235 = vpow.pop %v3234
        %v3236 = vmul.f32 %v3201, 1.442695
        %v3237 = vpow.pop %v3236
        %v3238 = vmul.f32 %v3202, 1.442695
        %v3239 = vpow.pop %v3238
        %v3240 = vmul.f32 %v3203, 1.442695
        %v3241 = vpow.pop %v3240
        %v3242 = vmul.f32 %v3204, 1.442695
        %v3243 = vpow.pop %v3242
        %v3244 = vmul.f32 %v3205, 1.442695
        %v3245 = vpow.pop %v3244
        %v3246 = vmul.f32 %v3206, 1.442695
        %v3247 = vpow.pop %v3246
        %v3248 = vmul.f32 %v3207, 1.442695
        %v3249 = vpow.pop %v3248
        %v3250 = vmul.f32 %v3208, 1.442695
        %v3251 = vpow.pop %v3250
        %v3252 = vmul.f32 %v3209, 1.442695
        %v3253 = vpow.pop %v3252
        %v3254 = vmul.f32 %v3210, 1.442695
        %v3255 = vpow.pop %v3254
        %v3256 = vmul.f32 %v3211, 1.442695
        %v3257 = vpow.pop %v3256
        %v3258 = vmul.f32 %v3212, 1.442695
        %v3259 = vpow.pop %v3258
        %v3260 = vmul.f32 %v3213, 1.442695
        %v3261 = vpow.pop %v3260
        %v3262 = vmul.f32 %v3214, 1.442695
        %v3263 = vpow.pop %v3262
        %v3264 = vmul.f32 %v3215, 1.442695
        %v3265 = vpow.pop %v3264
        %v3266 = vmul.f32 %v3216, 1.442695
        %v3267 = vpow.pop %v3266
        %v3268 = vmul.f32 %v3217, 1.442695
        %v3269 = vpow.pop %v3268
        %v3270 = vmul.f32 %v3218, 1.442695
        %v3271 = vpow.pop %v3270
        %v3272 = vmul.f32 %v3219, 1.442695
        %v3273 = vpow.pop %v3272
        %v3274 = vmul.f32 %v3220, 1.442695
        %v3275 = vpow.pop %v3274
        %v3276 = vmul.f32 %v3221, 1.442695
        %v3277 = vpow.pop %v3276
        %v3278 = vmul.f32 %v3222, 1.442695
        %v3279 = vpow.pop %v3278
        %v3280 = vmul.f32 %v3223, 1.442695
        %v3281 = vpow.pop %v3280
        %v3282 = vmul.f32 %v3224, 1.442695
        %v3283 = vpow.pop %v3282
        %v3284 = vmul.f32 %v3225, 1.442695
        %v3285 = vpow.pop %v3284
        %v3286 = vmul.f32 %v3226, 1.442695
        %v3287 = vpow.pop %v3286
        %v3288 = vmul.f32 %v3227, 1.442695
        %v3289 = vpow.pop %v3288
        %v3290 = vmul.f32 %v3228, 1.442695
        %v3291 = vpow.pop %v3290
        %v3292 = vmul.f32 %v3229, 1.442695
        %v3293 = vpow.pop %v3292
        %v3294 = vsel %vm757, %v3231, 0.0
        %3295 = vadd.xlane.f32.xlu0 %v3294
        %v3296 = vpop.xlane.xlu0 %3295
        %v3297 = vsel %vm757, %v3233, 0.0
        %3298 = vadd.xlane.f32.xlu0 %v3297
        %v3299 = vpop.xlane.xlu0 %3298
        %v3300 = vsel %vm757, %v3235, 0.0
        %3301 = vadd.xlane.f32.xlu0 %v3300
        %v3302 = vpop.xlane.xlu0 %3301
        %v3303 = vsel %vm757, %v3237, 0.0
        %3304 = vadd.xlane.f32.xlu0 %v3303
        %v3305 = vpop.xlane.xlu0 %3304
        %v3306 = vsel %vm757, %v3239, 0.0
        %3307 = vadd.xlane.f32.xlu0 %v3306
        %v3308 = vpop.xlane.xlu0 %3307
        %v3309 = vsel %vm757, %v3241, 0.0
        %3310 = vadd.xlane.f32.xlu0 %v3309
        %v3311 = vpop.xlane.xlu0 %3310
        %v3312 = vsel %vm757, %v3243, 0.0
        %3313 = vadd.xlane.f32.xlu0 %v3312
        %v3314 = vpop.xlane.xlu0 %3313
        %v3315 = vsel %vm757, %v3245, 0.0
        %3316 = vadd.xlane.f32.xlu0 %v3315
        %v3317 = vpop.xlane.xlu0 %3316
        %v3318 = vsel %vm757, %v3247, 0.0
        %3319 = vadd.xlane.f32.xlu0 %v3318
        %v3320 = vpop.xlane.xlu0 %3319
        %v3321 = vsel %vm757, %v3249, 0.0
        %3322 = vadd.xlane.f32.xlu0 %v3321
        %v3323 = vpop.xlane.xlu0 %3322
        %v3324 = vsel %vm757, %v3251, 0.0
        %3325 = vadd.xlane.f32.xlu0 %v3324
        %v3326 = vpop.xlane.xlu0 %3325
        %v3327 = vsel %vm757, %v3253, 0.0
        %3328 = vadd.xlane.f32.xlu0 %v3327
        %v3329 = vpop.xlane.xlu0 %3328
        %v3330 = vsel %vm757, %v3255, 0.0
        %3331 = vadd.xlane.f32.xlu0 %v3330
        %v3332 = vpop.xlane.xlu0 %3331
        %v3333 = vsel %vm757, %v3257, 0.0
        %3334 = vadd.xlane.f32.xlu0 %v3333
        %v3335 = vpop.xlane.xlu0 %3334
        %v3336 = vsel %vm757, %v3259, 0.0
        %3337 = vadd.xlane.f32.xlu0 %v3336
        %v3338 = vpop.xlane.xlu0 %3337
        %v3339 = vsel %vm757, %v3261, 0.0
        %3340 = vadd.xlane.f32.xlu0 %v3339
        %v3341 = vpop.xlane.xlu0 %3340
        %v3342 = vsel %vm757, %v3263, 0.0
        %3343 = vadd.xlane.f32.xlu0 %v3342
        %v3344 = vpop.xlane.xlu0 %3343
        %v3345 = vsel %vm757, %v3265, 0.0
        %3346 = vadd.xlane.f32.xlu0 %v3345
        %v3347 = vpop.xlane.xlu0 %3346
        %v3348 = vsel %vm757, %v3267, 0.0
        %3349 = vadd.xlane.f32.xlu0 %v3348
        %v3350 = vpop.xlane.xlu0 %3349
        %v3351 = vsel %vm757, %v3269, 0.0
        %3352 = vadd.xlane.f32.xlu0 %v3351
        %v3353 = vpop.xlane.xlu0 %3352
        %v3354 = vsel %vm757, %v3271, 0.0
        %3355 = vadd.xlane.f32.xlu0 %v3354
        %v3356 = vpop.xlane.xlu0 %3355
        %v3357 = vsel %vm757, %v3273, 0.0
        %3358 = vadd.xlane.f32.xlu0 %v3357
        %v3359 = vpop.xlane.xlu0 %3358
        %v3360 = vsel %vm757, %v3275, 0.0
        %3361 = vadd.xlane.f32.xlu0 %v3360
        %v3362 = vpop.xlane.xlu0 %3361
        %v3363 = vsel %vm757, %v3277, 0.0
        %3364 = vadd.xlane.f32.xlu0 %v3363
        %v3365 = vpop.xlane.xlu0 %3364
        %v3366 = vsel %vm757, %v3279, 0.0
        %3367 = vadd.xlane.f32.xlu0 %v3366
        %v3368 = vpop.xlane.xlu0 %3367
        %v3369 = vsel %vm757, %v3281, 0.0
        %3370 = vadd.xlane.f32.xlu0 %v3369
        %v3371 = vpop.xlane.xlu0 %3370
        %v3372 = vsel %vm757, %v3283, 0.0
        %3373 = vadd.xlane.f32.xlu0 %v3372
        %v3374 = vpop.xlane.xlu0 %3373
        %v3375 = vsel %vm757, %v3285, 0.0
        %3376 = vadd.xlane.f32.xlu0 %v3375
        %v3377 = vpop.xlane.xlu0 %3376
        %v3378 = vsel %vm757, %v3287, 0.0
        %3379 = vadd.xlane.f32.xlu0 %v3378
        %v3380 = vpop.xlane.xlu0 %3379
        %v3381 = vsel %vm757, %v3289, 0.0
        %3382 = vadd.xlane.f32.xlu0 %v3381
        %v3383 = vpop.xlane.xlu0 %3382
        %v3384 = vsel %vm757, %v3291, 0.0
        %3385 = vadd.xlane.f32.xlu0 %v3384
        %v3386 = vpop.xlane.xlu0 %3385
        %v3387 = vsel %vm757, %v3293, 0.0
        %3388 = vadd.xlane.f32.xlu0 %v3387
        %v3389 = vpop.xlane.xlu0 %3388
        %v3390 = vrcp.pop %v3296
        %v3391 = vmul.f32 %v3296, %v3390
        %v3392 = vsub.f32 1.0, %v3391
        %v3393 = vmul.f32 %v3390, %v3392
        %v3394 = vadd.f32 %v3390, %v3393
        %vm3395 = vweird.f32 %v3296
        %vm3396 = vweird.f32 %v3390
        %vm3397 = vmor %vm3395, %vm3396
        %v3398 = vsel %vm3397, %v3390, %v3394
        %v3399 = vand.u32 2147483647, %v3296
        %vm3400 = vcmp.eq.f32.partialorder %v3399, 8.507059e+37
        %v3401 = vand.u32 %v3296, 2147483648
        %v3402 = vor.u32 1.1754944e-38, %v3401
        %v3403 = vsel %vm3400, %v3402, %v3398
        %v3404 = vrcp.pop %v3299
        %v3405 = vmul.f32 %v3299, %v3404
        %v3406 = vsub.f32 1.0, %v3405
        %v3407 = vmul.f32 %v3404, %v3406
        %v3408 = vadd.f32 %v3404, %v3407
        %vm3409 = vweird.f32 %v3299
        %vm3410 = vweird.f32 %v3404
        %vm3411 = vmor %vm3409, %vm3410
        %v3412 = vsel %vm3411, %v3404, %v3408
        %v3413 = vand.u32 2147483647, %v3299
        %vm3414 = vcmp.eq.f32.partialorder %v3413, 8.507059e+37
        %v3415 = vand.u32 %v3299, 2147483648
        %v3416 = vor.u32 1.1754944e-38, %v3415
        %v3417 = vsel %vm3414, %v3416, %v3412
        %v3418 = vrcp.pop %v3302
        %v3419 = vmul.f32 %v3302, %v3418
        %v3420 = vsub.f32 1.0, %v3419
        %v3421 = vmul.f32 %v3418, %v3420
        %v3422 = vadd.f32 %v3418, %v3421
        %vm3423 = vweird.f32 %v3302
        %vm3424 = vweird.f32 %v3418
        %vm3425 = vmor %vm3423, %vm3424
        %v3426 = vsel %vm3425, %v3418, %v3422
        %v3427 = vand.u32 2147483647, %v3302
        %vm3428 = vcmp.eq.f32.partialorder %v3427, 8.507059e+37
        %v3429 = vand.u32 %v3302, 2147483648
        %v3430 = vor.u32 1.1754944e-38, %v3429
        %v3431 = vsel %vm3428, %v3430, %v3426
        %v3432 = vrcp.pop %v3305
        %v3433 = vmul.f32 %v3305, %v3432
        %v3434 = vsub.f32 1.0, %v3433
        %v3435 = vmul.f32 %v3432, %v3434
        %v3436 = vadd.f32 %v3432, %v3435
        %vm3437 = vweird.f32 %v3305
        %vm3438 = vweird.f32 %v3432
        %vm3439 = vmor %vm3437, %vm3438
        %v3440 = vsel %vm3439, %v3432, %v3436
        %v3441 = vand.u32 2147483647, %v3305
        %vm3442 = vcmp.eq.f32.partialorder %v3441, 8.507059e+37
        %v3443 = vand.u32 %v3305, 2147483648
        %v3444 = vor.u32 1.1754944e-38, %v3443
        %v3445 = vsel %vm3442, %v3444, %v3440
        %v3446 = vrcp.pop %v3308
        %v3447 = vmul.f32 %v3308, %v3446
        %v3448 = vsub.f32 1.0, %v3447
        %v3449 = vmul.f32 %v3446, %v3448
        %v3450 = vadd.f32 %v3446, %v3449
        %vm3451 = vweird.f32 %v3308
        %vm3452 = vweird.f32 %v3446
        %vm3453 = vmor %vm3451, %vm3452
        %v3454 = vsel %vm3453, %v3446, %v3450
        %v3455 = vand.u32 2147483647, %v3308
        %vm3456 = vcmp.eq.f32.partialorder %v3455, 8.507059e+37
        %v3457 = vand.u32 %v3308, 2147483648
        %v3458 = vor.u32 1.1754944e-38, %v3457
        %v3459 = vsel %vm3456, %v3458, %v3454
        %v3460 = vrcp.pop %v3311
        %v3461 = vmul.f32 %v3311, %v3460
        %v3462 = vsub.f32 1.0, %v3461
        %v3463 = vmul.f32 %v3460, %v3462
        %v3464 = vadd.f32 %v3460, %v3463
        %vm3465 = vweird.f32 %v3311
        %vm3466 = vweird.f32 %v3460
        %vm3467 = vmor %vm3465, %vm3466
        %v3468 = vsel %vm3467, %v3460, %v3464
        %v3469 = vand.u32 2147483647, %v3311
        %vm3470 = vcmp.eq.f32.partialorder %v3469, 8.507059e+37
        %v3471 = vand.u32 %v3311, 2147483648
        %v3472 = vor.u32 1.1754944e-38, %v3471
        %v3473 = vsel %vm3470, %v3472, %v3468
        %v3474 = vrcp.pop %v3314
        %v3475 = vmul.f32 %v3314, %v3474
        %v3476 = vsub.f32 1.0, %v3475
        %v3477 = vmul.f32 %v3474, %v3476
        %v3478 = vadd.f32 %v3474, %v3477
        %vm3479 = vweird.f32 %v3314
        %vm3480 = vweird.f32 %v3474
        %vm3481 = vmor %vm3479, %vm3480
        %v3482 = vsel %vm3481, %v3474, %v3478
        %v3483 = vand.u32 2147483647, %v3314
        %vm3484 = vcmp.eq.f32.partialorder %v3483, 8.507059e+37
        %v3485 = vand.u32 %v3314, 2147483648
        %v3486 = vor.u32 1.1754944e-38, %v3485
        %v3487 = vsel %vm3484, %v3486, %v3482
        %v3488 = vrcp.pop %v3317
        %v3489 = vmul.f32 %v3317, %v3488
        %v3490 = vsub.f32 1.0, %v3489
        %v3491 = vmul.f32 %v3488, %v3490
        %v3492 = vadd.f32 %v3488, %v3491
        %vm3493 = vweird.f32 %v3317
        %vm3494 = vweird.f32 %v3488
        %vm3495 = vmor %vm3493, %vm3494
        %v3496 = vsel %vm3495, %v3488, %v3492
        %v3497 = vand.u32 2147483647, %v3317
        %vm3498 = vcmp.eq.f32.partialorder %v3497, 8.507059e+37
        %v3499 = vand.u32 %v3317, 2147483648
        %v3500 = vor.u32 1.1754944e-38, %v3499
        %v3501 = vsel %vm3498, %v3500, %v3496
        %v3502 = vrcp.pop %v3320
        %v3503 = vmul.f32 %v3320, %v3502
        %v3504 = vsub.f32 1.0, %v3503
        %v3505 = vmul.f32 %v3502, %v3504
        %v3506 = vadd.f32 %v3502, %v3505
        %vm3507 = vweird.f32 %v3320
        %vm3508 = vweird.f32 %v3502
        %vm3509 = vmor %vm3507, %vm3508
        %v3510 = vsel %vm3509, %v3502, %v3506
        %v3511 = vand.u32 2147483647, %v3320
        %vm3512 = vcmp.eq.f32.partialorder %v3511, 8.507059e+37
        %v3513 = vand.u32 %v3320, 2147483648
        %v3514 = vor.u32 1.1754944e-38, %v3513
        %v3515 = vsel %vm3512, %v3514, %v3510
        %v3516 = vrcp.pop %v3323
        %v3517 = vmul.f32 %v3323, %v3516
        %v3518 = vsub.f32 1.0, %v3517
        %v3519 = vmul.f32 %v3516, %v3518
        %v3520 = vadd.f32 %v3516, %v3519
        %vm3521 = vweird.f32 %v3323
        %vm3522 = vweird.f32 %v3516
        %vm3523 = vmor %vm3521, %vm3522
        %v3524 = vsel %vm3523, %v3516, %v3520
        %v3525 = vand.u32 2147483647, %v3323
        %vm3526 = vcmp.eq.f32.partialorder %v3525, 8.507059e+37
        %v3527 = vand.u32 %v3323, 2147483648
        %v3528 = vor.u32 1.1754944e-38, %v3527
        %v3529 = vsel %vm3526, %v3528, %v3524
        %v3530 = vrcp.pop %v3326
        %v3531 = vmul.f32 %v3326, %v3530
        %v3532 = vsub.f32 1.0, %v3531
        %v3533 = vmul.f32 %v3530, %v3532
        %v3534 = vadd.f32 %v3530, %v3533
        %vm3535 = vweird.f32 %v3326
        %vm3536 = vweird.f32 %v3530
        %vm3537 = vmor %vm3535, %vm3536
        %v3538 = vsel %vm3537, %v3530, %v3534
        %v3539 = vand.u32 2147483647, %v3326
        %vm3540 = vcmp.eq.f32.partialorder %v3539, 8.507059e+37
        %v3541 = vand.u32 %v3326, 2147483648
        %v3542 = vor.u32 1.1754944e-38, %v3541
        %v3543 = vsel %vm3540, %v3542, %v3538
        %v3544 = vrcp.pop %v3329
        %v3545 = vmul.f32 %v3329, %v3544
        %v3546 = vsub.f32 1.0, %v3545
        %v3547 = vmul.f32 %v3544, %v3546
        %v3548 = vadd.f32 %v3544, %v3547
        %vm3549 = vweird.f32 %v3329
        %vm3550 = vweird.f32 %v3544
        %vm3551 = vmor %vm3549, %vm3550
        %v3552 = vsel %vm3551, %v3544, %v3548
        %v3553 = vand.u32 2147483647, %v3329
        %vm3554 = vcmp.eq.f32.partialorder %v3553, 8.507059e+37
        %v3555 = vand.u32 %v3329, 2147483648
        %v3556 = vor.u32 1.1754944e-38, %v3555
        %v3557 = vsel %vm3554, %v3556, %v3552
        %v3558 = vrcp.pop %v3332
        %v3559 = vmul.f32 %v3332, %v3558
        %v3560 = vsub.f32 1.0, %v3559
        %v3561 = vmul.f32 %v3558, %v3560
        %v3562 = vadd.f32 %v3558, %v3561
        %vm3563 = vweird.f32 %v3332
        %vm3564 = vweird.f32 %v3558
        %vm3565 = vmor %vm3563, %vm3564
        %v3566 = vsel %vm3565, %v3558, %v3562
        %v3567 = vand.u32 2147483647, %v3332
        %vm3568 = vcmp.eq.f32.partialorder %v3567, 8.507059e+37
        %v3569 = vand.u32 %v3332, 2147483648
        %v3570 = vor.u32 1.1754944e-38, %v3569
        %v3571 = vsel %vm3568, %v3570, %v3566
        %v3572 = vrcp.pop %v3335
        %v3573 = vmul.f32 %v3335, %v3572
        %v3574 = vsub.f32 1.0, %v3573
        %v3575 = vmul.f32 %v3572, %v3574
        %v3576 = vadd.f32 %v3572, %v3575
        %vm3577 = vweird.f32 %v3335
        %vm3578 = vweird.f32 %v3572
        %vm3579 = vmor %vm3577, %vm3578
        %v3580 = vsel %vm3579, %v3572, %v3576
        %v3581 = vand.u32 2147483647, %v3335
        %vm3582 = vcmp.eq.f32.partialorder %v3581, 8.507059e+37
        %v3583 = vand.u32 %v3335, 2147483648
        %v3584 = vor.u32 1.1754944e-38, %v3583
        %v3585 = vsel %vm3582, %v3584, %v3580
        %v3586 = vrcp.pop %v3338
        %v3587 = vmul.f32 %v3338, %v3586
        %v3588 = vsub.f32 1.0, %v3587
        %v3589 = vmul.f32 %v3586, %v3588
        %v3590 = vadd.f32 %v3586, %v3589
        %vm3591 = vweird.f32 %v3338
        %vm3592 = vweird.f32 %v3586
        %vm3593 = vmor %vm3591, %vm3592
        %v3594 = vsel %vm3593, %v3586, %v3590
        %v3595 = vand.u32 2147483647, %v3338
        %vm3596 = vcmp.eq.f32.partialorder %v3595, 8.507059e+37
        %v3597 = vand.u32 %v3338, 2147483648
        %v3598 = vor.u32 1.1754944e-38, %v3597
        %v3599 = vsel %vm3596, %v3598, %v3594
        %v3600 = vrcp.pop %v3341
        %v3601 = vmul.f32 %v3341, %v3600
        %v3602 = vsub.f32 1.0, %v3601
        %v3603 = vmul.f32 %v3600, %v3602
        %v3604 = vadd.f32 %v3600, %v3603
        %vm3605 = vweird.f32 %v3341
        %vm3606 = vweird.f32 %v3600
        %vm3607 = vmor %vm3605, %vm3606
        %v3608 = vsel %vm3607, %v3600, %v3604
        %v3609 = vand.u32 2147483647, %v3341
        %vm3610 = vcmp.eq.f32.partialorder %v3609, 8.507059e+37
        %v3611 = vand.u32 %v3341, 2147483648
        %v3612 = vor.u32 1.1754944e-38, %v3611
        %v3613 = vsel %vm3610, %v3612, %v3608
        %v3614 = vrcp.pop %v3344
        %v3615 = vmul.f32 %v3344, %v3614
        %v3616 = vsub.f32 1.0, %v3615
        %v3617 = vmul.f32 %v3614, %v3616
        %v3618 = vadd.f32 %v3614, %v3617
        %vm3619 = vweird.f32 %v3344
        %vm3620 = vweird.f32 %v3614
        %vm3621 = vmor %vm3619, %vm3620
        %v3622 = vsel %vm3621, %v3614, %v3618
        %v3623 = vand.u32 2147483647, %v3344
        %vm3624 = vcmp.eq.f32.partialorder %v3623, 8.507059e+37
        %v3625 = vand.u32 %v3344, 2147483648
        %v3626 = vor.u32 1.1754944e-38, %v3625
        %v3627 = vsel %vm3624, %v3626, %v3622
        %v3628 = vrcp.pop %v3347
        %v3629 = vmul.f32 %v3347, %v3628
        %v3630 = vsub.f32 1.0, %v3629
        %v3631 = vmul.f32 %v3628, %v3630
        %v3632 = vadd.f32 %v3628, %v3631
        %vm3633 = vweird.f32 %v3347
        %vm3634 = vweird.f32 %v3628
        %vm3635 = vmor %vm3633, %vm3634
        %v3636 = vsel %vm3635, %v3628, %v3632
        %v3637 = vand.u32 2147483647, %v3347
        %vm3638 = vcmp.eq.f32.partialorder %v3637, 8.507059e+37
        %v3639 = vand.u32 %v3347, 2147483648
        %v3640 = vor.u32 1.1754944e-38, %v3639
        %v3641 = vsel %vm3638, %v3640, %v3636
        %v3642 = vrcp.pop %v3350
        %v3643 = vmul.f32 %v3350, %v3642
        %v3644 = vsub.f32 1.0, %v3643
        %v3645 = vmul.f32 %v3642, %v3644
        %v3646 = vadd.f32 %v3642, %v3645
        %vm3647 = vweird.f32 %v3350
        %vm3648 = vweird.f32 %v3642
        %vm3649 = vmor %vm3647, %vm3648
        %v3650 = vsel %vm3649, %v3642, %v3646
        %v3651 = vand.u32 2147483647, %v3350
        %vm3652 = vcmp.eq.f32.partialorder %v3651, 8.507059e+37
        %v3653 = vand.u32 %v3350, 2147483648
        %v3654 = vor.u32 1.1754944e-38, %v3653
        %v3655 = vsel %vm3652, %v3654, %v3650
        %v3656 = vrcp.pop %v3353
        %v3657 = vmul.f32 %v3353, %v3656
        %v3658 = vsub.f32 1.0, %v3657
        %v3659 = vmul.f32 %v3656, %v3658
        %v3660 = vadd.f32 %v3656, %v3659
        %vm3661 = vweird.f32 %v3353
        %vm3662 = vweird.f32 %v3656
        %vm3663 = vmor %vm3661, %vm3662
        %v3664 = vsel %vm3663, %v3656, %v3660
        %v3665 = vand.u32 2147483647, %v3353
        %vm3666 = vcmp.eq.f32.partialorder %v3665, 8.507059e+37
        %v3667 = vand.u32 %v3353, 2147483648
        %v3668 = vor.u32 1.1754944e-38, %v3667
        %v3669 = vsel %vm3666, %v3668, %v3664
        %v3670 = vrcp.pop %v3356
        %v3671 = vmul.f32 %v3356, %v3670
        %v3672 = vsub.f32 1.0, %v3671
        %v3673 = vmul.f32 %v3670, %v3672
        %v3674 = vadd.f32 %v3670, %v3673
        %vm3675 = vweird.f32 %v3356
        %vm3676 = vweird.f32 %v3670
        %vm3677 = vmor %vm3675, %vm3676
        %v3678 = vsel %vm3677, %v3670, %v3674
        %v3679 = vand.u32 2147483647, %v3356
        %vm3680 = vcmp.eq.f32.partialorder %v3679, 8.507059e+37
        %v3681 = vand.u32 %v3356, 2147483648
        %v3682 = vor.u32 1.1754944e-38, %v3681
        %v3683 = vsel %vm3680, %v3682, %v3678
        %v3684 = vrcp.pop %v3359
        %v3685 = vmul.f32 %v3359, %v3684
        %v3686 = vsub.f32 1.0, %v3685
        %v3687 = vmul.f32 %v3684, %v3686
        %v3688 = vadd.f32 %v3684, %v3687
        %vm3689 = vweird.f32 %v3359
        %vm3690 = vweird.f32 %v3684
        %vm3691 = vmor %vm3689, %vm3690
        %v3692 = vsel %vm3691, %v3684, %v3688
        %v3693 = vand.u32 2147483647, %v3359
        %vm3694 = vcmp.eq.f32.partialorder %v3693, 8.507059e+37
        %v3695 = vand.u32 %v3359, 2147483648
        %v3696 = vor.u32 1.1754944e-38, %v3695
        %v3697 = vsel %vm3694, %v3696, %v3692
        %v3698 = vrcp.pop %v3362
        %v3699 = vmul.f32 %v3362, %v3698
        %v3700 = vsub.f32 1.0, %v3699
        %v3701 = vmul.f32 %v3698, %v3700
        %v3702 = vadd.f32 %v3698, %v3701
        %vm3703 = vweird.f32 %v3362
        %vm3704 = vweird.f32 %v3698
        %vm3705 = vmor %vm3703, %vm3704
        %v3706 = vsel %vm3705, %v3698, %v3702
        %v3707 = vand.u32 2147483647, %v3362
        %vm3708 = vcmp.eq.f32.partialorder %v3707, 8.507059e+37
        %v3709 = vand.u32 %v3362, 2147483648
        %v3710 = vor.u32 1.1754944e-38, %v3709
        %v3711 = vsel %vm3708, %v3710, %v3706
        %v3712 = vrcp.pop %v3365
        %v3713 = vmul.f32 %v3365, %v3712
        %v3714 = vsub.f32 1.0, %v3713
        %v3715 = vmul.f32 %v3712, %v3714
        %v3716 = vadd.f32 %v3712, %v3715
        %vm3717 = vweird.f32 %v3365
        %vm3718 = vweird.f32 %v3712
        %vm3719 = vmor %vm3717, %vm3718
        %v3720 = vsel %vm3719, %v3712, %v3716
        %v3721 = vand.u32 2147483647, %v3365
        %vm3722 = vcmp.eq.f32.partialorder %v3721, 8.507059e+37
        %v3723 = vand.u32 %v3365, 2147483648
        %v3724 = vor.u32 1.1754944e-38, %v3723
        %v3725 = vsel %vm3722, %v3724, %v3720
        %v3726 = vrcp.pop %v3368
        %v3727 = vmul.f32 %v3368, %v3726
        %v3728 = vsub.f32 1.0, %v3727
        %v3729 = vmul.f32 %v3726, %v3728
        %v3730 = vadd.f32 %v3726, %v3729
        %vm3731 = vweird.f32 %v3368
        %vm3732 = vweird.f32 %v3726
        %vm3733 = vmor %vm3731, %vm3732
        %v3734 = vsel %vm3733, %v3726, %v3730
        %v3735 = vand.u32 2147483647, %v3368
        %vm3736 = vcmp.eq.f32.partialorder %v3735, 8.507059e+37
        %v3737 = vand.u32 %v3368, 2147483648
        %v3738 = vor.u32 1.1754944e-38, %v3737
        %v3739 = vsel %vm3736, %v3738, %v3734
        %v3740 = vrcp.pop %v3371
        %v3741 = vmul.f32 %v3371, %v3740
        %v3742 = vsub.f32 1.0, %v3741
        %v3743 = vmul.f32 %v3740, %v3742
        %v3744 = vadd.f32 %v3740, %v3743
        %vm3745 = vweird.f32 %v3371
        %vm3746 = vweird.f32 %v3740
        %vm3747 = vmor %vm3745, %vm3746
        %v3748 = vsel %vm3747, %v3740, %v3744
        %v3749 = vand.u32 2147483647, %v3371
        %vm3750 = vcmp.eq.f32.partialorder %v3749, 8.507059e+37
        %v3751 = vand.u32 %v3371, 2147483648
        %v3752 = vor.u32 1.1754944e-38, %v3751
        %v3753 = vsel %vm3750, %v3752, %v3748
        %v3754 = vrcp.pop %v3374
        %v3755 = vmul.f32 %v3374, %v3754
        %v3756 = vsub.f32 1.0, %v3755
        %v3757 = vmul.f32 %v3754, %v3756
        %v3758 = vadd.f32 %v3754, %v3757
        %vm3759 = vweird.f32 %v3374
        %vm3760 = vweird.f32 %v3754
        %vm3761 = vmor %vm3759, %vm3760
        %v3762 = vsel %vm3761, %v3754, %v3758
        %v3763 = vand.u32 2147483647, %v3374
        %vm3764 = vcmp.eq.f32.partialorder %v3763, 8.507059e+37
        %v3765 = vand.u32 %v3374, 2147483648
        %v3766 = vor.u32 1.1754944e-38, %v3765
        %v3767 = vsel %vm3764, %v3766, %v3762
        %v3768 = vrcp.pop %v3377
        %v3769 = vmul.f32 %v3377, %v3768
        %v3770 = vsub.f32 1.0, %v3769
        %v3771 = vmul.f32 %v3768, %v3770
        %v3772 = vadd.f32 %v3768, %v3771
        %vm3773 = vweird.f32 %v3377
        %vm3774 = vweird.f32 %v3768
        %vm3775 = vmor %vm3773, %vm3774
        %v3776 = vsel %vm3775, %v3768, %v3772
        %v3777 = vand.u32 2147483647, %v3377
        %vm3778 = vcmp.eq.f32.partialorder %v3777, 8.507059e+37
        %v3779 = vand.u32 %v3377, 2147483648
        %v3780 = vor.u32 1.1754944e-38, %v3779
        %v3781 = vsel %vm3778, %v3780, %v3776
        %v3782 = vrcp.pop %v3380
        %v3783 = vmul.f32 %v3380, %v3782
        %v3784 = vsub.f32 1.0, %v3783
        %v3785 = vmul.f32 %v3782, %v3784
        %v3786 = vadd.f32 %v3782, %v3785
        %vm3787 = vweird.f32 %v3380
        %vm3788 = vweird.f32 %v3782
        %vm3789 = vmor %vm3787, %vm3788
        %v3790 = vsel %vm3789, %v3782, %v3786
        %v3791 = vand.u32 2147483647, %v3380
        %vm3792 = vcmp.eq.f32.partialorder %v3791, 8.507059e+37
        %v3793 = vand.u32 %v3380, 2147483648
        %v3794 = vor.u32 1.1754944e-38, %v3793
        %v3795 = vsel %vm3792, %v3794, %v3790
        %v3796 = vrcp.pop %v3383
        %v3797 = vmul.f32 %v3383, %v3796
        %v3798 = vsub.f32 1.0, %v3797
        %v3799 = vmul.f32 %v3796, %v3798
        %v3800 = vadd.f32 %v3796, %v3799
        %vm3801 = vweird.f32 %v3383
        %vm3802 = vweird.f32 %v3796
        %vm3803 = vmor %vm3801, %vm3802
        %v3804 = vsel %vm3803, %v3796, %v3800
        %v3805 = vand.u32 2147483647, %v3383
        %vm3806 = vcmp.eq.f32.partialorder %v3805, 8.507059e+37
        %v3807 = vand.u32 %v3383, 2147483648
        %v3808 = vor.u32 1.1754944e-38, %v3807
        %v3809 = vsel %vm3806, %v3808, %v3804
        %v3810 = vrcp.pop %v3386
        %v3811 = vmul.f32 %v3386, %v3810
        %v3812 = vsub.f32 1.0, %v3811
        %v3813 = vmul.f32 %v3810, %v3812
        %v3814 = vadd.f32 %v3810, %v3813
        %vm3815 = vweird.f32 %v3386
        %vm3816 = vweird.f32 %v3810
        %vm3817 = vmor %vm3815, %vm3816
        %v3818 = vsel %vm3817, %v3810, %v3814
        %v3819 = vand.u32 2147483647, %v3386
        %vm3820 = vcmp.eq.f32.partialorder %v3819, 8.507059e+37
        %v3821 = vand.u32 %v3386, 2147483648
        %v3822 = vor.u32 1.1754944e-38, %v3821
        %v3823 = vsel %vm3820, %v3822, %v3818
        %v3824 = vrcp.pop %v3389
        %v3825 = vmul.f32 %v3389, %v3824
        %v3826 = vsub.f32 1.0, %v3825
        %v3827 = vmul.f32 %v3824, %v3826
        %v3828 = vadd.f32 %v3824, %v3827
        %vm3829 = vweird.f32 %v3389
        %vm3830 = vweird.f32 %v3824
        %vm3831 = vmor %vm3829, %vm3830
        %v3832 = vsel %vm3831, %v3824, %v3828
        %v3833 = vand.u32 2147483647, %v3389
        %vm3834 = vcmp.eq.f32.partialorder %v3833, 8.507059e+37
        %v3835 = vand.u32 %v3389, 2147483648
        %v3836 = vor.u32 1.1754944e-38, %v3835
        %v3837 = vsel %vm3834, %v3836, %v3832
        %v3838 = vmul.f32 %v3231, %v3403
        %v3839 = vmul.f32 %v3233, %v3417
        %v3840 = vmul.f32 %v3235, %v3431
        %v3841 = vmul.f32 %v3237, %v3445
        %v3842 = vmul.f32 %v3239, %v3459
        %v3843 = vmul.f32 %v3241, %v3473
        %v3844 = vmul.f32 %v3243, %v3487
        %v3845 = vmul.f32 %v3245, %v3501
        %v3846 = vmul.f32 %v3247, %v3515
        %v3847 = vmul.f32 %v3249, %v3529
        %v3848 = vmul.f32 %v3251, %v3543
        %v3849 = vmul.f32 %v3253, %v3557
        %v3850 = vmul.f32 %v3255, %v3571
        %v3851 = vmul.f32 %v3257, %v3585
        %v3852 = vmul.f32 %v3259, %v3599
        %v3853 = vmul.f32 %v3261, %v3613
        %v3854 = vmul.f32 %v3263, %v3627
        %v3855 = vmul.f32 %v3265, %v3641
        %v3856 = vmul.f32 %v3267, %v3655
        %v3857 = vmul.f32 %v3269, %v3669
        %v3858 = vmul.f32 %v3271, %v3683
        %v3859 = vmul.f32 %v3273, %v3697
        %v3860 = vmul.f32 %v3275, %v3711
        %v3861 = vmul.f32 %v3277, %v3725
        %v3862 = vmul.f32 %v3279, %v3739
        %v3863 = vmul.f32 %v3281, %v3753
        %v3864 = vmul.f32 %v3283, %v3767
        %v3865 = vmul.f32 %v3285, %v3781
        %v3866 = vmul.f32 %v3287, %v3795
        %v3867 = vmul.f32 %v3289, %v3809
        %v3868 = vmul.f32 %v3291, %v3823
        %v3869 = vmul.f32 %v3293, %v3837
        %v3870 = vmul.f32 %v3838, %v2583
        %v3871 = vmul.f32 %v3839, %v2586
        %v3872 = vmul.f32 %v3840, %v2589
        %v3873 = vmul.f32 %v3841, %v2592
        %v3874 = vmul.f32 %v3842, %v2595
        %v3875 = vmul.f32 %v3843, %v2598
        %v3876 = vmul.f32 %v3844, %v2601
        %v3877 = vmul.f32 %v3845, %v2604
        %v3878 = vmul.f32 %v3846, %v2607
        %v3879 = vmul.f32 %v3847, %v2610
        %v3880 = vmul.f32 %v3848, %v2613
        %v3881 = vmul.f32 %v3849, %v2616
        %v3882 = vmul.f32 %v3850, %v2619
        %v3883 = vmul.f32 %v3851, %v2622
        %v3884 = vmul.f32 %v3852, %v2625
        %v3885 = vmul.f32 %v3853, %v2628
        %v3886 = vmul.f32 %v3854, %v2631
        %v3887 = vmul.f32 %v3855, %v2634
        %v3888 = vmul.f32 %v3856, %v2637
        %v3889 = vmul.f32 %v3857, %v2640
        %v3890 = vmul.f32 %v3858, %v2643
        %v3891 = vmul.f32 %v3859, %v2646
        %v3892 = vmul.f32 %v3860, %v2649
        %v3893 = vmul.f32 %v3861, %v2652
        %v3894 = vmul.f32 %v3862, %v2655
        %v3895 = vmul.f32 %v3863, %v2658
        %v3896 = vmul.f32 %v3864, %v2661
        %v3897 = vmul.f32 %v3865, %v2664
        %v3898 = vmul.f32 %v3866, %v2667
        %v3899 = vmul.f32 %v3867, %v2670
        %v3900 = vmul.f32 %v3868, %v2673
        %v3901 = vmul.f32 %v3869, %v2676
        %v3902 = vld [vmem:[#allocation2 + $0x90] sm:$0xff]
        %v3903 = vld [vmem:[#allocation2 + $0xa8] sm:$0xff]
        %v3904 = vld [vmem:[#allocation2 + $0xc0] sm:$0xff]
        %v3905 = vld [vmem:[#allocation2 + $0xd8] sm:$0xff]
        %v3906 = vld [vmem:[%s3 + $0x2] ss:$0 sm:$0xff]
        %v3908 = vsel %vm757, %v3870, 0
        %v3911 = vsel %vm757, %v3871, 0
        %v3914 = vsel %vm757, %v3872, 0
        %v3917 = vsel %vm757, %v3873, 0
        %v3920 = vsel %vm757, %v3874, 0
        %v3923 = vsel %vm757, %v3875, 0
        %v3926 = vsel %vm757, %v3876, 0
        %v3929 = vsel %vm757, %v3877, 0
        %v3932 = vsel %vm757, %v3878, 0
        %v3935 = vsel %vm757, %v3879, 0
        %v3938 = vsel %vm757, %v3880, 0
        %v3941 = vsel %vm757, %v3881, 0
        %v3944 = vsel %vm757, %v3882, 0
        %v3947 = vsel %vm757, %v3883, 0
        %v3950 = vsel %vm757, %v3884, 0
        %v3953 = vsel %vm757, %v3885, 0
        %v3956 = vsel %vm757, %v3886, 0
        %v3959 = vsel %vm757, %v3887, 0
        %v3962 = vsel %vm757, %v3888, 0
        %v3965 = vsel %vm757, %v3889, 0
        %v3968 = vsel %vm757, %v3890, 0
        %v3971 = vsel %vm757, %v3891, 0
        %v3974 = vsel %vm757, %v3892, 0
        %v3977 = vsel %vm757, %v3893, 0
        %v3980 = vsel %vm757, %v3894, 0
        %v3983 = vsel %vm757, %v3895, 0
        %v3986 = vsel %vm757, %v3896, 0
        %v3989 = vsel %vm757, %v3897, 0
        %v3992 = vsel %vm757, %v3898, 0
        %v3995 = vsel %vm757, %v3899, 0
        %v3998 = vsel %vm757, %v3900, 0
        %v4001 = vsel %vm757, %v3901, 0
        %4003 = vmatpush.msra.mxu0 0.0
        %4004 = vmatpush.msra.mxu0 0.0
        %4005 = vmatpush.msra.mxu0 0.0
        %4006 = vmatpush.msra.mxu0 0.0
        %4007 = vmatpush.msra.mxu0 0.0
        %4008 = vmatpush.msra.mxu0 0.0
        %4009 = vmatpush.msra.mxu0 0.0
        %4010 = vmatpush.msra.mxu0 0.0
        %4011 = vmatpush.msra.mxu0 0.0
        %4012 = vmatpush.msra.mxu0 0.0
        %4013 = vmatpush.msra.mxu0 0.0
        %4014 = vmatpush.msra.mxu0 0.0
        %4015 = vmatpush.msra.mxu0 %v3905
        %4016 = vmatpush.msra.mxu0 %v3904
        %4017 = vmatpush.msra.mxu0 %v3903
        %4018 = vmatpush.msra.mxu0 %v3902
        %4019 = vmatmul.f32.gmra.mxu0 %v3908
        %v4020 = vpop.f32.mrf.mxu0
        %v4021 = vadd.f32 %v3906, %v4020
        %4022 = vmatmul.f32.gmra.mxu0 %v3911
        %v4023 = vpop.f32.mrf.mxu0
        %v4024 = vadd.f32 %v3906, %v4023
        %4025 = vmatmul.f32.gmra.mxu0 %v3914
        %v4026 = vpop.f32.mrf.mxu0
        %v4027 = vadd.f32 %v3906, %v4026
        %4028 = vmatmul.f32.gmra.mxu0 %v3917
        %v4029 = vpop.f32.mrf.mxu0
        %v4030 = vadd.f32 %v3906, %v4029
        %4031 = vmatmul.f32.gmra.mxu0 %v3920
        %v4032 = vpop.f32.mrf.mxu0
        %v4033 = vadd.f32 %v3906, %v4032
        %4034 = vmatmul.f32.gmra.mxu0 %v3923
        %v4035 = vpop.f32.mrf.mxu0
        %v4036 = vadd.f32 %v3906, %v4035
        %4037 = vmatmul.f32.gmra.mxu0 %v3926
        %v4038 = vpop.f32.mrf.mxu0
        %v4039 = vadd.f32 %v3906, %v4038
        %4040 = vmatmul.f32.gmra.mxu0 %v3929
        %v4041 = vpop.f32.mrf.mxu0
        %v4042 = vadd.f32 %v3906, %v4041
        %4043 = vmatmul.f32.gmra.mxu0 %v3932
        %v4044 = vpop.f32.mrf.mxu0
        %v4045 = vadd.f32 %v3906, %v4044
        %4046 = vmatmul.f32.gmra.mxu0 %v3935
        %v4047 = vpop.f32.mrf.mxu0
        %v4048 = vadd.f32 %v3906, %v4047
        %4049 = vmatmul.f32.gmra.mxu0 %v3938
        %v4050 = vpop.f32.mrf.mxu0
        %v4051 = vadd.f32 %v3906, %v4050
        %4052 = vmatmul.f32.gmra.mxu0 %v3941
        %v4053 = vpop.f32.mrf.mxu0
        %v4054 = vadd.f32 %v3906, %v4053
        %4055 = vmatmul.f32.gmra.mxu0 %v3944
        %v4056 = vpop.f32.mrf.mxu0
        %v4057 = vadd.f32 %v3906, %v4056
        %4058 = vmatmul.f32.gmra.mxu0 %v3947
        %v4059 = vpop.f32.mrf.mxu0
        %v4060 = vadd.f32 %v3906, %v4059
        %4061 = vmatmul.f32.gmra.mxu0 %v3950
        %v4062 = vpop.f32.mrf.mxu0
        %v4063 = vadd.f32 %v3906, %v4062
        %4064 = vmatmul.f32.gmra.mxu0 %v3953
        %v4065 = vpop.f32.mrf.mxu0
        %v4066 = vadd.f32 %v3906, %v4065
        %4067 = vmatmul.f32.gmra.mxu0 %v3956
        %v4068 = vpop.f32.mrf.mxu0
        %v4069 = vadd.f32 %v3906, %v4068
        %4070 = vmatmul.f32.gmra.mxu0 %v3959
        %v4071 = vpop.f32.mrf.mxu0
        %v4072 = vadd.f32 %v3906, %v4071
        %4073 = vmatmul.f32.gmra.mxu0 %v3962
        %v4074 = vpop.f32.mrf.mxu0
        %v4075 = vadd.f32 %v3906, %v4074
        %4076 = vmatmul.f32.gmra.mxu0 %v3965
        %v4077 = vpop.f32.mrf.mxu0
        %v4078 = vadd.f32 %v3906, %v4077
        %4079 = vmatmul.f32.gmra.mxu0 %v3968
        %v4080 = vpop.f32.mrf.mxu0
        %v4081 = vadd.f32 %v3906, %v4080
        %4082 = vmatmul.f32.gmra.mxu0 %v3971
        %v4083 = vpop.f32.mrf.mxu0
        %v4084 = vadd.f32 %v3906, %v4083
        %4085 = vmatmul.f32.gmra.mxu0 %v3974
        %v4086 = vpop.f32.mrf.mxu0
        %v4087 = vadd.f32 %v3906, %v4086
        %4088 = vmatmul.f32.gmra.mxu0 %v3977
        %v4089 = vpop.f32.mrf.mxu0
        %v4090 = vadd.f32 %v3906, %v4089
        %4091 = vmatmul.f32.gmra.mxu0 %v3980
        %v4092 = vpop.f32.mrf.mxu0
        %v4093 = vadd.f32 %v3906, %v4092
        %4094 = vmatmul.f32.gmra.mxu0 %v3983
        %v4095 = vpop.f32.mrf.mxu0
        %v4096 = vadd.f32 %v3906, %v4095
        %4097 = vmatmul.f32.gmra.mxu0 %v3986
        %v4098 = vpop.f32.mrf.mxu0
        %v4099 = vadd.f32 %v3906, %v4098
        %4100 = vmatmul.f32.gmra.mxu0 %v3989
        %v4101 = vpop.f32.mrf.mxu0
        %v4102 = vadd.f32 %v3906, %v4101
        %4103 = vmatmul.f32.gmra.mxu0 %v3992
        %v4104 = vpop.f32.mrf.mxu0
        %v4105 = vadd.f32 %v3906, %v4104
        %4106 = vmatmul.f32.gmra.mxu0 %v3995
        %v4107 = vpop.f32.mrf.mxu0
        %v4108 = vadd.f32 %v3906, %v4107
        %4109 = vmatmul.f32.gmra.mxu0 %v3998
        %v4110 = vpop.f32.mrf.mxu0
        %v4111 = vadd.f32 %v3906, %v4110
        %4112 = vmatmul.f32.gmra.mxu0 %v4001
        %v4113 = vpop.f32.mrf.mxu0
        %v4114 = vadd.f32 %v3906, %v4113
        %4115 = vdwg.mxu0
        %v4116 = vld [vmem:[#allocation2 + $0x98] sm:$0xff]
        %v4117 = vld [vmem:[#allocation2 + $0xb0] sm:$0xff]
        %v4118 = vld [vmem:[#allocation2 + $0xc8] sm:$0xff]
        %v4119 = vld [vmem:[#allocation2 + $0xe0] sm:$0xff]
        %v4120 = vld [vmem:[%s3 + $0xa] ss:$0 sm:$0xff]
        %v4122 = vsel %vm757, %v2196, 0
        %v4125 = vsel %vm757, %v2197, 0
        %v4128 = vsel %vm757, %v2198, 0
        %v4131 = vsel %vm757, %v2199, 0
        %v4134 = vsel %vm757, %v2200, 0
        %v4137 = vsel %vm757, %v2201, 0
        %v4140 = vsel %vm757, %v2202, 0
        %v4143 = vsel %vm757, %v2203, 0
        %v4146 = vsel %vm757, %v2204, 0
        %v4149 = vsel %vm757, %v2205, 0
        %v4152 = vsel %vm757, %v2206, 0
        %v4155 = vsel %vm757, %v2207, 0
        %v4158 = vsel %vm757, %v2208, 0
        %v4161 = vsel %vm757, %v2209, 0
        %v4164 = vsel %vm757, %v2210, 0
        %v4167 = vsel %vm757, %v2211, 0
        %v4170 = vsel %vm757, %v2212, 0
        %v4173 = vsel %vm757, %v2213, 0
        %v4176 = vsel %vm757, %v2214, 0
        %v4179 = vsel %vm757, %v2215, 0
        %v4182 = vsel %vm757, %v2216, 0
        %v4185 = vsel %vm757, %v2217, 0
        %v4188 = vsel %vm757, %v2218, 0
        %v4191 = vsel %vm757, %v2219, 0
        %v4194 = vsel %vm757, %v2220, 0
        %v4197 = vsel %vm757, %v2221, 0
        %v4200 = vsel %vm757, %v2222, 0
        %v4203 = vsel %vm757, %v2223, 0
        %v4206 = vsel %vm757, %v2224, 0
        %v4209 = vsel %vm757, %v2225, 0
        %v4212 = vsel %vm757, %v2226, 0
        %v4215 = vsel %vm757, %v2227, 0
        %4217 = vmatpush.msra.mxu0 0.0
        %4218 = vmatpush.msra.mxu0 0.0
        %4219 = vmatpush.msra.mxu0 0.0
        %4220 = vmatpush.msra.mxu0 0.0
        %4221 = vmatpush.msra.mxu0 0.0
        %4222 = vmatpush.msra.mxu0 0.0
        %4223 = vmatpush.msra.mxu0 0.0
        %4224 = vmatpush.msra.mxu0 0.0
        %4225 = vmatpush.msra.mxu0 0.0
        %4226 = vmatpush.msra.mxu0 0.0
        %4227 = vmatpush.msra.mxu0 0.0
        %4228 = vmatpush.msra.mxu0 0.0
        %4229 = vmatpush.msra.mxu0 %v4119
        %4230 = vmatpush.msra.mxu0 %v4118
        %4231 = vmatpush.msra.mxu0 %v4117
        %4232 = vmatpush.msra.mxu0 %v4116
        %4233 = vmatmul.f32.gmra.mxu0 %v4122
        %v4234 = vpop.f32.mrf.mxu0
        %v4235 = vadd.f32 %v4120, %v4234
        %4236 = vmatmul.f32.gmra.mxu0 %v4125
        %v4237 = vpop.f32.mrf.mxu0
        %v4238 = vadd.f32 %v4120, %v4237
        %4239 = vmatmul.f32.gmra.mxu0 %v4128
        %v4240 = vpop.f32.mrf.mxu0
        %v4241 = vadd.f32 %v4120, %v4240
        %4242 = vmatmul.f32.gmra.mxu0 %v4131
        %v4243 = vpop.f32.mrf.mxu0
        %v4244 = vadd.f32 %v4120, %v4243
        %4245 = vmatmul.f32.gmra.mxu0 %v4134
        %v4246 = vpop.f32.mrf.mxu0
        %v4247 = vadd.f32 %v4120, %v4246
        %4248 = vmatmul.f32.gmra.mxu0 %v4137
        %v4249 = vpop.f32.mrf.mxu0
        %v4250 = vadd.f32 %v4120, %v4249
        %4251 = vmatmul.f32.gmra.mxu0 %v4140
        %v4252 = vpop.f32.mrf.mxu0
        %v4253 = vadd.f32 %v4120, %v4252
        %4254 = vmatmul.f32.gmra.mxu0 %v4143
        %v4255 = vpop.f32.mrf.mxu0
        %v4256 = vadd.f32 %v4120, %v4255
        %4257 = vmatmul.f32.gmra.mxu0 %v4146
        %v4258 = vpop.f32.mrf.mxu0
        %v4259 = vadd.f32 %v4120, %v4258
        %4260 = vmatmul.f32.gmra.mxu0 %v4149
        %v4261 = vpop.f32.mrf.mxu0
        %v4262 = vadd.f32 %v4120, %v4261
        %4263 = vmatmul.f32.gmra.mxu0 %v4152
        %v4264 = vpop.f32.mrf.mxu0
        %v4265 = vadd.f32 %v4120, %v4264
        %4266 = vmatmul.f32.gmra.mxu0 %v4155
        %v4267 = vpop.f32.mrf.mxu0
        %v4268 = vadd.f32 %v4120, %v4267
        %4269 = vmatmul.f32.gmra.mxu0 %v4158
        %v4270 = vpop.f32.mrf.mxu0
        %v4271 = vadd.f32 %v4120, %v4270
        %4272 = vmatmul.f32.gmra.mxu0 %v4161
        %v4273 = vpop.f32.mrf.mxu0
        %v4274 = vadd.f32 %v4120, %v4273
        %4275 = vmatmul.f32.gmra.mxu0 %v4164
        %v4276 = vpop.f32.mrf.mxu0
        %v4277 = vadd.f32 %v4120, %v4276
        %4278 = vmatmul.f32.gmra.mxu0 %v4167
        %v4279 = vpop.f32.mrf.mxu0
        %v4280 = vadd.f32 %v4120, %v4279
        %4281 = vmatmul.f32.gmra.mxu0 %v4170
        %v4282 = vpop.f32.mrf.mxu0
        %v4283 = vadd.f32 %v4120, %v4282
        %4284 = vmatmul.f32.gmra.mxu0 %v4173
        %v4285 = vpop.f32.mrf.mxu0
        %v4286 = vadd.f32 %v4120, %v4285
        %4287 = vmatmul.f32.gmra.mxu0 %v4176
        %v4288 = vpop.f32.mrf.mxu0
        %v4289 = vadd.f32 %v4120, %v4288
        %4290 = vmatmul.f32.gmra.mxu0 %v4179
        %v4291 = vpop.f32.mrf.mxu0
        %v4292 = vadd.f32 %v4120, %v4291
        %4293 = vmatmul.f32.gmra.mxu0 %v4182
        %v4294 = vpop.f32.mrf.mxu0
        %v4295 = vadd.f32 %v4120, %v4294
        %4296 = vmatmul.f32.gmra.mxu0 %v4185
        %v4297 = vpop.f32.mrf.mxu0
        %v4298 = vadd.f32 %v4120, %v4297
        %4299 = vmatmul.f32.gmra.mxu0 %v4188
        %v4300 = vpop.f32.mrf.mxu0
        %v4301 = vadd.f32 %v4120, %v4300
        %4302 = vmatmul.f32.gmra.mxu0 %v4191
        %v4303 = vpop.f32.mrf.mxu0
        %v4304 = vadd.f32 %v4120, %v4303
        %4305 = vmatmul.f32.gmra.mxu0 %v4194
        %v4306 = vpop.f32.mrf.mxu0
        %v4307 = vadd.f32 %v4120, %v4306
        %4308 = vmatmul.f32.gmra.mxu0 %v4197
        %v4309 = vpop.f32.mrf.mxu0
        %v4310 = vadd.f32 %v4120, %v4309
        %4311 = vmatmul.f32.gmra.mxu0 %v4200
        %v4312 = vpop.f32.mrf.mxu0
        %v4313 = vadd.f32 %v4120, %v4312
        %4314 = vmatmul.f32.gmra.mxu0 %v4203
        %v4315 = vpop.f32.mrf.mxu0
        %v4316 = vadd.f32 %v4120, %v4315
        %4317 = vmatmul.f32.gmra.mxu0 %v4206
        %v4318 = vpop.f32.mrf.mxu0
        %v4319 = vadd.f32 %v4120, %v4318
        %4320 = vmatmul.f32.gmra.mxu0 %v4209
        %v4321 = vpop.f32.mrf.mxu0
        %v4322 = vadd.f32 %v4120, %v4321
        %4323 = vmatmul.f32.gmra.mxu0 %v4212
        %v4324 = vpop.f32.mrf.mxu0
        %v4325 = vadd.f32 %v4120, %v4324
        %4326 = vmatmul.f32.gmra.mxu0 %v4215
        %v4327 = vpop.f32.mrf.mxu0
        %v4328 = vadd.f32 %v4120, %v4327
        %4329 = vdwg.mxu0
        %v4330 = vld [vmem:[#allocation2 + $0xa0] sm:$0xff]
        %v4331 = vld [vmem:[#allocation2 + $0xb8] sm:$0xff]
        %v4332 = vld [vmem:[#allocation2 + $0xd0] sm:$0xff]
        %v4333 = vld [vmem:[#allocation2 + $0xe8] sm:$0xff]
        %v4334 = vld [vmem:[%s3 + $0x12] ss:$0 sm:$0xff]
        %4335 = vmatpush.msra.mxu0 0.0
        %4336 = vmatpush.msra.mxu0 0.0
        %4337 = vmatpush.msra.mxu0 0.0
        %4338 = vmatpush.msra.mxu0 0.0
        %4339 = vmatpush.msra.mxu0 0.0
        %4340 = vmatpush.msra.mxu0 0.0
        %4341 = vmatpush.msra.mxu0 0.0
        %4342 = vmatpush.msra.mxu0 0.0
        %4343 = vmatpush.msra.mxu0 0.0
        %4344 = vmatpush.msra.mxu0 0.0
        %4345 = vmatpush.msra.mxu0 0.0
        %4346 = vmatpush.msra.mxu0 0.0
        %4347 = vmatpush.msra.mxu0 %v4333
        %4348 = vmatpush.msra.mxu0 %v4332
        %4349 = vmatpush.msra.mxu0 %v4331
        %4350 = vmatpush.msra.mxu0 %v4330
        %4351 = vmatmul.f32.gmra.mxu0 %v4122
        %v4352 = vpop.f32.mrf.mxu0
        %v4353 = vadd.f32 %v4334, %v4352
        %4354 = vmatmul.f32.gmra.mxu0 %v4125
        %v4355 = vpop.f32.mrf.mxu0
        %v4356 = vadd.f32 %v4334, %v4355
        %4357 = vmatmul.f32.gmra.mxu0 %v4128
        %v4358 = vpop.f32.mrf.mxu0
        %v4359 = vadd.f32 %v4334, %v4358
        %4360 = vmatmul.f32.gmra.mxu0 %v4131
        %v4361 = vpop.f32.mrf.mxu0
        %v4362 = vadd.f32 %v4334, %v4361
        %4363 = vmatmul.f32.gmra.mxu0 %v4134
        %v4364 = vpop.f32.mrf.mxu0
        %v4365 = vadd.f32 %v4334, %v4364
        %4366 = vmatmul.f32.gmra.mxu0 %v4137
        %v4367 = vpop.f32.mrf.mxu0
        %v4368 = vadd.f32 %v4334, %v4367
        %4369 = vmatmul.f32.gmra.mxu0 %v4140
        %v4370 = vpop.f32.mrf.mxu0
        %v4371 = vadd.f32 %v4334, %v4370
        %4372 = vmatmul.f32.gmra.mxu0 %v4143
        %v4373 = vpop.f32.mrf.mxu0
        %v4374 = vadd.f32 %v4334, %v4373
        %4375 = vmatmul.f32.gmra.mxu0 %v4146
        %v4376 = vpop.f32.mrf.mxu0
        %v4377 = vadd.f32 %v4334, %v4376
        %4378 = vmatmul.f32.gmra.mxu0 %v4149
        %v4379 = vpop.f32.mrf.mxu0
        %v4380 = vadd.f32 %v4334, %v4379
        %4381 = vmatmul.f32.gmra.mxu0 %v4152
        %v4382 = vpop.f32.mrf.mxu0
        %v4383 = vadd.f32 %v4334, %v4382
        %4384 = vmatmul.f32.gmra.mxu0 %v4155
        %v4385 = vpop.f32.mrf.mxu0
        %v4386 = vadd.f32 %v4334, %v4385
        %4387 = vmatmul.f32.gmra.mxu0 %v4158
        %v4388 = vpop.f32.mrf.mxu0
        %v4389 = vadd.f32 %v4334, %v4388
        %4390 = vmatmul.f32.gmra.mxu0 %v4161
        %v4391 = vpop.f32.mrf.mxu0
        %v4392 = vadd.f32 %v4334, %v4391
        %4393 = vmatmul.f32.gmra.mxu0 %v4164
        %v4394 = vpop.f32.mrf.mxu0
        %v4395 = vadd.f32 %v4334, %v4394
        %4396 = vmatmul.f32.gmra.mxu0 %v4167
        %v4397 = vpop.f32.mrf.mxu0
        %v4398 = vadd.f32 %v4334, %v4397
        %4399 = vmatmul.f32.gmra.mxu0 %v4170
        %v4400 = vpop.f32.mrf.mxu0
        %v4401 = vadd.f32 %v4334, %v4400
        %4402 = vmatmul.f32.gmra.mxu0 %v4173
        %v4403 = vpop.f32.mrf.mxu0
        %v4404 = vadd.f32 %v4334, %v4403
        %4405 = vmatmul.f32.gmra.mxu0 %v4176
        %v4406 = vpop.f32.mrf.mxu0
        %v4407 = vadd.f32 %v4334, %v4406
        %4408 = vmatmul.f32.gmra.mxu0 %v4179
        %v4409 = vpop.f32.mrf.mxu0
        %v4410 = vadd.f32 %v4334, %v4409
        %4411 = vmatmul.f32.gmra.mxu0 %v4182
        %v4412 = vpop.f32.mrf.mxu0
        %v4413 = vadd.f32 %v4334, %v4412
        %4414 = vmatmul.f32.gmra.mxu0 %v4185
        %v4415 = vpop.f32.mrf.mxu0
        %v4416 = vadd.f32 %v4334, %v4415
        %4417 = vmatmul.f32.gmra.mxu0 %v4188
        %v4418 = vpop.f32.mrf.mxu0
        %v4419 = vadd.f32 %v4334, %v4418
        %4420 = vmatmul.f32.gmra.mxu0 %v4191
        %v4421 = vpop.f32.mrf.mxu0
        %v4422 = vadd.f32 %v4334, %v4421
        %4423 = vmatmul.f32.gmra.mxu0 %v4194
        %v4424 = vpop.f32.mrf.mxu0
        %v4425 = vadd.f32 %v4334, %v4424
        %4426 = vmatmul.f32.gmra.mxu0 %v4197
        %v4427 = vpop.f32.mrf.mxu0
        %v4428 = vadd.f32 %v4334, %v4427
        %4429 = vmatmul.f32.gmra.mxu0 %v4200
        %v4430 = vpop.f32.mrf.mxu0
        %v4431 = vadd.f32 %v4334, %v4430
        %4432 = vmatmul.f32.gmra.mxu0 %v4203
        %v4433 = vpop.f32.mrf.mxu0
        %v4434 = vadd.f32 %v4334, %v4433
        %4435 = vmatmul.f32.gmra.mxu0 %v4206
        %v4436 = vpop.f32.mrf.mxu0
        %v4437 = vadd.f32 %v4334, %v4436
        %4438 = vmatmul.f32.gmra.mxu0 %v4209
        %v4439 = vpop.f32.mrf.mxu0
        %v4440 = vadd.f32 %v4334, %v4439
        %4441 = vmatmul.f32.gmra.mxu0 %v4212
        %v4442 = vpop.f32.mrf.mxu0
        %v4443 = vadd.f32 %v4334, %v4442
        %4444 = vmatmul.f32.gmra.mxu0 %v4215
        %v4445 = vpop.f32.mrf.mxu0
        %v4446 = vadd.f32 %v4334, %v4445
        %4447 = vdwg.mxu0
        %v4449 = vsel %vm757, %v4021, 0
        %v4452 = vsel %vm757, %v4024, 0
        %v4455 = vsel %vm757, %v4027, 0
        %v4458 = vsel %vm757, %v4030, 0
        %v4461 = vsel %vm757, %v4235, 0
        %v4464 = vsel %vm757, %v4238, 0
        %v4467 = vsel %vm757, %v4241, 0
        %v4470 = vsel %vm757, %v4244, 0
        %4472 = vmatpush.xpose.msra.mxu0 0.0
        %4473 = vmatpush.xpose.msra.mxu0 0.0
        %4474 = vmatpush.xpose.msra.mxu0 0.0
        %4475 = vmatpush.xpose.msra.mxu0 0.0
        %4476 = vmatpush.xpose.msra.mxu0 0.0
        %4477 = vmatpush.xpose.msra.mxu0 0.0
        %4478 = vmatpush.xpose.msra.mxu0 0.0
        %4479 = vmatpush.xpose.msra.mxu0 0.0
        %4480 = vmatpush.xpose.msra.mxu0 0.0
        %4481 = vmatpush.xpose.msra.mxu0 0.0
        %4482 = vmatpush.xpose.msra.mxu0 0.0
        %4483 = vmatpush.xpose.msra.mxu0 0.0
        %4484 = vmatpush.xpose.msra.mxu0 %v4470
        %4485 = vmatpush.xpose.msra.mxu0 %v4467
        %4486 = vmatpush.xpose.msra.mxu0 %v4464
        %4487 = vmatpush.xpose.msra.mxu0 %v4461
        %4488 = vmatmul.f32.gmra.mxu0 %v4449
        %v4489 = vpop.f32.mrf.mxu0
        %v4490 = vadd.f32 0.0, %v4489
        %4491 = vmatmul.f32.gmra.mxu0 %v4452
        %v4492 = vpop.f32.mrf.mxu0
        %v4493 = vadd.f32 0.0, %v4492
        %4494 = vmatmul.f32.gmra.mxu0 %v4455
        %v4495 = vpop.f32.mrf.mxu0
        %v4496 = vadd.f32 0.0, %v4495
        %4497 = vmatmul.f32.gmra.mxu0 %v4458
        %v4498 = vpop.f32.mrf.mxu0
        %v4499 = vadd.f32 0.0, %v4498
        %4500 = vdwg.mxu0
        %v4502 = vsel %vm757, %v4033, 0
        %v4505 = vsel %vm757, %v4036, 0
        %v4508 = vsel %vm757, %v4039, 0
        %v4511 = vsel %vm757, %v4042, 0
        %v4514 = vsel %vm757, %v4247, 0
        %v4517 = vsel %vm757, %v4250, 0
        %v4520 = vsel %vm757, %v4253, 0
        %v4523 = vsel %vm757, %v4256, 0
        %4525 = vmatpush.xpose.msra.mxu0 0.0
        %4526 = vmatpush.xpose.msra.mxu0 0.0
        %4527 = vmatpush.xpose.msra.mxu0 0.0
        %4528 = vmatpush.xpose.msra.mxu0 0.0
        %4529 = vmatpush.xpose.msra.mxu0 0.0
        %4530 = vmatpush.xpose.msra.mxu0 0.0
        %4531 = vmatpush.xpose.msra.mxu0 0.0
        %4532 = vmatpush.xpose.msra.mxu0 0.0
        %4533 = vmatpush.xpose.msra.mxu0 0.0
        %4534 = vmatpush.xpose.msra.mxu0 0.0
        %4535 = vmatpush.xpose.msra.mxu0 0.0
        %4536 = vmatpush.xpose.msra.mxu0 0.0
        %4537 = vmatpush.xpose.msra.mxu0 %v4523
        %4538 = vmatpush.xpose.msra.mxu0 %v4520
        %4539 = vmatpush.xpose.msra.mxu0 %v4517
        %4540 = vmatpush.xpose.msra.mxu0 %v4514
        %4541 = vmatmul.f32.gmra.mxu0 %v4502
        %v4542 = vpop.f32.mrf.mxu0
        %v4543 = vadd.f32 0.0, %v4542
        %4544 = vmatmul.f32.gmra.mxu0 %v4505
        %v4545 = vpop.f32.mrf.mxu0
        %v4546 = vadd.f32 0.0, %v4545
        %4547 = vmatmul.f32.gmra.mxu0 %v4508
        %v4548 = vpop.f32.mrf.mxu0
        %v4549 = vadd.f32 0.0, %v4548
        %4550 = vmatmul.f32.gmra.mxu0 %v4511
        %v4551 = vpop.f32.mrf.mxu0
        %v4552 = vadd.f32 0.0, %v4551
        %4553 = vdwg.mxu0
        %v4555 = vsel %vm757, %v4045, 0
        %v4558 = vsel %vm757, %v4048, 0
        %v4561 = vsel %vm757, %v4051, 0
        %v4564 = vsel %vm757, %v4054, 0
        %v4567 = vsel %vm757, %v4259, 0
        %v4570 = vsel %vm757, %v4262, 0
        %v4573 = vsel %vm757, %v4265, 0
        %v4576 = vsel %vm757, %v4268, 0
        %4578 = vmatpush.xpose.msra.mxu0 0.0
        %4579 = vmatpush.xpose.msra.mxu0 0.0
        %4580 = vmatpush.xpose.msra.mxu0 0.0
        %4581 = vmatpush.xpose.msra.mxu0 0.0
        %4582 = vmatpush.xpose.msra.mxu0 0.0
        %4583 = vmatpush.xpose.msra.mxu0 0.0
        %4584 = vmatpush.xpose.msra.mxu0 0.0
        %4585 = vmatpush.xpose.msra.mxu0 0.0
        %4586 = vmatpush.xpose.msra.mxu0 0.0
        %4587 = vmatpush.xpose.msra.mxu0 0.0
        %4588 = vmatpush.xpose.msra.mxu0 0.0
        %4589 = vmatpush.xpose.msra.mxu0 0.0
        %4590 = vmatpush.xpose.msra.mxu0 %v4576
        %4591 = vmatpush.xpose.msra.mxu0 %v4573
        %4592 = vmatpush.xpose.msra.mxu0 %v4570
        %4593 = vmatpush.xpose.msra.mxu0 %v4567
        %4594 = vmatmul.f32.gmra.mxu0 %v4555
        %v4595 = vpop.f32.mrf.mxu0
        %v4596 = vadd.f32 0.0, %v4595
        %4597 = vmatmul.f32.gmra.mxu0 %v4558
        %v4598 = vpop.f32.mrf.mxu0
        %v4599 = vadd.f32 0.0, %v4598
        %4600 = vmatmul.f32.gmra.mxu0 %v4561
        %v4601 = vpop.f32.mrf.mxu0
        %v4602 = vadd.f32 0.0, %v4601
        %4603 = vmatmul.f32.gmra.mxu0 %v4564
        %v4604 = vpop.f32.mrf.mxu0
        %v4605 = vadd.f32 0.0, %v4604
        %4606 = vdwg.mxu0
        %v4608 = vsel %vm757, %v4057, 0
        %v4611 = vsel %vm757, %v4060, 0
        %v4614 = vsel %vm757, %v4063, 0
        %v4617 = vsel %vm757, %v4066, 0
        %v4620 = vsel %vm757, %v4271, 0
        %v4623 = vsel %vm757, %v4274, 0
        %v4626 = vsel %vm757, %v4277, 0
        %v4629 = vsel %vm757, %v4280, 0
        %4631 = vmatpush.xpose.msra.mxu0 0.0
        %4632 = vmatpush.xpose.msra.mxu0 0.0
        %4633 = vmatpush.xpose.msra.mxu0 0.0
        %4634 = vmatpush.xpose.msra.mxu0 0.0
        %4635 = vmatpush.xpose.msra.mxu0 0.0
        %4636 = vmatpush.xpose.msra.mxu0 0.0
        %4637 = vmatpush.xpose.msra.mxu0 0.0
        %4638 = vmatpush.xpose.msra.mxu0 0.0
        %4639 = vmatpush.xpose.msra.mxu0 0.0
        %4640 = vmatpush.xpose.msra.mxu0 0.0
        %4641 = vmatpush.xpose.msra.mxu0 0.0
        %4642 = vmatpush.xpose.msra.mxu0 0.0
        %4643 = vmatpush.xpose.msra.mxu0 %v4629
        %4644 = vmatpush.xpose.msra.mxu0 %v4626
        %4645 = vmatpush.xpose.msra.mxu0 %v4623
        %4646 = vmatpush.xpose.msra.mxu0 %v4620
        %4647 = vmatmul.f32.gmra.mxu0 %v4608
        %v4648 = vpop.f32.mrf.mxu0
        %v4649 = vadd.f32 0.0, %v4648
        %4650 = vmatmul.f32.gmra.mxu0 %v4611
        %v4651 = vpop.f32.mrf.mxu0
        %v4652 = vadd.f32 0.0, %v4651
        %4653 = vmatmul.f32.gmra.mxu0 %v4614
        %v4654 = vpop.f32.mrf.mxu0
        %v4655 = vadd.f32 0.0, %v4654
        %4656 = vmatmul.f32.gmra.mxu0 %v4617
        %v4657 = vpop.f32.mrf.mxu0
        %v4658 = vadd.f32 0.0, %v4657
        %4659 = vdwg.mxu0
        %v4661 = vsel %vm757, %v4069, 0
        %v4664 = vsel %vm757, %v4072, 0
        %v4667 = vsel %vm757, %v4075, 0
        %v4670 = vsel %vm757, %v4078, 0
        %v4673 = vsel %vm757, %v4283, 0
        %v4676 = vsel %vm757, %v4286, 0
        %v4679 = vsel %vm757, %v4289, 0
        %v4682 = vsel %vm757, %v4292, 0
        %4684 = vmatpush.xpose.msra.mxu0 0.0
        %4685 = vmatpush.xpose.msra.mxu0 0.0
        %4686 = vmatpush.xpose.msra.mxu0 0.0
        %4687 = vmatpush.xpose.msra.mxu0 0.0
        %4688 = vmatpush.xpose.msra.mxu0 0.0
        %4689 = vmatpush.xpose.msra.mxu0 0.0
        %4690 = vmatpush.xpose.msra.mxu0 0.0
        %4691 = vmatpush.xpose.msra.mxu0 0.0
        %4692 = vmatpush.xpose.msra.mxu0 0.0
        %4693 = vmatpush.xpose.msra.mxu0 0.0
        %4694 = vmatpush.xpose.msra.mxu0 0.0
        %4695 = vmatpush.xpose.msra.mxu0 0.0
        %4696 = vmatpush.xpose.msra.mxu0 %v4682
        %4697 = vmatpush.xpose.msra.mxu0 %v4679
        %4698 = vmatpush.xpose.msra.mxu0 %v4676
        %4699 = vmatpush.xpose.msra.mxu0 %v4673
        %4700 = vmatmul.f32.gmra.mxu0 %v4661
        %v4701 = vpop.f32.mrf.mxu0
        %v4702 = vadd.f32 0.0, %v4701
        %4703 = vmatmul.f32.gmra.mxu0 %v4664
        %v4704 = vpop.f32.mrf.mxu0
        %v4705 = vadd.f32 0.0, %v4704
        %4706 = vmatmul.f32.gmra.mxu0 %v4667
        %v4707 = vpop.f32.mrf.mxu0
        %v4708 = vadd.f32 0.0, %v4707
        %4709 = vmatmul.f32.gmra.mxu0 %v4670
        %v4710 = vpop.f32.mrf.mxu0
        %v4711 = vadd.f32 0.0, %v4710
        %4712 = vdwg.mxu0
        %v4714 = vsel %vm757, %v4081, 0
        %v4717 = vsel %vm757, %v4084, 0
        %v4720 = vsel %vm757, %v4087, 0
        %v4723 = vsel %vm757, %v4090, 0
        %v4726 = vsel %vm757, %v4295, 0
        %v4729 = vsel %vm757, %v4298, 0
        %v4732 = vsel %vm757, %v4301, 0
        %v4735 = vsel %vm757, %v4304, 0
        %4737 = vmatpush.xpose.msra.mxu0 0.0
        %4738 = vmatpush.xpose.msra.mxu0 0.0
        %4739 = vmatpush.xpose.msra.mxu0 0.0
        %4740 = vmatpush.xpose.msra.mxu0 0.0
        %4741 = vmatpush.xpose.msra.mxu0 0.0
        %4742 = vmatpush.xpose.msra.mxu0 0.0
        %4743 = vmatpush.xpose.msra.mxu0 0.0
        %4744 = vmatpush.xpose.msra.mxu0 0.0
        %4745 = vmatpush.xpose.msra.mxu0 0.0
        %4746 = vmatpush.xpose.msra.mxu0 0.0
        %4747 = vmatpush.xpose.msra.mxu0 0.0
        %4748 = vmatpush.xpose.msra.mxu0 0.0
        %4749 = vmatpush.xpose.msra.mxu0 %v4735
        %4750 = vmatpush.xpose.msra.mxu0 %v4732
        %4751 = vmatpush.xpose.msra.mxu0 %v4729
        %4752 = vmatpush.xpose.msra.mxu0 %v4726
        %4753 = vmatmul.f32.gmra.mxu0 %v4714
        %v4754 = vpop.f32.mrf.mxu0
        %v4755 = vadd.f32 0.0, %v4754
        %4756 = vmatmul.f32.gmra.mxu0 %v4717
        %v4757 = vpop.f32.mrf.mxu0
        %v4758 = vadd.f32 0.0, %v4757
        %4759 = vmatmul.f32.gmra.mxu0 %v4720
        %v4760 = vpop.f32.mrf.mxu0
        %v4761 = vadd.f32 0.0, %v4760
        %4762 = vmatmul.f32.gmra.mxu0 %v4723
        %v4763 = vpop.f32.mrf.mxu0
        %v4764 = vadd.f32 0.0, %v4763
        %4765 = vdwg.mxu0
        %v4767 = vsel %vm757, %v4093, 0
        %v4770 = vsel %vm757, %v4096, 0
        %v4773 = vsel %vm757, %v4099, 0
        %v4776 = vsel %vm757, %v4102, 0
        %v4779 = vsel %vm757, %v4307, 0
        %v4782 = vsel %vm757, %v4310, 0
        %v4785 = vsel %vm757, %v4313, 0
        %v4788 = vsel %vm757, %v4316, 0
        %4790 = vmatpush.xpose.msra.mxu0 0.0
        %4791 = vmatpush.xpose.msra.mxu0 0.0
        %4792 = vmatpush.xpose.msra.mxu0 0.0
        %4793 = vmatpush.xpose.msra.mxu0 0.0
        %4794 = vmatpush.xpose.msra.mxu0 0.0
        %4795 = vmatpush.xpose.msra.mxu0 0.0
        %4796 = vmatpush.xpose.msra.mxu0 0.0
        %4797 = vmatpush.xpose.msra.mxu0 0.0
        %4798 = vmatpush.xpose.msra.mxu0 0.0
        %4799 = vmatpush.xpose.msra.mxu0 0.0
        %4800 = vmatpush.xpose.msra.mxu0 0.0
        %4801 = vmatpush.xpose.msra.mxu0 0.0
        %4802 = vmatpush.xpose.msra.mxu0 %v4788
        %4803 = vmatpush.xpose.msra.mxu0 %v4785
        %4804 = vmatpush.xpose.msra.mxu0 %v4782
        %4805 = vmatpush.xpose.msra.mxu0 %v4779
        %4806 = vmatmul.f32.gmra.mxu0 %v4767
        %v4807 = vpop.f32.mrf.mxu0
        %v4808 = vadd.f32 0.0, %v4807
        %4809 = vmatmul.f32.gmra.mxu0 %v4770
        %v4810 = vpop.f32.mrf.mxu0
        %v4811 = vadd.f32 0.0, %v4810
        %4812 = vmatmul.f32.gmra.mxu0 %v4773
        %v4813 = vpop.f32.mrf.mxu0
        %v4814 = vadd.f32 0.0, %v4813
        %4815 = vmatmul.f32.gmra.mxu0 %v4776
        %v4816 = vpop.f32.mrf.mxu0
        %v4817 = vadd.f32 0.0, %v4816
        %4818 = vdwg.mxu0
        %v4820 = vsel %vm757, %v4105, 0
        %v4823 = vsel %vm757, %v4108, 0
        %v4826 = vsel %vm757, %v4111, 0
        %v4829 = vsel %vm757, %v4114, 0
        %v4832 = vsel %vm757, %v4319, 0
        %v4835 = vsel %vm757, %v4322, 0
        %v4838 = vsel %vm757, %v4325, 0
        %v4841 = vsel %vm757, %v4328, 0
        %4843 = vmatpush.xpose.msra.mxu0 0.0
        %4844 = vmatpush.xpose.msra.mxu0 0.0
        %4845 = vmatpush.xpose.msra.mxu0 0.0
        %4846 = vmatpush.xpose.msra.mxu0 0.0
        %4847 = vmatpush.xpose.msra.mxu0 0.0
        %4848 = vmatpush.xpose.msra.mxu0 0.0
        %4849 = vmatpush.xpose.msra.mxu0 0.0
        %4850 = vmatpush.xpose.msra.mxu0 0.0
        %4851 = vmatpush.xpose.msra.mxu0 0.0
        %4852 = vmatpush.xpose.msra.mxu0 0.0
        %4853 = vmatpush.xpose.msra.mxu0 0.0
        %4854 = vmatpush.xpose.msra.mxu0 0.0
        %4855 = vmatpush.xpose.msra.mxu0 %v4841
        %4856 = vmatpush.xpose.msra.mxu0 %v4838
        %4857 = vmatpush.xpose.msra.mxu0 %v4835
        %4858 = vmatpush.xpose.msra.mxu0 %v4832
        %4859 = vmatmul.f32.gmra.mxu0 %v4820
        %v4860 = vpop.f32.mrf.mxu0
        %v4861 = vadd.f32 0.0, %v4860
        %4862 = vmatmul.f32.gmra.mxu0 %v4823
        %v4863 = vpop.f32.mrf.mxu0
        %v4864 = vadd.f32 0.0, %v4863
        %4865 = vmatmul.f32.gmra.mxu0 %v4826
        %v4866 = vpop.f32.mrf.mxu0
        %v4867 = vadd.f32 0.0, %v4866
        %4868 = vmatmul.f32.gmra.mxu0 %v4829
        %v4869 = vpop.f32.mrf.mxu0
        %v4870 = vadd.f32 0.0, %v4869
        %4871 = vdwg.mxu0
        %v4872 = vsel %vm757, %v4490, -inf
        %4873 = vmax.xlane.f32.xlu0 %v4872
        %v4874 = vpop.xlane.xlu0 %4873
        %v4875 = vsel %vm757, %v4493, -inf
        %4876 = vmax.xlane.f32.xlu0 %v4875
        %v4877 = vpop.xlane.xlu0 %4876
        %v4878 = vsel %vm757, %v4496, -inf
        %4879 = vmax.xlane.f32.xlu0 %v4878
        %v4880 = vpop.xlane.xlu0 %4879
        %v4881 = vsel %vm757, %v4499, -inf
        %4882 = vmax.xlane.f32.xlu0 %v4881
        %v4883 = vpop.xlane.xlu0 %4882
        %v4884 = vsel %vm757, %v4543, -inf
        %4885 = vmax.xlane.f32.xlu0 %v4884
        %v4886 = vpop.xlane.xlu0 %4885
        %v4887 = vsel %vm757, %v4546, -inf
        %4888 = vmax.xlane.f32.xlu0 %v4887
        %v4889 = vpop.xlane.xlu0 %4888
        %v4890 = vsel %vm757, %v4549, -inf
        %4891 = vmax.xlane.f32.xlu0 %v4890
        %v4892 = vpop.xlane.xlu0 %4891
        %v4893 = vsel %vm757, %v4552, -inf
        %4894 = vmax.xlane.f32.xlu0 %v4893
        %v4895 = vpop.xlane.xlu0 %4894
        %v4896 = vsel %vm757, %v4596, -inf
        %4897 = vmax.xlane.f32.xlu0 %v4896
        %v4898 = vpop.xlane.xlu0 %4897
        %v4899 = vsel %vm757, %v4599, -inf
        %4900 = vmax.xlane.f32.xlu0 %v4899
        %v4901 = vpop.xlane.xlu0 %4900
        %v4902 = vsel %vm757, %v4602, -inf
        %4903 = vmax.xlane.f32.xlu0 %v4902
        %v4904 = vpop.xlane.xlu0 %4903
        %v4905 = vsel %vm757, %v4605, -inf
        %4906 = vmax.xlane.f32.xlu0 %v4905
        %v4907 = vpop.xlane.xlu0 %4906
        %v4908 = vsel %vm757, %v4649, -inf
        %4909 = vmax.xlane.f32.xlu0 %v4908
        %v4910 = vpop.xlane.xlu0 %4909
        %v4911 = vsel %vm757, %v4652, -inf
        %4912 = vmax.xlane.f32.xlu0 %v4911
        %v4913 = vpop.xlane.xlu0 %4912
        %v4914 = vsel %vm757, %v4655, -inf
        %4915 = vmax.xlane.f32.xlu0 %v4914
        %v4916 = vpop.xlane.xlu0 %4915
        %v4917 = vsel %vm757, %v4658, -inf
        %4918 = vmax.xlane.f32.xlu0 %v4917
        %v4919 = vpop.xlane.xlu0 %4918
        %v4920 = vsel %vm757, %v4702, -inf
        %4921 = vmax.xlane.f32.xlu0 %v4920
        %v4922 = vpop.xlane.xlu0 %4921
        %v4923 = vsel %vm757, %v4705, -inf
        %4924 = vmax.xlane.f32.xlu0 %v4923
        %v4925 = vpop.xlane.xlu0 %4924
        %v4926 = vsel %vm757, %v4708, -inf
        %4927 = vmax.xlane.f32.xlu0 %v4926
        %v4928 = vpop.xlane.xlu0 %4927
        %v4929 = vsel %vm757, %v4711, -inf
        %4930 = vmax.xlane.f32.xlu0 %v4929
        %v4931 = vpop.xlane.xlu0 %4930
        %v4932 = vsel %vm757, %v4755, -inf
        %4933 = vmax.xlane.f32.xlu0 %v4932
        %v4934 = vpop.xlane.xlu0 %4933
        %v4935 = vsel %vm757, %v4758, -inf
        %4936 = vmax.xlane.f32.xlu0 %v4935
        %v4937 = vpop.xlane.xlu0 %4936
        %v4938 = vsel %vm757, %v4761, -inf
        %4939 = vmax.xlane.f32.xlu0 %v4938
        %v4940 = vpop.xlane.xlu0 %4939
        %v4941 = vsel %vm757, %v4764, -inf
        %4942 = vmax.xlane.f32.xlu0 %v4941
        %v4943 = vpop.xlane.xlu0 %4942
        %v4944 = vsel %vm757, %v4808, -inf
        %4945 = vmax.xlane.f32.xlu0 %v4944
        %v4946 = vpop.xlane.xlu0 %4945
        %v4947 = vsel %vm757, %v4811, -inf
        %4948 = vmax.xlane.f32.xlu0 %v4947
        %v4949 = vpop.xlane.xlu0 %4948
        %v4950 = vsel %vm757, %v4814, -inf
        %4951 = vmax.xlane.f32.xlu0 %v4950
        %v4952 = vpop.xlane.xlu0 %4951
        %v4953 = vsel %vm757, %v4817, -inf
        %4954 = vmax.xlane.f32.xlu0 %v4953
        %v4955 = vpop.xlane.xlu0 %4954
        %v4956 = vsel %vm757, %v4861, -inf
        %4957 = vmax.xlane.f32.xlu0 %v4956
        %v4958 = vpop.xlane.xlu0 %4957
        %v4959 = vsel %vm757, %v4864, -inf
        %4960 = vmax.xlane.f32.xlu0 %v4959
        %v4961 = vpop.xlane.xlu0 %4960
        %v4962 = vsel %vm757, %v4867, -inf
        %4963 = vmax.xlane.f32.xlu0 %v4962
        %v4964 = vpop.xlane.xlu0 %4963
        %v4965 = vsel %vm757, %v4870, -inf
        %4966 = vmax.xlane.f32.xlu0 %v4965
        %v4967 = vpop.xlane.xlu0 %4966
        %v4968 = vsub.f32 %v4490, %v4874
        %v4969 = vsub.f32 %v4493, %v4877
        %v4970 = vsub.f32 %v4496, %v4880
        %v4971 = vsub.f32 %v4499, %v4883
        %v4972 = vsub.f32 %v4543, %v4886
        %v4973 = vsub.f32 %v4546, %v4889
        %v4974 = vsub.f32 %v4549, %v4892
        %v4975 = vsub.f32 %v4552, %v4895
        %v4976 = vsub.f32 %v4596, %v4898
        %v4977 = vsub.f32 %v4599, %v4901
        %v4978 = vsub.f32 %v4602, %v4904
        %v4979 = vsub.f32 %v4605, %v4907
        %v4980 = vsub.f32 %v4649, %v4910
        %v4981 = vsub.f32 %v4652, %v4913
        %v4982 = vsub.f32 %v4655, %v4916
        %v4983 = vsub.f32 %v4658, %v4919
        %v4984 = vsub.f32 %v4702, %v4922
        %v4985 = vsub.f32 %v4705, %v4925
        %v4986 = vsub.f32 %v4708, %v4928
        %v4987 = vsub.f32 %v4711, %v4931
        %v4988 = vsub.f32 %v4755, %v4934
        %v4989 = vsub.f32 %v4758, %v4937
        %v4990 = vsub.f32 %v4761, %v4940
        %v4991 = vsub.f32 %v4764, %v4943
        %v4992 = vsub.f32 %v4808, %v4946
        %v4993 = vsub.f32 %v4811, %v4949
        %v4994 = vsub.f32 %v4814, %v4952
        %v4995 = vsub.f32 %v4817, %v4955
        %v4996 = vsub.f32 %v4861, %v4958
        %v4997 = vsub.f32 %v4864, %v4961
        %v4998 = vsub.f32 %v4867, %v4964
        %v4999 = vsub.f32 %v4870, %v4967
        %v5000 = vmul.f32 %v4968, 1.442695
        %v5001 = vpow.pop %v5000
        %v5002 = vmul.f32 %v4969, 1.442695
        %v5003 = vpow.pop %v5002
        %v5004 = vmul.f32 %v4970, 1.442695
        %v5005 = vpow.pop %v5004
        %v5006 = vmul.f32 %v4971, 1.442695
        %v5007 = vpow.pop %v5006
        %v5008 = vmul.f32 %v4972, 1.442695
        %v5009 = vpow.pop %v5008
        %v5010 = vmul.f32 %v4973, 1.442695
        %v5011 = vpow.pop %v5010
        %v5012 = vmul.f32 %v4974, 1.442695
        %v5013 = vpow.pop %v5012
        %v5014 = vmul.f32 %v4975, 1.442695
        %v5015 = vpow.pop %v5014
        %v5016 = vmul.f32 %v4976, 1.442695
        %v5017 = vpow.pop %v5016
        %v5018 = vmul.f32 %v4977, 1.442695
        %v5019 = vpow.pop %v5018
        %v5020 = vmul.f32 %v4978, 1.442695
        %v5021 = vpow.pop %v5020
        %v5022 = vmul.f32 %v4979, 1.442695
        %v5023 = vpow.pop %v5022
        %v5024 = vmul.f32 %v4980, 1.442695
        %v5025 = vpow.pop %v5024
        %v5026 = vmul.f32 %v4981, 1.442695
        %v5027 = vpow.pop %v5026
        %v5028 = vmul.f32 %v4982, 1.442695
        %v5029 = vpow.pop %v5028
        %v5030 = vmul.f32 %v4983, 1.442695
        %v5031 = vpow.pop %v5030
        %v5032 = vmul.f32 %v4984, 1.442695
        %v5033 = vpow.pop %v5032
        %v5034 = vmul.f32 %v4985, 1.442695
        %v5035 = vpow.pop %v5034
        %v5036 = vmul.f32 %v4986, 1.442695
        %v5037 = vpow.pop %v5036
        %v5038 = vmul.f32 %v4987, 1.442695
        %v5039 = vpow.pop %v5038
        %v5040 = vmul.f32 %v4988, 1.442695
        %v5041 = vpow.pop %v5040
        %v5042 = vmul.f32 %v4989, 1.442695
        %v5043 = vpow.pop %v5042
        %v5044 = vmul.f32 %v4990, 1.442695
        %v5045 = vpow.pop %v5044
        %v5046 = vmul.f32 %v4991, 1.442695
        %v5047 = vpow.pop %v5046
        %v5048 = vmul.f32 %v4992, 1.442695
        %v5049 = vpow.pop %v5048
        %v5050 = vmul.f32 %v4993, 1.442695
        %v5051 = vpow.pop %v5050
        %v5052 = vmul.f32 %v4994, 1.442695
        %v5053 = vpow.pop %v5052
        %v5054 = vmul.f32 %v4995, 1.442695
        %v5055 = vpow.pop %v5054
        %v5056 = vmul.f32 %v4996, 1.442695
        %v5057 = vpow.pop %v5056
        %v5058 = vmul.f32 %v4997, 1.442695
        %v5059 = vpow.pop %v5058
        %v5060 = vmul.f32 %v4998, 1.442695
        %v5061 = vpow.pop %v5060
        %v5062 = vmul.f32 %v4999, 1.442695
        %v5063 = vpow.pop %v5062
        %v5064 = vsel %vm757, %v5001, 0.0
        %5065 = vadd.xlane.f32.xlu0 %v5064
        %v5066 = vpop.xlane.xlu0 %5065
        %v5067 = vsel %vm757, %v5003, 0.0
        %5068 = vadd.xlane.f32.xlu0 %v5067
        %v5069 = vpop.xlane.xlu0 %5068
        %v5070 = vsel %vm757, %v5005, 0.0
        %5071 = vadd.xlane.f32.xlu0 %v5070
        %v5072 = vpop.xlane.xlu0 %5071
        %v5073 = vsel %vm757, %v5007, 0.0
        %5074 = vadd.xlane.f32.xlu0 %v5073
        %v5075 = vpop.xlane.xlu0 %5074
        %v5076 = vsel %vm757, %v5009, 0.0
        %5077 = vadd.xlane.f32.xlu0 %v5076
        %v5078 = vpop.xlane.xlu0 %5077
        %v5079 = vsel %vm757, %v5011, 0.0
        %5080 = vadd.xlane.f32.xlu0 %v5079
        %v5081 = vpop.xlane.xlu0 %5080
        %v5082 = vsel %vm757, %v5013, 0.0
        %5083 = vadd.xlane.f32.xlu0 %v5082
        %v5084 = vpop.xlane.xlu0 %5083
        %v5085 = vsel %vm757, %v5015, 0.0
        %5086 = vadd.xlane.f32.xlu0 %v5085
        %v5087 = vpop.xlane.xlu0 %5086
        %v5088 = vsel %vm757, %v5017, 0.0
        %5089 = vadd.xlane.f32.xlu0 %v5088
        %v5090 = vpop.xlane.xlu0 %5089
        %v5091 = vsel %vm757, %v5019, 0.0
        %5092 = vadd.xlane.f32.xlu0 %v5091
        %v5093 = vpop.xlane.xlu0 %5092
        %v5094 = vsel %vm757, %v5021, 0.0
        %5095 = vadd.xlane.f32.xlu0 %v5094
        %v5096 = vpop.xlane.xlu0 %5095
        %v5097 = vsel %vm757, %v5023, 0.0
        %5098 = vadd.xlane.f32.xlu0 %v5097
        %v5099 = vpop.xlane.xlu0 %5098
        %v5100 = vsel %vm757, %v5025, 0.0
        %5101 = vadd.xlane.f32.xlu0 %v5100
        %v5102 = vpop.xlane.xlu0 %5101
        %v5103 = vsel %vm757, %v5027, 0.0
        %5104 = vadd.xlane.f32.xlu0 %v5103
        %v5105 = vpop.xlane.xlu0 %5104
        %v5106 = vsel %vm757, %v5029, 0.0
        %5107 = vadd.xlane.f32.xlu0 %v5106
        %v5108 = vpop.xlane.xlu0 %5107
        %v5109 = vsel %vm757, %v5031, 0.0
        %5110 = vadd.xlane.f32.xlu0 %v5109
        %v5111 = vpop.xlane.xlu0 %5110
        %v5112 = vsel %vm757, %v5033, 0.0
        %5113 = vadd.xlane.f32.xlu0 %v5112
        %v5114 = vpop.xlane.xlu0 %5113
        %v5115 = vsel %vm757, %v5035, 0.0
        %5116 = vadd.xlane.f32.xlu0 %v5115
        %v5117 = vpop.xlane.xlu0 %5116
        %v5118 = vsel %vm757, %v5037, 0.0
        %5119 = vadd.xlane.f32.xlu0 %v5118
        %v5120 = vpop.xlane.xlu0 %5119
        %v5121 = vsel %vm757, %v5039, 0.0
        %5122 = vadd.xlane.f32.xlu0 %v5121
        %v5123 = vpop.xlane.xlu0 %5122
        %v5124 = vsel %vm757, %v5041, 0.0
        %5125 = vadd.xlane.f32.xlu0 %v5124
        %v5126 = vpop.xlane.xlu0 %5125
        %v5127 = vsel %vm757, %v5043, 0.0
        %5128 = vadd.xlane.f32.xlu0 %v5127
        %v5129 = vpop.xlane.xlu0 %5128
        %v5130 = vsel %vm757, %v5045, 0.0
        %5131 = vadd.xlane.f32.xlu0 %v5130
        %v5132 = vpop.xlane.xlu0 %5131
        %v5133 = vsel %vm757, %v5047, 0.0
        %5134 = vadd.xlane.f32.xlu0 %v5133
        %v5135 = vpop.xlane.xlu0 %5134
        %v5136 = vsel %vm757, %v5049, 0.0
        %5137 = vadd.xlane.f32.xlu0 %v5136
        %v5138 = vpop.xlane.xlu0 %5137
        %v5139 = vsel %vm757, %v5051, 0.0
        %5140 = vadd.xlane.f32.xlu0 %v5139
        %v5141 = vpop.xlane.xlu0 %5140
        %v5142 = vsel %vm757, %v5053, 0.0
        %5143 = vadd.xlane.f32.xlu0 %v5142
        %v5144 = vpop.xlane.xlu0 %5143
        %v5145 = vsel %vm757, %v5055, 0.0
        %5146 = vadd.xlane.f32.xlu0 %v5145
        %v5147 = vpop.xlane.xlu0 %5146
        %v5148 = vsel %vm757, %v5057, 0.0
        %5149 = vadd.xlane.f32.xlu0 %v5148
        %v5150 = vpop.xlane.xlu0 %5149
        %v5151 = vsel %vm757, %v5059, 0.0
        %5152 = vadd.xlane.f32.xlu0 %v5151
        %v5153 = vpop.xlane.xlu0 %5152
        %v5154 = vsel %vm757, %v5061, 0.0
        %5155 = vadd.xlane.f32.xlu0 %v5154
        %v5156 = vpop.xlane.xlu0 %5155
        %v5157 = vsel %vm757, %v5063, 0.0
        %5158 = vadd.xlane.f32.xlu0 %v5157
        %v5159 = vpop.xlane.xlu0 %5158
        %v5160 = vrcp.pop %v5066
        %v5161 = vmul.f32 %v5066, %v5160
        %v5162 = vsub.f32 1.0, %v5161
        %v5163 = vmul.f32 %v5160, %v5162
        %v5164 = vadd.f32 %v5160, %v5163
        %vm5165 = vweird.f32 %v5066
        %vm5166 = vweird.f32 %v5160
        %vm5167 = vmor %vm5165, %vm5166
        %v5168 = vsel %vm5167, %v5160, %v5164
        %v5169 = vand.u32 2147483647, %v5066
        %vm5170 = vcmp.eq.f32.partialorder %v5169, 8.507059e+37
        %v5171 = vand.u32 %v5066, 2147483648
        %v5172 = vor.u32 1.1754944e-38, %v5171
        %v5173 = vsel %vm5170, %v5172, %v5168
        %v5174 = vrcp.pop %v5069
        %v5175 = vmul.f32 %v5069, %v5174
        %v5176 = vsub.f32 1.0, %v5175
        %v5177 = vmul.f32 %v5174, %v5176
        %v5178 = vadd.f32 %v5174, %v5177
        %vm5179 = vweird.f32 %v5069
        %vm5180 = vweird.f32 %v5174
        %vm5181 = vmor %vm5179, %vm5180
        %v5182 = vsel %vm5181, %v5174, %v5178
        %v5183 = vand.u32 2147483647, %v5069
        %vm5184 = vcmp.eq.f32.partialorder %v5183, 8.507059e+37
        %v5185 = vand.u32 %v5069, 2147483648
        %v5186 = vor.u32 1.1754944e-38, %v5185
        %v5187 = vsel %vm5184, %v5186, %v5182
        %v5188 = vrcp.pop %v5072
        %v5189 = vmul.f32 %v5072, %v5188
        %v5190 = vsub.f32 1.0, %v5189
        %v5191 = vmul.f32 %v5188, %v5190
        %v5192 = vadd.f32 %v5188, %v5191
        %vm5193 = vweird.f32 %v5072
        %vm5194 = vweird.f32 %v5188
        %vm5195 = vmor %vm5193, %vm5194
        %v5196 = vsel %vm5195, %v5188, %v5192
        %v5197 = vand.u32 2147483647, %v5072
        %vm5198 = vcmp.eq.f32.partialorder %v5197, 8.507059e+37
        %v5199 = vand.u32 %v5072, 2147483648
        %v5200 = vor.u32 1.1754944e-38, %v5199
        %v5201 = vsel %vm5198, %v5200, %v5196
        %v5202 = vrcp.pop %v5075
        %v5203 = vmul.f32 %v5075, %v5202
        %v5204 = vsub.f32 1.0, %v5203
        %v5205 = vmul.f32 %v5202, %v5204
        %v5206 = vadd.f32 %v5202, %v5205
        %vm5207 = vweird.f32 %v5075
        %vm5208 = vweird.f32 %v5202
        %vm5209 = vmor %vm5207, %vm5208
        %v5210 = vsel %vm5209, %v5202, %v5206
        %v5211 = vand.u32 2147483647, %v5075
        %vm5212 = vcmp.eq.f32.partialorder %v5211, 8.507059e+37
        %v5213 = vand.u32 %v5075, 2147483648
        %v5214 = vor.u32 1.1754944e-38, %v5213
        %v5215 = vsel %vm5212, %v5214, %v5210
        %v5216 = vrcp.pop %v5078
        %v5217 = vmul.f32 %v5078, %v5216
        %v5218 = vsub.f32 1.0, %v5217
        %v5219 = vmul.f32 %v5216, %v5218
        %v5220 = vadd.f32 %v5216, %v5219
        %vm5221 = vweird.f32 %v5078
        %vm5222 = vweird.f32 %v5216
        %vm5223 = vmor %vm5221, %vm5222
        %v5224 = vsel %vm5223, %v5216, %v5220
        %v5225 = vand.u32 2147483647, %v5078
        %vm5226 = vcmp.eq.f32.partialorder %v5225, 8.507059e+37
        %v5227 = vand.u32 %v5078, 2147483648
        %v5228 = vor.u32 1.1754944e-38, %v5227
        %v5229 = vsel %vm5226, %v5228, %v5224
        %v5230 = vrcp.pop %v5081
        %v5231 = vmul.f32 %v5081, %v5230
        %v5232 = vsub.f32 1.0, %v5231
        %v5233 = vmul.f32 %v5230, %v5232
        %v5234 = vadd.f32 %v5230, %v5233
        %vm5235 = vweird.f32 %v5081
        %vm5236 = vweird.f32 %v5230
        %vm5237 = vmor %vm5235, %vm5236
        %v5238 = vsel %vm5237, %v5230, %v5234
        %v5239 = vand.u32 2147483647, %v5081
        %vm5240 = vcmp.eq.f32.partialorder %v5239, 8.507059e+37
        %v5241 = vand.u32 %v5081, 2147483648
        %v5242 = vor.u32 1.1754944e-38, %v5241
        %v5243 = vsel %vm5240, %v5242, %v5238
        %v5244 = vrcp.pop %v5084
        %v5245 = vmul.f32 %v5084, %v5244
        %v5246 = vsub.f32 1.0, %v5245
        %v5247 = vmul.f32 %v5244, %v5246
        %v5248 = vadd.f32 %v5244, %v5247
        %vm5249 = vweird.f32 %v5084
        %vm5250 = vweird.f32 %v5244
        %vm5251 = vmor %vm5249, %vm5250
        %v5252 = vsel %vm5251, %v5244, %v5248
        %v5253 = vand.u32 2147483647, %v5084
        %vm5254 = vcmp.eq.f32.partialorder %v5253, 8.507059e+37
        %v5255 = vand.u32 %v5084, 2147483648
        %v5256 = vor.u32 1.1754944e-38, %v5255
        %v5257 = vsel %vm5254, %v5256, %v5252
        %v5258 = vrcp.pop %v5087
        %v5259 = vmul.f32 %v5087, %v5258
        %v5260 = vsub.f32 1.0, %v5259
        %v5261 = vmul.f32 %v5258, %v5260
        %v5262 = vadd.f32 %v5258, %v5261
        %vm5263 = vweird.f32 %v5087
        %vm5264 = vweird.f32 %v5258
        %vm5265 = vmor %vm5263, %vm5264
        %v5266 = vsel %vm5265, %v5258, %v5262
        %v5267 = vand.u32 2147483647, %v5087
        %vm5268 = vcmp.eq.f32.partialorder %v5267, 8.507059e+37
        %v5269 = vand.u32 %v5087, 2147483648
        %v5270 = vor.u32 1.1754944e-38, %v5269
        %v5271 = vsel %vm5268, %v5270, %v5266
        %v5272 = vrcp.pop %v5090
        %v5273 = vmul.f32 %v5090, %v5272
        %v5274 = vsub.f32 1.0, %v5273
        %v5275 = vmul.f32 %v5272, %v5274
        %v5276 = vadd.f32 %v5272, %v5275
        %vm5277 = vweird.f32 %v5090
        %vm5278 = vweird.f32 %v5272
        %vm5279 = vmor %vm5277, %vm5278
        %v5280 = vsel %vm5279, %v5272, %v5276
        %v5281 = vand.u32 2147483647, %v5090
        %vm5282 = vcmp.eq.f32.partialorder %v5281, 8.507059e+37
        %v5283 = vand.u32 %v5090, 2147483648
        %v5284 = vor.u32 1.1754944e-38, %v5283
        %v5285 = vsel %vm5282, %v5284, %v5280
        %v5286 = vrcp.pop %v5093
        %v5287 = vmul.f32 %v5093, %v5286
        %v5288 = vsub.f32 1.0, %v5287
        %v5289 = vmul.f32 %v5286, %v5288
        %v5290 = vadd.f32 %v5286, %v5289
        %vm5291 = vweird.f32 %v5093
        %vm5292 = vweird.f32 %v5286
        %vm5293 = vmor %vm5291, %vm5292
        %v5294 = vsel %vm5293, %v5286, %v5290
        %v5295 = vand.u32 2147483647, %v5093
        %vm5296 = vcmp.eq.f32.partialorder %v5295, 8.507059e+37
        %v5297 = vand.u32 %v5093, 2147483648
        %v5298 = vor.u32 1.1754944e-38, %v5297
        %v5299 = vsel %vm5296, %v5298, %v5294
        %v5300 = vrcp.pop %v5096
        %v5301 = vmul.f32 %v5096, %v5300
        %v5302 = vsub.f32 1.0, %v5301
        %v5303 = vmul.f32 %v5300, %v5302
        %v5304 = vadd.f32 %v5300, %v5303
        %vm5305 = vweird.f32 %v5096
        %vm5306 = vweird.f32 %v5300
        %vm5307 = vmor %vm5305, %vm5306
        %v5308 = vsel %vm5307, %v5300, %v5304
        %v5309 = vand.u32 2147483647, %v5096
        %vm5310 = vcmp.eq.f32.partialorder %v5309, 8.507059e+37
        %v5311 = vand.u32 %v5096, 2147483648
        %v5312 = vor.u32 1.1754944e-38, %v5311
        %v5313 = vsel %vm5310, %v5312, %v5308
        %v5314 = vrcp.pop %v5099
        %v5315 = vmul.f32 %v5099, %v5314
        %v5316 = vsub.f32 1.0, %v5315
        %v5317 = vmul.f32 %v5314, %v5316
        %v5318 = vadd.f32 %v5314, %v5317
        %vm5319 = vweird.f32 %v5099
        %vm5320 = vweird.f32 %v5314
        %vm5321 = vmor %vm5319, %vm5320
        %v5322 = vsel %vm5321, %v5314, %v5318
        %v5323 = vand.u32 2147483647, %v5099
        %vm5324 = vcmp.eq.f32.partialorder %v5323, 8.507059e+37
        %v5325 = vand.u32 %v5099, 2147483648
        %v5326 = vor.u32 1.1754944e-38, %v5325
        %v5327 = vsel %vm5324, %v5326, %v5322
        %v5328 = vrcp.pop %v5102
        %v5329 = vmul.f32 %v5102, %v5328
        %v5330 = vsub.f32 1.0, %v5329
        %v5331 = vmul.f32 %v5328, %v5330
        %v5332 = vadd.f32 %v5328, %v5331
        %vm5333 = vweird.f32 %v5102
        %vm5334 = vweird.f32 %v5328
        %vm5335 = vmor %vm5333, %vm5334
        %v5336 = vsel %vm5335, %v5328, %v5332
        %v5337 = vand.u32 2147483647, %v5102
        %vm5338 = vcmp.eq.f32.partialorder %v5337, 8.507059e+37
        %v5339 = vand.u32 %v5102, 2147483648
        %v5340 = vor.u32 1.1754944e-38, %v5339
        %v5341 = vsel %vm5338, %v5340, %v5336
        %v5342 = vrcp.pop %v5105
        %v5343 = vmul.f32 %v5105, %v5342
        %v5344 = vsub.f32 1.0, %v5343
        %v5345 = vmul.f32 %v5342, %v5344
        %v5346 = vadd.f32 %v5342, %v5345
        %vm5347 = vweird.f32 %v5105
        %vm5348 = vweird.f32 %v5342
        %vm5349 = vmor %vm5347, %vm5348
        %v5350 = vsel %vm5349, %v5342, %v5346
        %v5351 = vand.u32 2147483647, %v5105
        %vm5352 = vcmp.eq.f32.partialorder %v5351, 8.507059e+37
        %v5353 = vand.u32 %v5105, 2147483648
        %v5354 = vor.u32 1.1754944e-38, %v5353
        %v5355 = vsel %vm5352, %v5354, %v5350
        %v5356 = vrcp.pop %v5108
        %v5357 = vmul.f32 %v5108, %v5356
        %v5358 = vsub.f32 1.0, %v5357
        %v5359 = vmul.f32 %v5356, %v5358
        %v5360 = vadd.f32 %v5356, %v5359
        %vm5361 = vweird.f32 %v5108
        %vm5362 = vweird.f32 %v5356
        %vm5363 = vmor %vm5361, %vm5362
        %v5364 = vsel %vm5363, %v5356, %v5360
        %v5365 = vand.u32 2147483647, %v5108
        %vm5366 = vcmp.eq.f32.partialorder %v5365, 8.507059e+37
        %v5367 = vand.u32 %v5108, 2147483648
        %v5368 = vor.u32 1.1754944e-38, %v5367
        %v5369 = vsel %vm5366, %v5368, %v5364
        %v5370 = vrcp.pop %v5111
        %v5371 = vmul.f32 %v5111, %v5370
        %v5372 = vsub.f32 1.0, %v5371
        %v5373 = vmul.f32 %v5370, %v5372
        %v5374 = vadd.f32 %v5370, %v5373
        %vm5375 = vweird.f32 %v5111
        %vm5376 = vweird.f32 %v5370
        %vm5377 = vmor %vm5375, %vm5376
        %v5378 = vsel %vm5377, %v5370, %v5374
        %v5379 = vand.u32 2147483647, %v5111
        %vm5380 = vcmp.eq.f32.partialorder %v5379, 8.507059e+37
        %v5381 = vand.u32 %v5111, 2147483648
        %v5382 = vor.u32 1.1754944e-38, %v5381
        %v5383 = vsel %vm5380, %v5382, %v5378
        %v5384 = vrcp.pop %v5114
        %v5385 = vmul.f32 %v5114, %v5384
        %v5386 = vsub.f32 1.0, %v5385
        %v5387 = vmul.f32 %v5384, %v5386
        %v5388 = vadd.f32 %v5384, %v5387
        %vm5389 = vweird.f32 %v5114
        %vm5390 = vweird.f32 %v5384
        %vm5391 = vmor %vm5389, %vm5390
        %v5392 = vsel %vm5391, %v5384, %v5388
        %v5393 = vand.u32 2147483647, %v5114
        %vm5394 = vcmp.eq.f32.partialorder %v5393, 8.507059e+37
        %v5395 = vand.u32 %v5114, 2147483648
        %v5396 = vor.u32 1.1754944e-38, %v5395
        %v5397 = vsel %vm5394, %v5396, %v5392
        %v5398 = vrcp.pop %v5117
        %v5399 = vmul.f32 %v5117, %v5398
        %v5400 = vsub.f32 1.0, %v5399
        %v5401 = vmul.f32 %v5398, %v5400
        %v5402 = vadd.f32 %v5398, %v5401
        %vm5403 = vweird.f32 %v5117
        %vm5404 = vweird.f32 %v5398
        %vm5405 = vmor %vm5403, %vm5404
        %v5406 = vsel %vm5405, %v5398, %v5402
        %v5407 = vand.u32 2147483647, %v5117
        %vm5408 = vcmp.eq.f32.partialorder %v5407, 8.507059e+37
        %v5409 = vand.u32 %v5117, 2147483648
        %v5410 = vor.u32 1.1754944e-38, %v5409
        %v5411 = vsel %vm5408, %v5410, %v5406
        %v5412 = vrcp.pop %v5120
        %v5413 = vmul.f32 %v5120, %v5412
        %v5414 = vsub.f32 1.0, %v5413
        %v5415 = vmul.f32 %v5412, %v5414
        %v5416 = vadd.f32 %v5412, %v5415
        %vm5417 = vweird.f32 %v5120
        %vm5418 = vweird.f32 %v5412
        %vm5419 = vmor %vm5417, %vm5418
        %v5420 = vsel %vm5419, %v5412, %v5416
        %v5421 = vand.u32 2147483647, %v5120
        %vm5422 = vcmp.eq.f32.partialorder %v5421, 8.507059e+37
        %v5423 = vand.u32 %v5120, 2147483648
        %v5424 = vor.u32 1.1754944e-38, %v5423
        %v5425 = vsel %vm5422, %v5424, %v5420
        %v5426 = vrcp.pop %v5123
        %v5427 = vmul.f32 %v5123, %v5426
        %v5428 = vsub.f32 1.0, %v5427
        %v5429 = vmul.f32 %v5426, %v5428
        %v5430 = vadd.f32 %v5426, %v5429
        %vm5431 = vweird.f32 %v5123
        %vm5432 = vweird.f32 %v5426
        %vm5433 = vmor %vm5431, %vm5432
        %v5434 = vsel %vm5433, %v5426, %v5430
        %v5435 = vand.u32 2147483647, %v5123
        %vm5436 = vcmp.eq.f32.partialorder %v5435, 8.507059e+37
        %v5437 = vand.u32 %v5123, 2147483648
        %v5438 = vor.u32 1.1754944e-38, %v5437
        %v5439 = vsel %vm5436, %v5438, %v5434
        %v5440 = vrcp.pop %v5126
        %v5441 = vmul.f32 %v5126, %v5440
        %v5442 = vsub.f32 1.0, %v5441
        %v5443 = vmul.f32 %v5440, %v5442
        %v5444 = vadd.f32 %v5440, %v5443
        %vm5445 = vweird.f32 %v5126
        %vm5446 = vweird.f32 %v5440
        %vm5447 = vmor %vm5445, %vm5446
        %v5448 = vsel %vm5447, %v5440, %v5444
        %v5449 = vand.u32 2147483647, %v5126
        %vm5450 = vcmp.eq.f32.partialorder %v5449, 8.507059e+37
        %v5451 = vand.u32 %v5126, 2147483648
        %v5452 = vor.u32 1.1754944e-38, %v5451
        %v5453 = vsel %vm5450, %v5452, %v5448
        %v5454 = vrcp.pop %v5129
        %v5455 = vmul.f32 %v5129, %v5454
        %v5456 = vsub.f32 1.0, %v5455
        %v5457 = vmul.f32 %v5454, %v5456
        %v5458 = vadd.f32 %v5454, %v5457
        %vm5459 = vweird.f32 %v5129
        %vm5460 = vweird.f32 %v5454
        %vm5461 = vmor %vm5459, %vm5460
        %v5462 = vsel %vm5461, %v5454, %v5458
        %v5463 = vand.u32 2147483647, %v5129
        %vm5464 = vcmp.eq.f32.partialorder %v5463, 8.507059e+37
        %v5465 = vand.u32 %v5129, 2147483648
        %v5466 = vor.u32 1.1754944e-38, %v5465
        %v5467 = vsel %vm5464, %v5466, %v5462
        %v5468 = vrcp.pop %v5132
        %v5469 = vmul.f32 %v5132, %v5468
        %v5470 = vsub.f32 1.0, %v5469
        %v5471 = vmul.f32 %v5468, %v5470
        %v5472 = vadd.f32 %v5468, %v5471
        %vm5473 = vweird.f32 %v5132
        %vm5474 = vweird.f32 %v5468
        %vm5475 = vmor %vm5473, %vm5474
        %v5476 = vsel %vm5475, %v5468, %v5472
        %v5477 = vand.u32 2147483647, %v5132
        %vm5478 = vcmp.eq.f32.partialorder %v5477, 8.507059e+37
        %v5479 = vand.u32 %v5132, 2147483648
        %v5480 = vor.u32 1.1754944e-38, %v5479
        %v5481 = vsel %vm5478, %v5480, %v5476
        %v5482 = vrcp.pop %v5135
        %v5483 = vmul.f32 %v5135, %v5482
        %v5484 = vsub.f32 1.0, %v5483
        %v5485 = vmul.f32 %v5482, %v5484
        %v5486 = vadd.f32 %v5482, %v5485
        %vm5487 = vweird.f32 %v5135
        %vm5488 = vweird.f32 %v5482
        %vm5489 = vmor %vm5487, %vm5488
        %v5490 = vsel %vm5489, %v5482, %v5486
        %v5491 = vand.u32 2147483647, %v5135
        %vm5492 = vcmp.eq.f32.partialorder %v5491, 8.507059e+37
        %v5493 = vand.u32 %v5135, 2147483648
        %v5494 = vor.u32 1.1754944e-38, %v5493
        %v5495 = vsel %vm5492, %v5494, %v5490
        %v5496 = vrcp.pop %v5138
        %v5497 = vmul.f32 %v5138, %v5496
        %v5498 = vsub.f32 1.0, %v5497
        %v5499 = vmul.f32 %v5496, %v5498
        %v5500 = vadd.f32 %v5496, %v5499
        %vm5501 = vweird.f32 %v5138
        %vm5502 = vweird.f32 %v5496
        %vm5503 = vmor %vm5501, %vm5502
        %v5504 = vsel %vm5503, %v5496, %v5500
        %v5505 = vand.u32 2147483647, %v5138
        %vm5506 = vcmp.eq.f32.partialorder %v5505, 8.507059e+37
        %v5507 = vand.u32 %v5138, 2147483648
        %v5508 = vor.u32 1.1754944e-38, %v5507
        %v5509 = vsel %vm5506, %v5508, %v5504
        %v5510 = vrcp.pop %v5141
        %v5511 = vmul.f32 %v5141, %v5510
        %v5512 = vsub.f32 1.0, %v5511
        %v5513 = vmul.f32 %v5510, %v5512
        %v5514 = vadd.f32 %v5510, %v5513
        %vm5515 = vweird.f32 %v5141
        %vm5516 = vweird.f32 %v5510
        %vm5517 = vmor %vm5515, %vm5516
        %v5518 = vsel %vm5517, %v5510, %v5514
        %v5519 = vand.u32 2147483647, %v5141
        %vm5520 = vcmp.eq.f32.partialorder %v5519, 8.507059e+37
        %v5521 = vand.u32 %v5141, 2147483648
        %v5522 = vor.u32 1.1754944e-38, %v5521
        %v5523 = vsel %vm5520, %v5522, %v5518
        %v5524 = vrcp.pop %v5144
        %v5525 = vmul.f32 %v5144, %v5524
        %v5526 = vsub.f32 1.0, %v5525
        %v5527 = vmul.f32 %v5524, %v5526
        %v5528 = vadd.f32 %v5524, %v5527
        %vm5529 = vweird.f32 %v5144
        %vm5530 = vweird.f32 %v5524
        %vm5531 = vmor %vm5529, %vm5530
        %v5532 = vsel %vm5531, %v5524, %v5528
        %v5533 = vand.u32 2147483647, %v5144
        %vm5534 = vcmp.eq.f32.partialorder %v5533, 8.507059e+37
        %v5535 = vand.u32 %v5144, 2147483648
        %v5536 = vor.u32 1.1754944e-38, %v5535
        %v5537 = vsel %vm5534, %v5536, %v5532
        %v5538 = vrcp.pop %v5147
        %v5539 = vmul.f32 %v5147, %v5538
        %v5540 = vsub.f32 1.0, %v5539
        %v5541 = vmul.f32 %v5538, %v5540
        %v5542 = vadd.f32 %v5538, %v5541
        %vm5543 = vweird.f32 %v5147
        %vm5544 = vweird.f32 %v5538
        %vm5545 = vmor %vm5543, %vm5544
        %v5546 = vsel %vm5545, %v5538, %v5542
        %v5547 = vand.u32 2147483647, %v5147
        %vm5548 = vcmp.eq.f32.partialorder %v5547, 8.507059e+37
        %v5549 = vand.u32 %v5147, 2147483648
        %v5550 = vor.u32 1.1754944e-38, %v5549
        %v5551 = vsel %vm5548, %v5550, %v5546
        %v5552 = vrcp.pop %v5150
        %v5553 = vmul.f32 %v5150, %v5552
        %v5554 = vsub.f32 1.0, %v5553
        %v5555 = vmul.f32 %v5552, %v5554
        %v5556 = vadd.f32 %v5552, %v5555
        %vm5557 = vweird.f32 %v5150
        %vm5558 = vweird.f32 %v5552
        %vm5559 = vmor %vm5557, %vm5558
        %v5560 = vsel %vm5559, %v5552, %v5556
        %v5561 = vand.u32 2147483647, %v5150
        %vm5562 = vcmp.eq.f32.partialorder %v5561, 8.507059e+37
        %v5563 = vand.u32 %v5150, 2147483648
        %v5564 = vor.u32 1.1754944e-38, %v5563
        %v5565 = vsel %vm5562, %v5564, %v5560
        %v5566 = vrcp.pop %v5153
        %v5567 = vmul.f32 %v5153, %v5566
        %v5568 = vsub.f32 1.0, %v5567
        %v5569 = vmul.f32 %v5566, %v5568
        %v5570 = vadd.f32 %v5566, %v5569
        %vm5571 = vweird.f32 %v5153
        %vm5572 = vweird.f32 %v5566
        %vm5573 = vmor %vm5571, %vm5572
        %v5574 = vsel %vm5573, %v5566, %v5570
        %v5575 = vand.u32 2147483647, %v5153
        %vm5576 = vcmp.eq.f32.partialorder %v5575, 8.507059e+37
        %v5577 = vand.u32 %v5153, 2147483648
        %v5578 = vor.u32 1.1754944e-38, %v5577
        %v5579 = vsel %vm5576, %v5578, %v5574
        %v5580 = vrcp.pop %v5156
        %v5581 = vmul.f32 %v5156, %v5580
        %v5582 = vsub.f32 1.0, %v5581
        %v5583 = vmul.f32 %v5580, %v5582
        %v5584 = vadd.f32 %v5580, %v5583
        %vm5585 = vweird.f32 %v5156
        %vm5586 = vweird.f32 %v5580
        %vm5587 = vmor %vm5585, %vm5586
        %v5588 = vsel %vm5587, %v5580, %v5584
        %v5589 = vand.u32 2147483647, %v5156
        %vm5590 = vcmp.eq.f32.partialorder %v5589, 8.507059e+37
        %v5591 = vand.u32 %v5156, 2147483648
        %v5592 = vor.u32 1.1754944e-38, %v5591
        %v5593 = vsel %vm5590, %v5592, %v5588
        %v5594 = vrcp.pop %v5159
        %v5595 = vmul.f32 %v5159, %v5594
        %v5596 = vsub.f32 1.0, %v5595
        %v5597 = vmul.f32 %v5594, %v5596
        %v5598 = vadd.f32 %v5594, %v5597
        %vm5599 = vweird.f32 %v5159
        %vm5600 = vweird.f32 %v5594
        %vm5601 = vmor %vm5599, %vm5600
        %v5602 = vsel %vm5601, %v5594, %v5598
        %v5603 = vand.u32 2147483647, %v5159
        %vm5604 = vcmp.eq.f32.partialorder %v5603, 8.507059e+37
        %v5605 = vand.u32 %v5159, 2147483648
        %v5606 = vor.u32 1.1754944e-38, %v5605
        %v5607 = vsel %vm5604, %v5606, %v5602
        %v5608 = vmul.f32 %v5001, %v5173
        %v5609 = vmul.f32 %v5003, %v5187
        %v5610 = vmul.f32 %v5005, %v5201
        %v5611 = vmul.f32 %v5007, %v5215
        %v5612 = vmul.f32 %v5009, %v5229
        %v5613 = vmul.f32 %v5011, %v5243
        %v5614 = vmul.f32 %v5013, %v5257
        %v5615 = vmul.f32 %v5015, %v5271
        %v5616 = vmul.f32 %v5017, %v5285
        %v5617 = vmul.f32 %v5019, %v5299
        %v5618 = vmul.f32 %v5021, %v5313
        %v5619 = vmul.f32 %v5023, %v5327
        %v5620 = vmul.f32 %v5025, %v5341
        %v5621 = vmul.f32 %v5027, %v5355
        %v5622 = vmul.f32 %v5029, %v5369
        %v5623 = vmul.f32 %v5031, %v5383
        %v5624 = vmul.f32 %v5033, %v5397
        %v5625 = vmul.f32 %v5035, %v5411
        %v5626 = vmul.f32 %v5037, %v5425
        %v5627 = vmul.f32 %v5039, %v5439
        %v5628 = vmul.f32 %v5041, %v5453
        %v5629 = vmul.f32 %v5043, %v5467
        %v5630 = vmul.f32 %v5045, %v5481
        %v5631 = vmul.f32 %v5047, %v5495
        %v5632 = vmul.f32 %v5049, %v5509
        %v5633 = vmul.f32 %v5051, %v5523
        %v5634 = vmul.f32 %v5053, %v5537
        %v5635 = vmul.f32 %v5055, %v5551
        %v5636 = vmul.f32 %v5057, %v5565
        %v5637 = vmul.f32 %v5059, %v5579
        %v5638 = vmul.f32 %v5061, %v5593
        %v5639 = vmul.f32 %v5063, %v5607
        %v5640 = vmul.f32 %v5608, %v4353
        %v5641 = vmul.f32 %v5609, %v4356
        %v5642 = vmul.f32 %v5610, %v4359
        %v5643 = vmul.f32 %v5611, %v4362
        %v5644 = vmul.f32 %v5612, %v4365
        %v5645 = vmul.f32 %v5613, %v4368
        %v5646 = vmul.f32 %v5614, %v4371
        %v5647 = vmul.f32 %v5615, %v4374
        %v5648 = vmul.f32 %v5616, %v4377
        %v5649 = vmul.f32 %v5617, %v4380
        %v5650 = vmul.f32 %v5618, %v4383
        %v5651 = vmul.f32 %v5619, %v4386
        %v5652 = vmul.f32 %v5620, %v4389
        %v5653 = vmul.f32 %v5621, %v4392
        %v5654 = vmul.f32 %v5622, %v4395
        %v5655 = vmul.f32 %v5623, %v4398
        %v5656 = vmul.f32 %v5624, %v4401
        %v5657 = vmul.f32 %v5625, %v4404
        %v5658 = vmul.f32 %v5626, %v4407
        %v5659 = vmul.f32 %v5627, %v4410
        %v5660 = vmul.f32 %v5628, %v4413
        %v5661 = vmul.f32 %v5629, %v4416
        %v5662 = vmul.f32 %v5630, %v4419
        %v5663 = vmul.f32 %v5631, %v4422
        %v5664 = vmul.f32 %v5632, %v4425
        %v5665 = vmul.f32 %v5633, %v4428
        %v5666 = vmul.f32 %v5634, %v4431
        %v5667 = vmul.f32 %v5635, %v4434
        %v5668 = vmul.f32 %v5636, %v4437
        %v5669 = vmul.f32 %v5637, %v4440
        %v5670 = vmul.f32 %v5638, %v4443
        %v5671 = vmul.f32 %v5639, %v4446
        %v5672 = vld [vmem:[#allocation2 + $0x150] sm:$0xff]
        %v5673 = vld [vmem:[#allocation2 + $0x168] sm:$0xff]
        %v5674 = vld [vmem:[#allocation2 + $0x180] sm:$0xff]
        %v5675 = vld [vmem:[#allocation2 + $0x198] sm:$0xff]
        %v5676 = vld [vmem:[%s3 + $0x4] ss:$0 sm:$0xff]
        %v5678 = vsel %vm757, %v5640, 0
        %v5681 = vsel %vm757, %v5641, 0
        %v5684 = vsel %vm757, %v5642, 0
        %v5687 = vsel %vm757, %v5643, 0
        %v5690 = vsel %vm757, %v5644, 0
        %v5693 = vsel %vm757, %v5645, 0
        %v5696 = vsel %vm757, %v5646, 0
        %v5699 = vsel %vm757, %v5647, 0
        %v5702 = vsel %vm757, %v5648, 0
        %v5705 = vsel %vm757, %v5649, 0
        %v5708 = vsel %vm757, %v5650, 0
        %v5711 = vsel %vm757, %v5651, 0
        %v5714 = vsel %vm757, %v5652, 0
        %v5717 = vsel %vm757, %v5653, 0
        %v5720 = vsel %vm757, %v5654, 0
        %v5723 = vsel %vm757, %v5655, 0
        %v5726 = vsel %vm757, %v5656, 0
        %v5729 = vsel %vm757, %v5657, 0
        %v5732 = vsel %vm757, %v5658, 0
        %v5735 = vsel %vm757, %v5659, 0
        %v5738 = vsel %vm757, %v5660, 0
        %v5741 = vsel %vm757, %v5661, 0
        %v5744 = vsel %vm757, %v5662, 0
        %v5747 = vsel %vm757, %v5663, 0
        %v5750 = vsel %vm757, %v5664, 0
        %v5753 = vsel %vm757, %v5665, 0
        %v5756 = vsel %vm757, %v5666, 0
        %v5759 = vsel %vm757, %v5667, 0
        %v5762 = vsel %vm757, %v5668, 0
        %v5765 = vsel %vm757, %v5669, 0
        %v5768 = vsel %vm757, %v5670, 0
        %v5771 = vsel %vm757, %v5671, 0
        %5773 = vmatpush.msra.mxu0 0.0
        %5774 = vmatpush.msra.mxu0 0.0
        %5775 = vmatpush.msra.mxu0 0.0
        %5776 = vmatpush.msra.mxu0 0.0
        %5777 = vmatpush.msra.mxu0 0.0
        %5778 = vmatpush.msra.mxu0 0.0
        %5779 = vmatpush.msra.mxu0 0.0
        %5780 = vmatpush.msra.mxu0 0.0
        %5781 = vmatpush.msra.mxu0 0.0
        %5782 = vmatpush.msra.mxu0 0.0
        %5783 = vmatpush.msra.mxu0 0.0
        %5784 = vmatpush.msra.mxu0 0.0
        %5785 = vmatpush.msra.mxu0 %v5675
        %5786 = vmatpush.msra.mxu0 %v5674
        %5787 = vmatpush.msra.mxu0 %v5673
        %5788 = vmatpush.msra.mxu0 %v5672
        %5789 = vmatmul.f32.gmra.mxu0 %v5678
        %v5790 = vpop.f32.mrf.mxu0
        %v5791 = vadd.f32 %v5676, %v5790
        %5792 = vmatmul.f32.gmra.mxu0 %v5681
        %v5793 = vpop.f32.mrf.mxu0
        %v5794 = vadd.f32 %v5676, %v5793
        %5795 = vmatmul.f32.gmra.mxu0 %v5684
        %v5796 = vpop.f32.mrf.mxu0
        %v5797 = vadd.f32 %v5676, %v5796
        %5798 = vmatmul.f32.gmra.mxu0 %v5687
        %v5799 = vpop.f32.mrf.mxu0
        %v5800 = vadd.f32 %v5676, %v5799
        %5801 = vmatmul.f32.gmra.mxu0 %v5690
        %v5802 = vpop.f32.mrf.mxu0
        %v5803 = vadd.f32 %v5676, %v5802
        %5804 = vmatmul.f32.gmra.mxu0 %v5693
        %v5805 = vpop.f32.mrf.mxu0
        %v5806 = vadd.f32 %v5676, %v5805
        %5807 = vmatmul.f32.gmra.mxu0 %v5696
        %v5808 = vpop.f32.mrf.mxu0
        %v5809 = vadd.f32 %v5676, %v5808
        %5810 = vmatmul.f32.gmra.mxu0 %v5699
        %v5811 = vpop.f32.mrf.mxu0
        %v5812 = vadd.f32 %v5676, %v5811
        %5813 = vmatmul.f32.gmra.mxu0 %v5702
        %v5814 = vpop.f32.mrf.mxu0
        %v5815 = vadd.f32 %v5676, %v5814
        %5816 = vmatmul.f32.gmra.mxu0 %v5705
        %v5817 = vpop.f32.mrf.mxu0
        %v5818 = vadd.f32 %v5676, %v5817
        %5819 = vmatmul.f32.gmra.mxu0 %v5708
        %v5820 = vpop.f32.mrf.mxu0
        %v5821 = vadd.f32 %v5676, %v5820
        %5822 = vmatmul.f32.gmra.mxu0 %v5711
        %v5823 = vpop.f32.mrf.mxu0
        %v5824 = vadd.f32 %v5676, %v5823
        %5825 = vmatmul.f32.gmra.mxu0 %v5714
        %v5826 = vpop.f32.mrf.mxu0
        %v5827 = vadd.f32 %v5676, %v5826
        %5828 = vmatmul.f32.gmra.mxu0 %v5717
        %v5829 = vpop.f32.mrf.mxu0
        %v5830 = vadd.f32 %v5676, %v5829
        %5831 = vmatmul.f32.gmra.mxu0 %v5720
        %v5832 = vpop.f32.mrf.mxu0
        %v5833 = vadd.f32 %v5676, %v5832
        %5834 = vmatmul.f32.gmra.mxu0 %v5723
        %v5835 = vpop.f32.mrf.mxu0
        %v5836 = vadd.f32 %v5676, %v5835
        %5837 = vmatmul.f32.gmra.mxu0 %v5726
        %v5838 = vpop.f32.mrf.mxu0
        %v5839 = vadd.f32 %v5676, %v5838
        %5840 = vmatmul.f32.gmra.mxu0 %v5729
        %v5841 = vpop.f32.mrf.mxu0
        %v5842 = vadd.f32 %v5676, %v5841
        %5843 = vmatmul.f32.gmra.mxu0 %v5732
        %v5844 = vpop.f32.mrf.mxu0
        %v5845 = vadd.f32 %v5676, %v5844
        %5846 = vmatmul.f32.gmra.mxu0 %v5735
        %v5847 = vpop.f32.mrf.mxu0
        %v5848 = vadd.f32 %v5676, %v5847
        %5849 = vmatmul.f32.gmra.mxu0 %v5738
        %v5850 = vpop.f32.mrf.mxu0
        %v5851 = vadd.f32 %v5676, %v5850
        %5852 = vmatmul.f32.gmra.mxu0 %v5741
        %v5853 = vpop.f32.mrf.mxu0
        %v5854 = vadd.f32 %v5676, %v5853
        %5855 = vmatmul.f32.gmra.mxu0 %v5744
        %v5856 = vpop.f32.mrf.mxu0
        %v5857 = vadd.f32 %v5676, %v5856
        %5858 = vmatmul.f32.gmra.mxu0 %v5747
        %v5859 = vpop.f32.mrf.mxu0
        %v5860 = vadd.f32 %v5676, %v5859
        %5861 = vmatmul.f32.gmra.mxu0 %v5750
        %v5862 = vpop.f32.mrf.mxu0
        %v5863 = vadd.f32 %v5676, %v5862
        %5864 = vmatmul.f32.gmra.mxu0 %v5753
        %v5865 = vpop.f32.mrf.mxu0
        %v5866 = vadd.f32 %v5676, %v5865
        %5867 = vmatmul.f32.gmra.mxu0 %v5756
        %v5868 = vpop.f32.mrf.mxu0
        %v5869 = vadd.f32 %v5676, %v5868
        %5870 = vmatmul.f32.gmra.mxu0 %v5759
        %v5871 = vpop.f32.mrf.mxu0
        %v5872 = vadd.f32 %v5676, %v5871
        %5873 = vmatmul.f32.gmra.mxu0 %v5762
        %v5874 = vpop.f32.mrf.mxu0
        %v5875 = vadd.f32 %v5676, %v5874
        %5876 = vmatmul.f32.gmra.mxu0 %v5765
        %v5877 = vpop.f32.mrf.mxu0
        %v5878 = vadd.f32 %v5676, %v5877
        %5879 = vmatmul.f32.gmra.mxu0 %v5768
        %v5880 = vpop.f32.mrf.mxu0
        %v5881 = vadd.f32 %v5676, %v5880
        %5882 = vmatmul.f32.gmra.mxu0 %v5771
        %v5883 = vpop.f32.mrf.mxu0
        %v5884 = vadd.f32 %v5676, %v5883
        %5885 = vdwg.mxu0
        %v5886 = vmax.f32 %v5791, 0.0
        %v5887 = vmax.f32 %v5794, 0.0
        %v5888 = vmax.f32 %v5797, 0.0
        %v5889 = vmax.f32 %v5800, 0.0
        %v5890 = vmax.f32 %v5803, 0.0
        %v5891 = vmax.f32 %v5806, 0.0
        %v5892 = vmax.f32 %v5809, 0.0
        %v5893 = vmax.f32 %v5812, 0.0
        %v5894 = vmax.f32 %v5815, 0.0
        %v5895 = vmax.f32 %v5818, 0.0
        %v5896 = vmax.f32 %v5821, 0.0
        %v5897 = vmax.f32 %v5824, 0.0
        %v5898 = vmax.f32 %v5827, 0.0
        %v5899 = vmax.f32 %v5830, 0.0
        %v5900 = vmax.f32 %v5833, 0.0
        %v5901 = vmax.f32 %v5836, 0.0
        %v5902 = vmax.f32 %v5839, 0.0
        %v5903 = vmax.f32 %v5842, 0.0
        %v5904 = vmax.f32 %v5845, 0.0
        %v5905 = vmax.f32 %v5848, 0.0
        %v5906 = vmax.f32 %v5851, 0.0
        %v5907 = vmax.f32 %v5854, 0.0
        %v5908 = vmax.f32 %v5857, 0.0
        %v5909 = vmax.f32 %v5860, 0.0
        %v5910 = vmax.f32 %v5863, 0.0
        %v5911 = vmax.f32 %v5866, 0.0
        %v5912 = vmax.f32 %v5869, 0.0
        %v5913 = vmax.f32 %v5872, 0.0
        %v5914 = vmax.f32 %v5875, 0.0
        %v5915 = vmax.f32 %v5878, 0.0
        %v5916 = vmax.f32 %v5881, 0.0
        %v5917 = vmax.f32 %v5884, 0.0
        %vm5918 = vcmask 64512
        %5919 = vst.msk [vmem:[%s246] sm:$0xff] %vm5918, %v5886
        %5920 = vst.msk [vmem:[%s246 + $0x8] sm:$0xff] %vm5918, %v5887
        %5921 = vst.msk [vmem:[%s246 + $0x10] sm:$0xff] %vm5918, %v5888
        %5922 = vst.msk [vmem:[%s246 + $0x18] sm:$0xff] %vm5918, %v5889
        %5923 = vst.msk [vmem:[%s246 + $0x20] sm:$0xff] %vm5918, %v5890
        %5924 = vst.msk [vmem:[%s246 + $0x28] sm:$0xff] %vm5918, %v5891
        %5925 = vst.msk [vmem:[%s246 + $0x30] sm:$0xff] %vm5918, %v5892
        %5926 = vst.msk [vmem:[%s246 + $0x38] sm:$0xff] %vm5918, %v5893
        %5927 = vst.msk [vmem:[%s246 + $0x40] sm:$0xff] %vm5918, %v5894
        %5928 = vst.msk [vmem:[%s246 + $0x48] sm:$0xff] %vm5918, %v5895
        %5929 = vst.msk [vmem:[%s246 + $0x50] sm:$0xff] %vm5918, %v5896
        %5930 = vst.msk [vmem:[%s246 + $0x58] sm:$0xff] %vm5918, %v5897
        %5931 = vst.msk [vmem:[%s246 + $0x60] sm:$0xff] %vm5918, %v5898
        %5932 = vst.msk [vmem:[%s246 + $0x68] sm:$0xff] %vm5918, %v5899
        %5933 = vst.msk [vmem:[%s246 + $0x70] sm:$0xff] %vm5918, %v5900
        %5934 = vst.msk [vmem:[%s246 + $0x78] sm:$0xff] %vm5918, %v5901
        %5935 = vst.msk [vmem:[%s246 + $0x80] sm:$0xff] %vm5918, %v5902
        %5936 = vst.msk [vmem:[%s246 + $0x88] sm:$0xff] %vm5918, %v5903
        %5937 = vst.msk [vmem:[%s246 + $0x90] sm:$0xff] %vm5918, %v5904
        %5938 = vst.msk [vmem:[%s246 + $0x98] sm:$0xff] %vm5918, %v5905
        %5939 = vst.msk [vmem:[%s246 + $0xa0] sm:$0xff] %vm5918, %v5906
        %5940 = vst.msk [vmem:[%s246 + $0xa8] sm:$0xff] %vm5918, %v5907
        %5941 = vst.msk [vmem:[%s246 + $0xb0] sm:$0xff] %vm5918, %v5908
        %5942 = vst.msk [vmem:[%s246 + $0xb8] sm:$0xff] %vm5918, %v5909
        %5943 = vst.msk [vmem:[%s246 + $0xc0] sm:$0xff] %vm5918, %v5910
        %5944 = vst.msk [vmem:[%s246 + $0xc8] sm:$0xff] %vm5918, %v5911
        %5945 = vst.msk [vmem:[%s246 + $0xd0] sm:$0xff] %vm5918, %v5912
        %5946 = vst.msk [vmem:[%s246 + $0xd8] sm:$0xff] %vm5918, %v5913
        %5947 = vst.msk [vmem:[%s246 + $0xe0] sm:$0xff] %vm5918, %v5914
        %5948 = vst.msk [vmem:[%s246 + $0xe8] sm:$0xff] %vm5918, %v5915
        %5949 = vst.msk [vmem:[%s246 + $0xf0] sm:$0xff] %vm5918, %v5916
        %5950 = vst.msk [vmem:[%s246 + $0xf8] sm:$0xff] %vm5918, %v5917
        %s5951 = smul.u32 8, %s16
        %p5952 = scmp.lt.s32.totalorder %s5951, 15
        %s5953 = scalar_select %p5952, %s5951, 15
        %s5954 = smul.addr %s5953, 4
        %s5955 = smul.addr %s5954, 8
        %s5956 = scalar_lea.vmem %s4, %s5955
        // Predicated region
        $region41: #{tpu_custom_call.1} parent=35 // pred_check
          %p5957 = pneg %p128
        $region42: #{tpu_custom_call.1} parent=35 // pred_check_branch
          %5959 = sbr.rel (%p5957) target = $region44
        $region43: #{tpu_custom_call.1} parent=35 // pred_region
          %s5960 = smul.u32 8, %s16
        $region44: #{tpu_custom_call.1} parent=35 // pred_fallthru
          _
      $region36: #{tpu_custom_call.1} parent=5 // pred_fallthru
        _
      %p5961 = scmp.le.s32.totalorder 2, %s11
      // Predicated region
      $region45: #{tpu_custom_call.1} parent=5 // pred_check
        %p5962 = pneg %p5961
      $region46: #{tpu_custom_call.1} parent=5 // pred_check_branch
        %5964 = sbr.rel (%p5962) target = $region48
      $region47: #{tpu_custom_call.1} parent=5 // pred_region
        %s5965 = ssub.s32 %s11, 2
        // Predicated region
        $region49: #{tpu_custom_call.1} parent=47 // pred_check
          %p5966 = pneg %p134
        $region50: #{tpu_custom_call.1} parent=47 // pred_check_branch
          %5968 = sbr.rel (%p5966) target = $region52
        $region51: #{tpu_custom_call.1} parent=47 // pred_region
          %s5969 = smul.u32 8, %s17
          %p5970 = scmp.lt.s32.totalorder %s5969, 15
          %s5971 = scalar_select %p5970, %s5969, 15
          %s5972 = smul.addr %s5971, 4
          %s5973 = smul.addr %s5972, 8
          %s5974 = scalar_lea.vmem %s4, %s5973
        $region52: #{tpu_custom_call.1} parent=47 // pred_fallthru
          _
      $region48: #{tpu_custom_call.1} parent=5 // pred_fallthru
        _
    $region6: #{tpu_custom_call.1} parent=1 // loop_footer
      %s15 = sadd.s32 1, %s11
    $region7: #{tpu_custom_call.1} parent=1 // loop_footer_branch
      %10 = sbr.rel target = $region3
    $region8: #{tpu_custom_call.1} parent=1 // loop_exit
      _
    %5975 = vsyncpa [#allocation3], 1
    %s5976 = scalar_lea.sflag [#allocation3], 1
    %5977 = vsyncpa %s5976, 1

</llo_original>
